<compile_context>
chip_gen: v7x
topology: tpu7x:2x2x1
jax: 0.10.0
libtpu: 0.0.40
codegen_flags: <defaults>
</compile_context>

<pallas_src>
import functools

import jax
import jax.numpy as jnp
from jax import lax
from jax.experimental import pallas as pl
from jax.experimental.pallas import tpu as pltpu


# ---------------------------------------------------------------------------
# Pass 1: gating + folded projections, once per spatial row (channel-major)
# ---------------------------------------------------------------------------
def _scc_proj_kernel(d_ref, r_ref, ys_ref, yc_ref,
                     w1t_ref, b1_ref, w2t_ref, b2_ref,
                     x_ref, q_ref, k_ref, v_ref,
                     *, c_depth, dv, dk, c_total):
    bf16 = jnp.bfloat16
    inv_c2 = 1.0 / float(c_total * c_total)

    # fus: (C, tp) f32, channel-major (straight from NCHW inputs)
    fus = jnp.concatenate([d_ref[...], r_ref[...]], axis=0)
    # SpatialAttention_max gate, exact f32
    msum = jnp.sum(fus * ys_ref[...], axis=0, keepdims=True) * inv_c2
    gate = jax.nn.sigmoid(msum)                                  # (1, tp)
    att = (fus * yc_ref[...] * gate).astype(bf16)                # gated input
    fus_bf = fus.astype(bf16)                                    # raw input

    # [x | v] = W1^T @ att  (conv/BN folded, conv folded into v projection)
    proj1 = (jnp.dot(w1t_ref[...], att, preferred_element_type=jnp.float32)
             + b1_ref[...])                                      # (Cd+2dv, tp)
    # [q1 q2 k1 k2] = W2^T @ fus  (bn_x1/bn_x2 + channel_shuffle + 1/sqrt(dk)
    # folded into the weights)
    proj2 = (jnp.dot(w2t_ref[...], fus_bf, preferred_element_type=jnp.float32)
             + b2_ref[...])                                      # (4dk, tp)

    Cd = c_depth
    x_ref[...] = proj1[:Cd]                                      # residual, f32
    v_ref[0] = proj1[Cd:Cd + dv].astype(bf16)                    # (dv, tp)
    v_ref[1] = proj1[Cd + dv:].astype(bf16)
    # q stored row-major so the attention inner loop needs no transposes
    q_ref[0] = jnp.transpose(proj2[0 * dk:1 * dk]).astype(bf16)  # (tp, dk)
    q_ref[1] = jnp.transpose(proj2[1 * dk:2 * dk]).astype(bf16)
    k_ref[0] = proj2[2 * dk:3 * dk].astype(bf16)                 # (dk, tp)
    k_ref[1] = proj2[3 * dk:4 * dk].astype(bf16)


# ---------------------------------------------------------------------------
# Pass 2: two-head flash attention + out-proj + residual (channel-major output)
# ---------------------------------------------------------------------------
def _scc_attn_kernel(q_ref, k_ref, v_ref, x_ref,
                     wout1_ref, wout2_ref, bout_ref, out_ref,
                     m1_s, l1_s, m2_s, l2_s, acc1_s, acc2_s):
    j = pl.program_id(2)
    nj = pl.num_programs(2)

    @pl.when(j == 0)
    def _init():
        neg = jnp.full(m1_s.shape, -jnp.inf, jnp.float32)
        m1_s[...] = neg
        m2_s[...] = neg
        l1_s[...] = jnp.zeros(l1_s.shape, jnp.float32)
        l2_s[...] = jnp.zeros(l2_s.shape, jnp.float32)
        acc1_s[...] = jnp.zeros(acc1_s.shape, jnp.float32)
        acc2_s[...] = jnp.zeros(acc2_s.shape, jnp.float32)

    def head(q, k, v, m_s, l_s, acc_s):
        # q (tq, dk) row-major; k (dk, tkv), v (dv, tkv) channel-major.
        # Softmax scale is pre-folded into q.
        s = jnp.dot(q, k, preferred_element_type=jnp.float32)     # (tq, tkv)
        m_prev = m_s[...]
        m_new = jnp.maximum(m_prev, jnp.max(s, axis=-1, keepdims=True))
        alpha = jnp.exp(m_prev - m_new)
        p = jnp.exp(s - m_new)
        l_s[...] = alpha * l_s[...] + jnp.sum(p, axis=-1, keepdims=True)
        acc_s[...] = alpha * acc_s[...] + lax.dot_general(
            p.astype(jnp.bfloat16), v, (((1,), (1,)), ((), ())),
            preferred_element_type=jnp.float32)                   # (tq, dv)
        m_s[...] = m_new

    head(q_ref[0], k_ref[0], v_ref[0], m1_s, l1_s, acc1_s)
    head(q_ref[1], k_ref[1], v_ref[1], m2_s, l2_s, acc2_s)

    @pl.when(j == nj - 1)
    def _fin():
        # exact f32 normalization (off the hot loop)
        o1 = (acc1_s[...] / l1_s[...]).astype(jnp.bfloat16)
        o2 = (acc2_s[...] / l2_s[...]).astype(jnp.bfloat16)
        out_rm = (jnp.dot(o1, wout1_ref[...], preferred_element_type=jnp.float32)
                  + jnp.dot(o2, wout2_ref[...], preferred_element_type=jnp.float32)
                  + bout_ref[...])                                # (tq, Cd)
        # channel-major store: lane axis = spatial -> lane-dense vst
        out_ref[...] = jnp.transpose(out_rm) + x_ref[...]         # (Cd, tq)


# ---------------------------------------------------------------------------
# Wrapper: weight folding + two pallas_calls
# ---------------------------------------------------------------------------
def scc_module_forward(depth_out, rgb_out, params, *, tp=512, tq=256, tkv=1024):
    B, Cd, H, W = depth_out.shape
    Cr = rgb_out.shape[1]
    N = H * W
    C = Cd + Cr
    dv = Cd // 4          # midc1 (value dim per head)
    dk = Cr // 4          # midc2 (q/k dim per head)
    hh = dk // 2
    assert dk % 2 == 0 and Cd % 8 == 0 and Cr % 8 == 0

    def _tile(t):
        t = min(t, N)
        assert N % t == 0 and (t % 128 == 0 or t == N)
        return t

    tp, tq, tkv = _tile(tp), _tile(tq), _tile(tkv)

    sp = params
    ca = sp['ca']
    bf16 = jnp.bfloat16
    f32 = jnp.float32

    # --- NCHW inputs viewed channel-major (B, Cch, N): no transpose, no cast.
    d_cm = depth_out.reshape(B, Cd, N)
    r_cm = rgb_out.reshape(B, Cr, N)

    # --- global-pool gates: tiny (B, C) computation stays in plain JAX
    y_avg = jnp.concatenate([jnp.mean(depth_out, axis=(2, 3)),
                             jnp.mean(rgb_out, axis=(2, 3))], axis=-1)   # (B, C)
    y_s = jnp.maximum(y_avg @ sp['ws1'], 0.0) @ sp['ws2']
    y_c = jax.nn.sigmoid(jnp.maximum(y_avg @ sp['wc1'], 0.0) @ sp['wc2'])
    ys_cm = y_s[:, :, None].astype(f32)                                  # (B, C, 1)
    yc_cm = y_c[:, :, None].astype(f32)

    # --- fold BN into adjacent matmuls; fold conv into the value projection
    wconv = sp['wconv1'] * sp['bn_scale']                     # (C, Cd)
    bconv = sp['bn_shift']                                    # (1, Cd)
    wv, bv = ca['wv'], ca['bv']                               # (Cd, 2dv), (1, 2dv)
    w1 = jnp.concatenate([wconv, wconv @ wv], axis=1)         # (C, Cd+2dv)
    b1 = jnp.concatenate([bconv, bconv @ wv + bv], axis=1)    # (1, Cd+2dv)
    w1t = w1.T.astype(bf16)                                   # (Cd+2dv, C)
    b1t = b1.T.astype(f32)                                    # (Cd+2dv, 1)

    wkq1 = ca['wkq1'] * ca['bn1_scale'].reshape(-1, 1)        # (Cd, 2dk)
    bkq1 = ca['bn1_shift'] @ ca['wkq1'] + ca['bkq1']          # (1, 2dk)
    wkq2 = ca['wkq2'] * ca['bn2_scale'].reshape(-1, 1)        # (Cr, 2dk)
    bkq2 = ca['bn2_shift'] @ ca['wkq2'] + ca['bkq2']

    # channel_shuffle+split replaced by a column permutation applied
    # identically to q and k (scores are invariant); layout [q1 q2 k1 k2],
    # each dk wide = [d-half (hh) | r-half (hh)]; 1/sqrt(dk) folded into q.
    def col_grp(lo):
        top = jnp.concatenate([wkq1[:, lo:lo + hh], jnp.zeros((Cd, hh), f32)], 1)
        bot = jnp.concatenate([jnp.zeros((Cr, hh), f32), wkq2[:, lo:lo + hh]], 1)
        return jnp.concatenate([top, bot], axis=0)            # (C, dk)

    def bias_grp(lo):
        return jnp.concatenate([bkq1[:, lo:lo + hh], bkq2[:, lo:lo + hh]], 1)

    inv_sqrt = 1.0 / (float(dk) ** 0.5)
    w2 = jnp.concatenate([col_grp(hh) * inv_sqrt, col_grp(3 * hh) * inv_sqrt,
                          col_grp(0), col_grp(2 * hh)], axis=1)          # (C, 4dk)
    b2 = jnp.concatenate([bias_grp(hh) * inv_sqrt, bias_grp(3 * hh) * inv_sqrt,
                          bias_grp(0), bias_grp(2 * hh)], axis=1)        # (1, 4dk)
    w2t = w2.T.astype(bf16)                                   # (4dk, C)
    b2t = b2.T.astype(f32)                                    # (4dk, 1)

    wout = ca['wout'] * ca['bnl_scale']                       # (2dv, Cd)
    wout1 = wout[:dv].astype(bf16)
    wout2 = wout[dv:].astype(bf16)
    bout = (ca['bout'] * ca['bnl_scale'] + ca['bnl_shift']).astype(f32)  # (1, Cd)

    vmem_cap = 32 * 1024 * 1024   # plenty for these tiles; safe on v7x too

    # ---------------- pass 1: projections (once per spatial row) ------------
    proj_kernel = functools.partial(_scc_proj_kernel,
                                    c_depth=Cd, dv=dv, dk=dk, c_total=C)
    x_cm, q_rm, k_cm, v_cm = pl.pallas_call(
        proj_kernel,
        grid=(B, N // tp),
        in_specs=[
            pl.BlockSpec((None, Cd, tp), lambda b, i: (b, 0, i)),
            pl.BlockSpec((None, Cr, tp), lambda b, i: (b, 0, i)),
            pl.BlockSpec((None, C, 1), lambda b, i: (b, 0, 0)),
            pl.BlockSpec((None, C, 1), lambda b, i: (b, 0, 0)),
            pl.BlockSpec((Cd + 2 * dv, C), lambda b, i: (0, 0)),
            pl.BlockSpec((Cd + 2 * dv, 1), lambda b, i: (0, 0)),
            pl.BlockSpec((4 * dk, C), lambda b, i: (0, 0)),
            pl.BlockSpec((4 * dk, 1), lambda b, i: (0, 0)),
        ],
        out_shape=(
            jax.ShapeDtypeStruct((B, Cd, N), f32),      # x residual (channel-major)
            jax.ShapeDtypeStruct((B, 2, N, dk), bf16),  # q (row-major per head)
            jax.ShapeDtypeStruct((B, 2, dk, N), bf16),  # k (channel-major per head)
            jax.ShapeDtypeStruct((B, 2, dv, N), bf16),  # v (channel-major per head)
        ),
        out_specs=(
            pl.BlockSpec((None, Cd, tp), lambda b, i: (b, 0, i)),
            pl.BlockSpec((None, 2, tp, dk), lambda b, i: (b, 0, i, 0)),
            pl.BlockSpec((None, 2, dk, tp), lambda b, i: (b, 0, 0, i)),
            pl.BlockSpec((None, 2, dv, tp), lambda b, i: (b, 0, 0, i)),
        ),
        compiler_params=pltpu.CompilerParams(
            dimension_semantics=("parallel", "parallel"),
            vmem_limit_bytes=vmem_cap),
    )(d_cm, r_cm, ys_cm, yc_cm, w1t, b1t, w2t, b2t)

    # ---------------- pass 2: flash attention + out proj + residual ---------
    out_cm = pl.pallas_call(
        _scc_attn_kernel,
        grid=(B, N // tq, N // tkv),
        in_specs=[
            pl.BlockSpec((None, 2, tq, dk), lambda b, i, j: (b, 0, i, 0)),
            pl.BlockSpec((None, 2, dk, tkv), lambda b, i, j: (b, 0, 0, j)),
            pl.BlockSpec((None, 2, dv, tkv), lambda b, i, j: (b, 0, 0, j)),
            pl.BlockSpec((None, Cd, tq), lambda b, i, j: (b, 0, i)),
            pl.BlockSpec((dv, Cd), lambda b, i, j: (0, 0)),
            pl.BlockSpec((dv, Cd), lambda b, i, j: (0, 0)),
            pl.BlockSpec((1, Cd), lambda b, i, j: (0, 0)),
        ],
        out_shape=jax.ShapeDtypeStruct((B, Cd, N), f32),
        out_specs=pl.BlockSpec((None, Cd, tq), lambda b, i, j: (b, 0, i)),
        scratch_shapes=[
            pltpu.VMEM((tq, 1), f32), pltpu.VMEM((tq, 1), f32),   # m1, l1
            pltpu.VMEM((tq, 1), f32), pltpu.VMEM((tq, 1), f32),   # m2, l2
            pltpu.VMEM((tq, dv), f32), pltpu.VMEM((tq, dv), f32), # acc1, acc2
        ],
        compiler_params=pltpu.CompilerParams(
            # B and q-tile axes shard across megacore TCs on v7x; keep
            # B * (N/tq) >= 2 (and ideally even) there.
            dimension_semantics=("parallel", "parallel", "arbitrary"),
            vmem_limit_bytes=vmem_cap),
    )(q_rm, k_cm, v_cm, x_cm, wout1, wout2, bout)

    # output is already NCHW channel-major: just a free reshape
    return out_cm.reshape(B, Cd, H, W)


# ---------------------------------------------------------------------------
# Deterministic parameter construction (BN folded to inference scale/shift)
# ---------------------------------------------------------------------------
def init_params(key, inc_depth, inc_rgb):
    keys = iter(jax.random.split(key, 48))

    def nrm(shape, s=0.1):
        return (s * jax.random.normal(next(keys), shape)).astype(jnp.float32)

    def bn_folded(c):
        gamma = 1.0 + nrm((c,))
        beta = nrm((c,))
        mean = nrm((c,))
        var = 1.0 + 0.1 * jnp.abs(jax.random.normal(next(keys), (c,)))
        scale = gamma / jnp.sqrt(var.astype(jnp.float32) + 1e-5)
        shift = beta - mean * scale
        return (scale.reshape(1, c).astype(jnp.float32),
                shift.reshape(1, c).astype(jnp.float32))

    C = inc_rgb + inc_depth
    m1, m2 = inc_depth // 4, inc_rgb // 4

    bn_scale, bn_shift = bn_folded(inc_depth)
    bn1s, bn1b = bn_folded(inc_depth)
    bn2s, bn2b = bn_folded(inc_rgb)
    bnls, bnlb = bn_folded(inc_depth)
    return dict(
        ws1=nrm((C, C // 16)), ws2=nrm((C // 16, C)),
        wc1=nrm((C, C // 8)), wc2=nrm((C // 8, C)),
        wconv1=nrm((C, inc_depth)), bn_scale=bn_scale, bn_shift=bn_shift,
        ca=dict(
            bn1_scale=bn1s, bn1_shift=bn1b, bn2_scale=bn2s, bn2_shift=bn2b,
            wkq1=nrm((inc_depth, 2 * m2)), bkq1=nrm((1, 2 * m2)),
            wkq2=nrm((inc_rgb, 2 * m2)), bkq2=nrm((1, 2 * m2)),
            wv=nrm((inc_depth, 2 * m1)), bv=nrm((1, 2 * m1)),
            wout=nrm((2 * m1, inc_depth)), bout=nrm((1, inc_depth)),
            bnl_scale=bnls, bnl_shift=bnlb))


# ---------------------------------------------------------------------------
# Pure-JAX f32 reference (original channel_shuffle formulation)
# ---------------------------------------------------------------------------
def _channel_shuffle(x, groups):
    B, N, c = x.shape
    x = x.reshape(B, N, groups, c // groups)
    x = jnp.swapaxes(x, 2, 3)
    return x.reshape(B, N, c)


def scc_reference(d_flat, r_flat, sp):
    fus = jnp.concatenate([d_flat, r_flat], axis=-1)
    B, N, C = fus.shape
    Cd = sp['wconv1'].shape[1]
    m1, m2 = Cd // 4, r_flat.shape[-1] // 4
    y_avg = fus.mean(axis=1)
    y_s = jnp.maximum(y_avg @ sp['ws1'], 0.0) @ sp['ws2']
    y_c = jax.nn.sigmoid(jnp.maximum(y_avg @ sp['wc1'], 0.0) @ sp['wc2'])
    m = jax.nn.sigmoid((fus * y_s[:, None, :]).sum(-1, keepdims=True) / (C * C))
    att = m * fus * y_c[:, None, :]
    x = (att @ sp['wconv1']) * sp['bn_scale'] + sp['bn_shift']

    ca = sp['ca']
    x1 = d_flat * ca['bn1_scale'] + ca['bn1_shift']
    x2 = r_flat * ca['bn2_scale'] + ca['bn2_shift']
    kq1 = x1 @ ca['wkq1'] + ca['bkq1']
    kq2 = x2 @ ca['wkq2'] + ca['bkq2']
    kq = _channel_shuffle(jnp.concatenate([kq1, kq2], axis=-1), 2)
    k1, q1, k2, q2 = jnp.split(kq, 4, axis=-1)
    v = x @ ca['wv'] + ca['bv']
    v1, v2 = v[..., :m1], v[..., m1:2 * m1]

    def attend(q, k, vv):
        s = jnp.einsum('bnc,bmc->bnm', q, k) / jnp.sqrt(jnp.float32(m2))
        return jnp.einsum('bnm,bmc->bnc', jax.nn.softmax(s, -1), vv)

    o = jnp.concatenate([attend(q1, k1, v1), attend(q2, k2, v2)], axis=-1)
    out = (o @ ca['wout'] + ca['bout']) * ca['bnl_scale'] + ca['bnl_shift']
    return out + x


if __name__ == "__main__":
    key = jax.random.PRNGKey(0)
    B, inc_depth, inc_rgb, H, W = 2, 32, 32, 16, 16   # N = 256

    kp, kd, kr = jax.random.split(key, 3)
    params = init_params(kp, inc_depth, inc_rgb)
    depth_out = jax.random.normal(kd, (B, inc_depth, H, W), jnp.float32)
    rgb_out = jax.random.normal(kr, (B, inc_rgb, H, W), jnp.float32)

    # small tiles so the test exercises multiple proj tiles, multiple q-tiles
    # and the online softmax across multiple kv-tiles.
    fwd = jax.jit(functools.partial(scc_module_forward, tp=128, tq=128, tkv=128))
    merge = fwd(depth_out, rgb_out, params)
    jax.block_until_ready(merge)

    # Validate against the pure-JAX f32 reference of the original formulation.
    N = H * W
    d_flat = jnp.transpose(depth_out, (0, 2, 3, 1)).reshape(B, N, inc_depth)
    r_flat = jnp.transpose(rgb_out, (0, 2, 3, 1)).reshape(B, N, inc_rgb)
    ref_flat = scc_reference(d_flat, r_flat, params)
    ref = jnp.transpose(ref_flat.reshape(B, H, W, inc_depth), (0, 3, 1, 2))

    assert merge.shape == (B, inc_depth, H, W)
    max_err = float(jnp.max(jnp.abs(ref - merge)))
    assert max_err < 5e-2, f"mismatch vs reference: {max_err}"

    print("KERNEL_OK")
</pallas_src>

<mosaic_0001>
module attributes {stable_mosaic.version = 11 : i64} {
  func.func @_scc_proj_kernel(%arg0: i32, %arg1: i32, %arg2: memref<1x32x128xf32, #tpu.memory_space<vmem>>, %arg3: memref<1x32x128xf32, #tpu.memory_space<vmem>>, %arg4: memref<1x64x1xf32, #tpu.memory_space<vmem>>, %arg5: memref<1x64x1xf32, #tpu.memory_space<vmem>>, %arg6: memref<48x64xbf16, #tpu.memory_space<vmem>>, %arg7: memref<48x1xf32, #tpu.memory_space<vmem>>, %arg8: memref<32x64xbf16, #tpu.memory_space<vmem>>, %arg9: memref<32x1xf32, #tpu.memory_space<vmem>>, %arg10: memref<1x32x128xf32, #tpu.memory_space<vmem>>, %arg11: memref<1x2x128x8xbf16, #tpu.memory_space<vmem>>, %arg12: memref<1x2x8x128xbf16, #tpu.memory_space<vmem>>, %arg13: memref<1x2x8x128xbf16, #tpu.memory_space<vmem>>) attributes {dimension_semantics = [#tpu.dimension_semantics<parallel>, #tpu.dimension_semantics<parallel>], iteration_bounds = array<i64: 2, 2>, scalar_prefetch = 0 : i64, scratch_operands = 0 : i64, tpu.core_type = #tpu.core_type<tc>, window_params = [{transform_indices = @transform_0, window_bounds = array<i64: 1, 32, 128>}, {transform_indices = @transform_1, window_bounds = array<i64: 1, 32, 128>}, {transform_indices = @transform_2, window_bounds = array<i64: 1, 64, 1>}, {transform_indices = @transform_3, window_bounds = array<i64: 1, 64, 1>}, {pipeline_mode = #tpu.pipeline_mode<synchronous>, transform_indices = @transform_4, window_bounds = array<i64: 48, 64>}, {pipeline_mode = #tpu.pipeline_mode<synchronous>, transform_indices = @transform_5, window_bounds = array<i64: 48, 1>}, {pipeline_mode = #tpu.pipeline_mode<synchronous>, transform_indices = @transform_6, window_bounds = array<i64: 32, 64>}, {pipeline_mode = #tpu.pipeline_mode<synchronous>, transform_indices = @transform_7, window_bounds = array<i64: 32, 1>}, {transform_indices = @transform_8, window_bounds = array<i64: 1, 32, 128>}, {transform_indices = @transform_9, window_bounds = array<i64: 1, 2, 128, 8>}, {transform_indices = @transform_10, window_bounds = array<i64: 1, 2, 8, 128>}, {transform_indices = @transform_11, window_bounds = array<i64: 1, 2, 8, 128>}]} {
    %c0 = arith.constant 0 : index
    %c0_0 = arith.constant 0 : index
    %c0_1 = arith.constant 0 : index
    %0 = vector.load %arg2[%c0, %c0_0, %c0_1] : memref<1x32x128xf32, #tpu.memory_space<vmem>>, vector<1x32x128xf32>
    %1 = vector.shape_cast %0 : vector<1x32x128xf32> to vector<32x128xf32>
    %c0_2 = arith.constant 0 : index
    %c0_3 = arith.constant 0 : index
    %c0_4 = arith.constant 0 : index
    %2 = vector.load %arg3[%c0_2, %c0_3, %c0_4] : memref<1x32x128xf32, #tpu.memory_space<vmem>>, vector<1x32x128xf32>
    %3 = vector.shape_cast %2 : vector<1x32x128xf32> to vector<32x128xf32>
    %4 = tpu.concatenate %1, %3 in 0 : vector<32x128xf32>, vector<32x128xf32> -> vector<64x128xf32>
    %c0_5 = arith.constant 0 : index
    %c0_6 = arith.constant 0 : index
    %c0_7 = arith.constant 0 : index
    %5 = vector.load %arg4[%c0_5, %c0_6, %c0_7] : memref<1x64x1xf32, #tpu.memory_space<vmem>>, vector<1x64x1xf32>
    %6 = vector.shape_cast %5 : vector<1x64x1xf32> to vector<64x1xf32>
    %7 = vector.broadcast %6 : vector<64x1xf32> to vector<64x128xf32>
    %8 = arith.mulf %4, %7 : vector<64x128xf32>
    %cst = arith.constant dense<0.000000e+00> : vector<128xf32>
    %9 = vector.multi_reduction <add>, %8, %cst [0] : vector<64x128xf32> to vector<128xf32>
    %10 = vector.shape_cast %9 : vector<128xf32> to vector<1x128xf32>
    %cst_8 = arith.constant 2.44140625E-4 : f32
    %11 = vector.broadcast %cst_8 : f32 to vector<1x128xf32>
    %12 = arith.mulf %10, %11 : vector<1x128xf32>
    %13 = arith.negf %12 : vector<1x128xf32>
    %14 = math.exp %13 : vector<1x128xf32>
    %cst_9 = arith.constant 1.000000e+00 : f32
    %15 = vector.broadcast %cst_9 : f32 to vector<1x128xf32>
    %16 = arith.addf %15, %14 : vector<1x128xf32>
    %17 = arith.divf %15, %16 : vector<1x128xf32>
    %c0_10 = arith.constant 0 : index
    %c0_11 = arith.constant 0 : index
    %c0_12 = arith.constant 0 : index
    %18 = vector.load %arg5[%c0_10, %c0_11, %c0_12] : memref<1x64x1xf32, #tpu.memory_space<vmem>>, vector<1x64x1xf32>
    %19 = vector.shape_cast %18 : vector<1x64x1xf32> to vector<64x1xf32>
    %20 = vector.broadcast %19 : vector<64x1xf32> to vector<64x128xf32>
    %21 = arith.mulf %4, %20 : vector<64x128xf32>
    %22 = vector.broadcast %17 : vector<1x128xf32> to vector<64x128xf32>
    %23 = arith.mulf %21, %22 : vector<64x128xf32>
    %24 = arith.truncf %23 : vector<64x128xf32> to vector<64x128xbf16>
    %25 = arith.truncf %4 : vector<64x128xf32> to vector<64x128xbf16>
    %c0_13 = arith.constant 0 : index
    %c0_14 = arith.constant 0 : index
    %26 = vector.load %arg6[%c0_13, %c0_14] : memref<48x64xbf16, #tpu.memory_space<vmem>>, vector<48x64xbf16>
    %cst_15 = arith.constant dense<0.000000e+00> : vector<48x128xf32>
    %27 = tpu.matmul %26, %24, %cst_15 {dimension_numbers = #tpu.dot_dimension_numbers<[1], [0], [0], [1], [0, 0, 1, 1], [], []>} : vector<48x64xbf16>, vector<64x128xbf16>, vector<48x128xf32> -> vector<48x128xf32>
    %c0_16 = arith.constant 0 : index
    %c0_17 = arith.constant 0 : index
    %28 = vector.load %arg7[%c0_16, %c0_17] : memref<48x1xf32, #tpu.memory_space<vmem>>, vector<48x1xf32>
    %29 = vector.broadcast %28 : vector<48x1xf32> to vector<48x128xf32>
    %30 = arith.addf %27, %29 : vector<48x128xf32>
    %c0_18 = arith.constant 0 : index
    %c0_19 = arith.constant 0 : index
    %31 = vector.load %arg8[%c0_18, %c0_19] : memref<32x64xbf16, #tpu.memory_space<vmem>>, vector<32x64xbf16>
    %cst_20 = arith.constant dense<0.000000e+00> : vector<32x128xf32>
    %32 = tpu.matmul %31, %25, %cst_20 {dimension_numbers = #tpu.dot_dimension_numbers<[1], [0], [0], [1], [0, 0, 1, 1], [], []>} : vector<32x64xbf16>, vector<64x128xbf16>, vector<32x128xf32> -> vector<32x128xf32>
    %c0_21 = arith.constant 0 : index
    %c0_22 = arith.constant 0 : index
    %33 = vector.load %arg9[%c0_21, %c0_22] : memref<32x1xf32, #tpu.memory_space<vmem>>, vector<32x1xf32>
    %34 = vector.broadcast %33 : vector<32x1xf32> to vector<32x128xf32>
    %35 = arith.addf %32, %34 : vector<32x128xf32>
    %36 = vector.extract_strided_slice %30 {offsets = [0, 0], sizes = [32, 128], strides = [1, 1]} : vector<48x128xf32> to vector<32x128xf32>
    %c0_23 = arith.constant 0 : index
    %c0_24 = arith.constant 0 : index
    %c0_25 = arith.constant 0 : index
    %37 = vector.load %arg10[%c0_23, %c0_24, %c0_25] : memref<1x32x128xf32, #tpu.memory_space<vmem>>, vector<1x32x128xf32>
    %38 = vector.shape_cast %37 : vector<1x32x128xf32> to vector<32x128xf32>
    %39 = vector.shape_cast %36 : vector<32x128xf32> to vector<1x32x128xf32>
    tpu.vector_store %arg10[%c0_23, %c0_24, %c0_25], %39 {strides = array<i32>} : memref<1x32x128xf32, #tpu.memory_space<vmem>>, vector<1x32x128xf32>,
    %40 = vector.extract_strided_slice %30 {offsets = [32, 0], sizes = [8, 128], strides = [1, 1]} : vector<48x128xf32> to vector<8x128xf32>
    %41 = arith.truncf %40 : vector<8x128xf32> to vector<8x128xbf16>
    %c0_26 = arith.constant 0 : index
    %c0_27 = arith.constant 0 : index
    %c0_28 = arith.constant 0 : index
    %c0_29 = arith.constant 0 : index
    %42 = vector.load %arg13[%c0_26, %c0_27, %c0_28, %c0_29] : memref<1x2x8x128xbf16, #tpu.memory_space<vmem>>, vector<1x1x8x128xbf16>
    %43 = vector.shape_cast %42 : vector<1x1x8x128xbf16> to vector<8x128xbf16>
    %44 = vector.shape_cast %41 : vector<8x128xbf16> to vector<1x1x8x128xbf16>
    tpu.vector_store %arg13[%c0_26, %c0_27, %c0_28, %c0_29], %44 {strides = array<i32>} : memref<1x2x8x128xbf16, #tpu.memory_space<vmem>>, vector<1x1x8x128xbf16>,
    %45 = vector.extract_strided_slice %30 {offsets = [40, 0], sizes = [8, 128], strides = [1, 1]} : vector<48x128xf32> to vector<8x128xf32>
    %46 = arith.truncf %45 : vector<8x128xf32> to vector<8x128xbf16>
    %c0_30 = arith.constant 0 : index
    %c1 = arith.constant 1 : index
    %c0_31 = arith.constant 0 : index
    %c0_32 = arith.constant 0 : index
    %47 = vector.load %arg13[%c0_30, %c1, %c0_31, %c0_32] : memref<1x2x8x128xbf16, #tpu.memory_space<vmem>>, vector<1x1x8x128xbf16>
    %48 = vector.shape_cast %47 : vector<1x1x8x128xbf16> to vector<8x128xbf16>
    %49 = vector.shape_cast %46 : vector<8x128xbf16> to vector<1x1x8x128xbf16>
    tpu.vector_store %arg13[%c0_30, %c1, %c0_31, %c0_32], %49 {strides = array<i32>} : memref<1x2x8x128xbf16, #tpu.memory_space<vmem>>, vector<1x1x8x128xbf16>,
    %50 = vector.extract_strided_slice %35 {offsets = [0, 0], sizes = [8, 128], strides = [1, 1]} : vector<32x128xf32> to vector<8x128xf32>
    %51 = tpu.transpose %50, [1, 0] : vector<8x128xf32> -> vector<128x8xf32>
    %52 = arith.truncf %51 : vector<128x8xf32> to vector<128x8xbf16>
    %c0_33 = arith.constant 0 : index
    %c0_34 = arith.constant 0 : index
    %c0_35 = arith.constant 0 : index
    %c0_36 = arith.constant 0 : index
    %53 = vector.load %arg11[%c0_33, %c0_34, %c0_35, %c0_36] : memref<1x2x128x8xbf16, #tpu.memory_space<vmem>>, vector<1x1x128x8xbf16>
    %54 = vector.shape_cast %53 : vector<1x1x128x8xbf16> to vector<128x8xbf16>
    %55 = vector.shape_cast %52 : vector<128x8xbf16> to vector<1x1x128x8xbf16>
    tpu.vector_store %arg11[%c0_33, %c0_34, %c0_35, %c0_36], %55 {strides = array<i32>} : memref<1x2x128x8xbf16, #tpu.memory_space<vmem>>, vector<1x1x128x8xbf16>,
    %56 = vector.extract_strided_slice %35 {offsets = [8, 0], sizes = [8, 128], strides = [1, 1]} : vector<32x128xf32> to vector<8x128xf32>
    %57 = tpu.transpose %56, [1, 0] : vector<8x128xf32> -> vector<128x8xf32>
    %58 = arith.truncf %57 : vector<128x8xf32> to vector<128x8xbf16>
    %c0_37 = arith.constant 0 : index
    %c1_38 = arith.constant 1 : index
    %c0_39 = arith.constant 0 : index
    %c0_40 = arith.constant 0 : index
    %59 = vector.load %arg11[%c0_37, %c1_38, %c0_39, %c0_40] : memref<1x2x128x8xbf16, #tpu.memory_space<vmem>>, vector<1x1x128x8xbf16>
    %60 = vector.shape_cast %59 : vector<1x1x128x8xbf16> to vector<128x8xbf16>
    %61 = vector.shape_cast %58 : vector<128x8xbf16> to vector<1x1x128x8xbf16>
    tpu.vector_store %arg11[%c0_37, %c1_38, %c0_39, %c0_40], %61 {strides = array<i32>} : memref<1x2x128x8xbf16, #tpu.memory_space<vmem>>, vector<1x1x128x8xbf16>,
    %62 = vector.extract_strided_slice %35 {offsets = [16, 0], sizes = [8, 128], strides = [1, 1]} : vector<32x128xf32> to vector<8x128xf32>
    %63 = arith.truncf %62 : vector<8x128xf32> to vector<8x128xbf16>
    %c0_41 = arith.constant 0 : index
    %c0_42 = arith.constant 0 : index
    %c0_43 = arith.constant 0 : index
    %c0_44 = arith.constant 0 : index
    %64 = vector.load %arg12[%c0_41, %c0_42, %c0_43, %c0_44] : memref<1x2x8x128xbf16, #tpu.memory_space<vmem>>, vector<1x1x8x128xbf16>
    %65 = vector.shape_cast %64 : vector<1x1x8x128xbf16> to vector<8x128xbf16>
    %66 = vector.shape_cast %63 : vector<8x128xbf16> to vector<1x1x8x128xbf16>
    tpu.vector_store %arg12[%c0_41, %c0_42, %c0_43, %c0_44], %66 {strides = array<i32>} : memref<1x2x8x128xbf16, #tpu.memory_space<vmem>>, vector<1x1x8x128xbf16>,
    %67 = vector.extract_strided_slice %35 {offsets = [24, 0], sizes = [8, 128], strides = [1, 1]} : vector<32x128xf32> to vector<8x128xf32>
    %68 = arith.truncf %67 : vector<8x128xf32> to vector<8x128xbf16>
    %c0_45 = arith.constant 0 : index
    %c1_46 = arith.constant 1 : index
    %c0_47 = arith.constant 0 : index
    %c0_48 = arith.constant 0 : index
    %69 = vector.load %arg12[%c0_45, %c1_46, %c0_47, %c0_48] : memref<1x2x8x128xbf16, #tpu.memory_space<vmem>>, vector<1x1x8x128xbf16>
    %70 = vector.shape_cast %69 : vector<1x1x8x128xbf16> to vector<8x128xbf16>
    %71 = vector.shape_cast %68 : vector<8x128xbf16> to vector<1x1x8x128xbf16>
    tpu.vector_store %arg12[%c0_45, %c1_46, %c0_47, %c0_48], %71 {strides = array<i32>} : memref<1x2x8x128xbf16, #tpu.memory_space<vmem>>, vector<1x1x8x128xbf16>,
    return
  }
  func.func @transform_0(%arg0: i32, %arg1: i32) -> (i32, i32, i32) {
    %c0_i32 = arith.constant 0 : i32
    %c0_i32_0 = arith.constant 0 : i32
    return %arg0, %c0_i32, %arg1 : i32, i32, i32
  }
  func.func @transform_1(%arg0: i32, %arg1: i32) -> (i32, i32, i32) {
    %c0_i32 = arith.constant 0 : i32
    %c0_i32_0 = arith.constant 0 : i32
    return %arg0, %c0_i32, %arg1 : i32, i32, i32
  }
  func.func @transform_2(%arg0: i32, %arg1: i32) -> (i32, i32, i32) {
    %c0_i32 = arith.constant 0 : i32
    %c0_i32_0 = arith.constant 0 : i32
    %c0_i32_1 = arith.constant 0 : i32
    return %arg0, %c0_i32, %c0_i32_0 : i32, i32, i32
  }
  func.func @transform_3(%arg0: i32, %arg1: i32) -> (i32, i32, i32) {
    %c0_i32 = arith.constant 0 : i32
    %c0_i32_0 = arith.constant 0 : i32
    %c0_i32_1 = arith.constant 0 : i32
    return %arg0, %c0_i32, %c0_i32_0 : i32, i32, i32
  }
  func.func @transform_4(%arg0: i32, %arg1: i32) -> (i32, i32) {
    %c0_i32 = arith.constant 0 : i32
    %c0_i32_0 = arith.constant 0 : i32
    %c0_i32_1 = arith.constant 0 : i32
    return %c0_i32, %c0_i32_0 : i32, i32
  }
  func.func @transform_5(%arg0: i32, %arg1: i32) -> (i32, i32) {
    %c0_i32 = arith.constant 0 : i32
    %c0_i32_0 = arith.constant 0 : i32
    %c0_i32_1 = arith.constant 0 : i32
    return %c0_i32, %c0_i32_0 : i32, i32
  }
  func.func @transform_6(%arg0: i32, %arg1: i32) -> (i32, i32) {
    %c0_i32 = arith.constant 0 : i32
    %c0_i32_0 = arith.constant 0 : i32
    %c0_i32_1 = arith.constant 0 : i32
    return %c0_i32, %c0_i32_0 : i32, i32
  }
  func.func @transform_7(%arg0: i32, %arg1: i32) -> (i32, i32) {
    %c0_i32 = arith.constant 0 : i32
    %c0_i32_0 = arith.constant 0 : i32
    %c0_i32_1 = arith.constant 0 : i32
    return %c0_i32, %c0_i32_0 : i32, i32
  }
  func.func @transform_8(%arg0: i32, %arg1: i32) -> (i32, i32, i32) {
    %c0_i32 = arith.constant 0 : i32
    %c0_i32_0 = arith.constant 0 : i32
    return %arg0, %c0_i32, %arg1 : i32, i32, i32
  }
  func.func @transform_9(%arg0: i32, %arg1: i32) -> (i32, i32, i32, i32) {
    %c0_i32 = arith.constant 0 : i32
    %c0_i32_0 = arith.constant 0 : i32
    %c0_i32_1 = arith.constant 0 : i32
    return %arg0, %c0_i32, %arg1, %c0_i32_0 : i32, i32, i32, i32
  }
  func.func @transform_10(%arg0: i32, %arg1: i32) -> (i32, i32, i32, i32) {
    %c0_i32 = arith.constant 0 : i32
    %c0_i32_0 = arith.constant 0 : i32
    %c0_i32_1 = arith.constant 0 : i32
    return %arg0, %c0_i32, %c0_i32_0, %arg1 : i32, i32, i32, i32
  }
  func.func @transform_11(%arg0: i32, %arg1: i32) -> (i32, i32, i32, i32) {
    %c0_i32 = arith.constant 0 : i32
    %c0_i32_0 = arith.constant 0 : i32
    %c0_i32_1 = arith.constant 0 : i32
    return %arg0, %c0_i32, %c0_i32_0, %arg1 : i32, i32, i32, i32
  }
}

module attributes {stable_mosaic.version = 11 : i64} {
  func.func @_scc_attn_kernel(%arg0: i32, %arg1: i32, %arg2: i32, %arg3: memref<1x2x128x8xbf16, #tpu.memory_space<vmem>>, %arg4: memref<1x2x8x128xbf16, #tpu.memory_space<vmem>>, %arg5: memref<1x2x8x128xbf16, #tpu.memory_space<vmem>>, %arg6: memref<1x32x128xf32, #tpu.memory_space<vmem>>, %arg7: memref<8x32xbf16, #tpu.memory_space<vmem>>, %arg8: memref<8x32xbf16, #tpu.memory_space<vmem>>, %arg9: memref<1x32xf32, #tpu.memory_space<vmem>>, %arg10: memref<1x32x128xf32, #tpu.memory_space<vmem>>, %arg11: memref<128x1xf32, #tpu.memory_space<vmem>>, %arg12: memref<128x1xf32, #tpu.memory_space<vmem>>, %arg13: memref<128x1xf32, #tpu.memory_space<vmem>>, %arg14: memref<128x1xf32, #tpu.memory_space<vmem>>, %arg15: memref<128x8xf32, #tpu.memory_space<vmem>>, %arg16: memref<128x8xf32, #tpu.memory_space<vmem>>) attributes {dimension_semantics = [#tpu.dimension_semantics<parallel>, #tpu.dimension_semantics<parallel>, #tpu.dimension_semantics<arbitrary>], iteration_bounds = array<i64: 2, 2, 2>, scalar_prefetch = 0 : i64, scratch_operands = 6 : i64, tpu.core_type = #tpu.core_type<tc>, window_params = [{transform_indices = @transform_0, window_bounds = array<i64: 1, 2, 128, 8>}, {transform_indices = @transform_1, window_bounds = array<i64: 1, 2, 8, 128>}, {transform_indices = @transform_2, window_bounds = array<i64: 1, 2, 8, 128>}, {transform_indices = @transform_3, window_bounds = array<i64: 1, 32, 128>}, {pipeline_mode = #tpu.pipeline_mode<synchronous>, transform_indices = @transform_4, window_bounds = array<i64: 8, 32>}, {pipeline_mode = #tpu.pipeline_mode<synchronous>, transform_indices = @transform_5, window_bounds = array<i64: 8, 32>}, {pipeline_mode = #tpu.pipeline_mode<synchronous>, transform_indices = @transform_6, window_bounds = array<i64: 1, 32>}, {transform_indices = @transform_7, window_bounds = array<i64: 1, 32, 128>}]} {
    %c0_i32 = arith.constant 0 : i32
    %0 = arith.cmpi eq, %arg2, %c0_i32 : i32
    %1 = arith.extui %0 : i1 to i32
    %c0_i32_0 = arith.constant 0 : i32
    %2 = arith.cmpi ne, %1, %c0_i32_0 : i32
    scf.if %2 {
      %cst_55 = arith.constant 0xFF800000 : f32
      %66 = vector.broadcast %cst_55 : f32 to vector<128x1xf32>
      %c0_56 = arith.constant 0 : index
      %c0_57 = arith.constant 0 : index
      %67 = vector.load %arg11[%c0_56, %c0_57] : memref<128x1xf32, #tpu.memory_space<vmem>>, vector<128x1xf32>
      tpu.vector_store %arg11[%c0_56, %c0_57], %66 {strides = array<i32>} : memref<128x1xf32, #tpu.memory_space<vmem>>, vector<128x1xf32>,
      %c0_58 = arith.constant 0 : index
      %c0_59 = arith.constant 0 : index
      %68 = vector.load %arg13[%c0_58, %c0_59] : memref<128x1xf32, #tpu.memory_space<vmem>>, vector<128x1xf32>
      tpu.vector_store %arg13[%c0_58, %c0_59], %66 {strides = array<i32>} : memref<128x1xf32, #tpu.memory_space<vmem>>, vector<128x1xf32>,
      %cst_60 = arith.constant 0.000000e+00 : f32
      %69 = vector.broadcast %cst_60 : f32 to vector<128x1xf32>
      %c0_61 = arith.constant 0 : index
      %c0_62 = arith.constant 0 : index
      %70 = vector.load %arg12[%c0_61, %c0_62] : memref<128x1xf32, #tpu.memory_space<vmem>>, vector<128x1xf32>
      tpu.vector_store %arg12[%c0_61, %c0_62], %69 {strides = array<i32>} : memref<128x1xf32, #tpu.memory_space<vmem>>, vector<128x1xf32>,
      %cst_63 = arith.constant 0.000000e+00 : f32
      %71 = vector.broadcast %cst_63 : f32 to vector<128x1xf32>
      %c0_64 = arith.constant 0 : index
      %c0_65 = arith.constant 0 : index
      %72 = vector.load %arg14[%c0_64, %c0_65] : memref<128x1xf32, #tpu.memory_space<vmem>>, vector<128x1xf32>
      tpu.vector_store %arg14[%c0_64, %c0_65], %71 {strides = array<i32>} : memref<128x1xf32, #tpu.memory_space<vmem>>, vector<128x1xf32>,
      %cst_66 = arith.constant 0.000000e+00 : f32
      %73 = vector.broadcast %cst_66 : f32 to vector<128x8xf32>
      %c0_67 = arith.constant 0 : index
      %c0_68 = arith.constant 0 : index
      %74 = vector.load %arg15[%c0_67, %c0_68] : memref<128x8xf32, #tpu.memory_space<vmem>>, vector<128x8xf32>
      tpu.vector_store %arg15[%c0_67, %c0_68], %73 {strides = array<i32>} : memref<128x8xf32, #tpu.memory_space<vmem>>, vector<128x8xf32>,
      %cst_69 = arith.constant 0.000000e+00 : f32
      %75 = vector.broadcast %cst_69 : f32 to vector<128x8xf32>
      %c0_70 = arith.constant 0 : index
      %c0_71 = arith.constant 0 : index
      %76 = vector.load %arg16[%c0_70, %c0_71] : memref<128x8xf32, #tpu.memory_space<vmem>>, vector<128x8xf32>
      tpu.vector_store %arg16[%c0_70, %c0_71], %75 {strides = array<i32>} : memref<128x8xf32, #tpu.memory_space<vmem>>, vector<128x8xf32>,
    } else {
    }
    %c0 = arith.constant 0 : index
    %c0_1 = arith.constant 0 : index
    %c0_2 = arith.constant 0 : index
    %c0_3 = arith.constant 0 : index
    %3 = vector.load %arg3[%c0, %c0_1, %c0_2, %c0_3] : memref<1x2x128x8xbf16, #tpu.memory_space<vmem>>, vector<1x1x128x8xbf16>
    %4 = vector.shape_cast %3 : vector<1x1x128x8xbf16> to vector<128x8xbf16>
    %c0_4 = arith.constant 0 : index
    %c0_5 = arith.constant 0 : index
    %c0_6 = arith.constant 0 : index
    %c0_7 = arith.constant 0 : index
    %5 = vector.load %arg4[%c0_4, %c0_5, %c0_6, %c0_7] : memref<1x2x8x128xbf16, #tpu.memory_space<vmem>>, vector<1x1x8x128xbf16>
    %6 = vector.shape_cast %5 : vector<1x1x8x128xbf16> to vector<8x128xbf16>
    %c0_8 = arith.constant 0 : index
    %c0_9 = arith.constant 0 : index
    %c0_10 = arith.constant 0 : index
    %c0_11 = arith.constant 0 : index
    %7 = vector.load %arg5[%c0_8, %c0_9, %c0_10, %c0_11] : memref<1x2x8x128xbf16, #tpu.memory_space<vmem>>, vector<1x1x8x128xbf16>
    %8 = vector.shape_cast %7 : vector<1x1x8x128xbf16> to vector<8x128xbf16>
    %cst = arith.constant dense<0.000000e+00> : vector<128x128xf32>
    %9 = tpu.matmul %4, %6, %cst {dimension_numbers = #tpu.dot_dimension_numbers<[1], [0], [0], [1], [0, 0, 1, 1], [], []>} : vector<128x8xbf16>, vector<8x128xbf16>, vector<128x128xf32> -> vector<128x128xf32>
    %c0_12 = arith.constant 0 : index
    %c0_13 = arith.constant 0 : index
    %10 = vector.load %arg11[%c0_12, %c0_13] : memref<128x1xf32, #tpu.memory_space<vmem>>, vector<128x1xf32>
    %cst_14 = arith.constant dense<0xFF800000> : vector<128xf32>
    %11 = vector.multi_reduction <maximumf>, %9, %cst_14 [1] : vector<128x128xf32> to vector<128xf32>
    %12 = vector.shape_cast %11 : vector<128xf32> to vector<128x1xf32>
    %13 = arith.maximumf %10, %12 : vector<128x1xf32>
    %14 = arith.subf %10, %13 : vector<128x1xf32>
    %15 = math.exp %14 : vector<128x1xf32>
    %16 = vector.broadcast %13 : vector<128x1xf32> to vector<128x128xf32>
    %17 = arith.subf %9, %16 : vector<128x128xf32>
    %18 = math.exp %17 : vector<128x128xf32>
    %c0_15 = arith.constant 0 : index
    %c0_16 = arith.constant 0 : index
    %19 = vector.load %arg12[%c0_15, %c0_16] : memref<128x1xf32, #tpu.memory_space<vmem>>, vector<128x1xf32>
    %20 = arith.mulf %15, %19 : vector<128x1xf32>
    %cst_17 = arith.constant dense<0.000000e+00> : vector<128xf32>
    %21 = vector.multi_reduction <add>, %18, %cst_17 [1] : vector<128x128xf32> to vector<128xf32>
    %22 = vector.shape_cast %21 : vector<128xf32> to vector<128x1xf32>
    %23 = arith.addf %20, %22 : vector<128x1xf32>
    %c0_18 = arith.constant 0 : index
    %c0_19 = arith.constant 0 : index
    %24 = vector.load %arg12[%c0_18, %c0_19] : memref<128x1xf32, #tpu.memory_space<vmem>>, vector<128x1xf32>
    tpu.vector_store %arg12[%c0_18, %c0_19], %23 {strides = array<i32>} : memref<128x1xf32, #tpu.memory_space<vmem>>, vector<128x1xf32>,
    %c0_20 = arith.constant 0 : index
    %c0_21 = arith.constant 0 : index
    %25 = vector.load %arg15[%c0_20, %c0_21] : memref<128x8xf32, #tpu.memory_space<vmem>>, vector<128x8xf32>
    %26 = vector.broadcast %15 : vector<128x1xf32> to vector<128x8xf32>
    %27 = arith.mulf %26, %25 : vector<128x8xf32>
    %28 = arith.truncf %18 : vector<128x128xf32> to vector<128x128xbf16>
    %cst_22 = arith.constant dense<0.000000e+00> : vector<128x8xf32>
    %29 = tpu.matmul %28, %8, %cst_22 {dimension_numbers = #tpu.dot_dimension_numbers<[1], [1], [0], [0], [0, 0, 1, 0], [], []>} : vector<128x128xbf16>, vector<8x128xbf16>, vector<128x8xf32> -> vector<128x8xf32>
    %30 = arith.addf %27, %29 : vector<128x8xf32>
    %c0_23 = arith.constant 0 : index
    %c0_24 = arith.constant 0 : index
    %31 = vector.load %arg15[%c0_23, %c0_24] : memref<128x8xf32, #tpu.memory_space<vmem>>, vector<128x8xf32>
    tpu.vector_store %arg15[%c0_23, %c0_24], %30 {strides = array<i32>} : memref<128x8xf32, #tpu.memory_space<vmem>>, vector<128x8xf32>,
    %c0_25 = arith.constant 0 : index
    %c0_26 = arith.constant 0 : index
    %32 = vector.load %arg11[%c0_25, %c0_26] : memref<128x1xf32, #tpu.memory_space<vmem>>, vector<128x1xf32>
    tpu.vector_store %arg11[%c0_25, %c0_26], %13 {strides = array<i32>} : memref<128x1xf32, #tpu.memory_space<vmem>>, vector<128x1xf32>,
    %c0_27 = arith.constant 0 : index
    %c1 = arith.constant 1 : index
    %c0_28 = arith.constant 0 : index
    %c0_29 = arith.constant 0 : index
    %33 = vector.load %arg3[%c0_27, %c1, %c0_28, %c0_29] : memref<1x2x128x8xbf16, #tpu.memory_space<vmem>>, vector<1x1x128x8xbf16>
    %34 = vector.shape_cast %33 : vector<1x1x128x8xbf16> to vector<128x8xbf16>
    %c0_30 = arith.constant 0 : index
    %c1_31 = arith.constant 1 : index
    %c0_32 = arith.constant 0 : index
    %c0_33 = arith.constant 0 : index
    %35 = vector.load %arg4[%c0_30, %c1_31, %c0_32, %c0_33] : memref<1x2x8x128xbf16, #tpu.memory_space<vmem>>, vector<1x1x8x128xbf16>
    %36 = vector.shape_cast %35 : vector<1x1x8x128xbf16> to vector<8x128xbf16>
    %c0_34 = arith.constant 0 : index
    %c1_35 = arith.constant 1 : index
    %c0_36 = arith.constant 0 : index
    %c0_37 = arith.constant 0 : index
    %37 = vector.load %arg5[%c0_34, %c1_35, %c0_36, %c0_37] : memref<1x2x8x128xbf16, #tpu.memory_space<vmem>>, vector<1x1x8x128xbf16>
    %38 = vector.shape_cast %37 : vector<1x1x8x128xbf16> to vector<8x128xbf16>
    %cst_38 = arith.constant dense<0.000000e+00> : vector<128x128xf32>
    %39 = tpu.matmul %34, %36, %cst_38 {dimension_numbers = #tpu.dot_dimension_numbers<[1], [0], [0], [1], [0, 0, 1, 1], [], []>} : vector<128x8xbf16>, vector<8x128xbf16>, vector<128x128xf32> -> vector<128x128xf32>
    %c0_39 = arith.constant 0 : index
    %c0_40 = arith.constant 0 : index
    %40 = vector.load %arg13[%c0_39, %c0_40] : memref<128x1xf32, #tpu.memory_space<vmem>>, vector<128x1xf32>
    %cst_41 = arith.constant dense<0xFF800000> : vector<128xf32>
    %41 = vector.multi_reduction <maximumf>, %39, %cst_41 [1] : vector<128x128xf32> to vector<128xf32>
    %42 = vector.shape_cast %41 : vector<128xf32> to vector<128x1xf32>
    %43 = arith.maximumf %40, %42 : vector<128x1xf32>
    %44 = arith.subf %40, %43 : vector<128x1xf32>
    %45 = math.exp %44 : vector<128x1xf32>
    %46 = vector.broadcast %43 : vector<128x1xf32> to vector<128x128xf32>
    %47 = arith.subf %39, %46 : vector<128x128xf32>
    %48 = math.exp %47 : vector<128x128xf32>
    %c0_42 = arith.constant 0 : index
    %c0_43 = arith.constant 0 : index
    %49 = vector.load %arg14[%c0_42, %c0_43] : memref<128x1xf32, #tpu.memory_space<vmem>>, vector<128x1xf32>
    %50 = arith.mulf %45, %49 : vector<128x1xf32>
    %cst_44 = arith.constant dense<0.000000e+00> : vector<128xf32>
    %51 = vector.multi_reduction <add>, %48, %cst_44 [1] : vector<128x128xf32> to vector<128xf32>
    %52 = vector.shape_cast %51 : vector<128xf32> to vector<128x1xf32>
    %53 = arith.addf %50, %52 : vector<128x1xf32>
    %c0_45 = arith.constant 0 : index
    %c0_46 = arith.constant 0 : index
    %54 = vector.load %arg14[%c0_45, %c0_46] : memref<128x1xf32, #tpu.memory_space<vmem>>, vector<128x1xf32>
    tpu.vector_store %arg14[%c0_45, %c0_46], %53 {strides = array<i32>} : memref<128x1xf32, #tpu.memory_space<vmem>>, vector<128x1xf32>,
    %c0_47 = arith.constant 0 : index
    %c0_48 = arith.constant 0 : index
    %55 = vector.load %arg16[%c0_47, %c0_48] : memref<128x8xf32, #tpu.memory_space<vmem>>, vector<128x8xf32>
    %56 = vector.broadcast %45 : vector<128x1xf32> to vector<128x8xf32>
    %57 = arith.mulf %56, %55 : vector<128x8xf32>
    %58 = arith.truncf %48 : vector<128x128xf32> to vector<128x128xbf16>
    %cst_49 = arith.constant dense<0.000000e+00> : vector<128x8xf32>
    %59 = tpu.matmul %58, %38, %cst_49 {dimension_numbers = #tpu.dot_dimension_numbers<[1], [1], [0], [0], [0, 0, 1, 0], [], []>} : vector<128x128xbf16>, vector<8x128xbf16>, vector<128x8xf32> -> vector<128x8xf32>
    %60 = arith.addf %57, %59 : vector<128x8xf32>
    %c0_50 = arith.constant 0 : index
    %c0_51 = arith.constant 0 : index
    %61 = vector.load %arg16[%c0_50, %c0_51] : memref<128x8xf32, #tpu.memory_space<vmem>>, vector<128x8xf32>
    tpu.vector_store %arg16[%c0_50, %c0_51], %60 {strides = array<i32>} : memref<128x8xf32, #tpu.memory_space<vmem>>, vector<128x8xf32>,
    %c0_52 = arith.constant 0 : index
    %c0_53 = arith.constant 0 : index
    %62 = vector.load %arg13[%c0_52, %c0_53] : memref<128x1xf32, #tpu.memory_space<vmem>>, vector<128x1xf32>
    tpu.vector_store %arg13[%c0_52, %c0_53], %43 {strides = array<i32>} : memref<128x1xf32, #tpu.memory_space<vmem>>, vector<128x1xf32>,
    %c1_i32 = arith.constant 1 : i32
    %63 = arith.cmpi eq, %arg2, %c1_i32 : i32
    %64 = arith.extui %63 : i1 to i32
    %c0_i32_54 = arith.constant 0 : i32
    %65 = arith.cmpi ne, %64, %c0_i32_54 : i32
    scf.if %65 {
      %c0_55 = arith.constant 0 : index
      %c0_56 = arith.constant 0 : index
      %66 = vector.load %arg15[%c0_55, %c0_56] : memref<128x8xf32, #tpu.memory_space<vmem>>, vector<128x8xf32>
      %c0_57 = arith.constant 0 : index
      %c0_58 = arith.constant 0 : index
      %67 = vector.load %arg12[%c0_57, %c0_58] : memref<128x1xf32, #tpu.memory_space<vmem>>, vector<128x1xf32>
      %68 = vector.broadcast %67 : vector<128x1xf32> to vector<128x8xf32>
      %69 = arith.divf %66, %68 : vector<128x8xf32>
      %70 = arith.truncf %69 : vector<128x8xf32> to vector<128x8xbf16>
      %c0_59 = arith.constant 0 : index
      %c0_60 = arith.constant 0 : index
      %71 = vector.load %arg16[%c0_59, %c0_60] : memref<128x8xf32, #tpu.memory_space<vmem>>, vector<128x8xf32>
      %c0_61 = arith.constant 0 : index
      %c0_62 = arith.constant 0 : index
      %72 = vector.load %arg14[%c0_61, %c0_62] : memref<128x1xf32, #tpu.memory_space<vmem>>, vector<128x1xf32>
      %73 = vector.broadcast %72 : vector<128x1xf32> to vector<128x8xf32>
      %74 = arith.divf %71, %73 : vector<128x8xf32>
      %75 = arith.truncf %74 : vector<128x8xf32> to vector<128x8xbf16>
      %c0_63 = arith.constant 0 : index
      %c0_64 = arith.constant 0 : index
      %76 = vector.load %arg7[%c0_63, %c0_64] : memref<8x32xbf16, #tpu.memory_space<vmem>>, vector<8x32xbf16>
      %cst_65 = arith.constant dense<0.000000e+00> : vector<128x32xf32>
      %77 = tpu.matmul %70, %76, %cst_65 {dimension_numbers = #tpu.dot_dimension_numbers<[1], [0], [0], [1], [0, 0, 1, 1], [], []>} : vector<128x8xbf16>, vector<8x32xbf16>, vector<128x32xf32> -> vector<128x32xf32>
      %c0_66 = arith.constant 0 : index
      %c0_67 = arith.constant 0 : index
      %78 = vector.load %arg8[%c0_66, %c0_67] : memref<8x32xbf16, #tpu.memory_space<vmem>>, vector<8x32xbf16>
      %cst_68 = arith.constant dense<0.000000e+00> : vector<128x32xf32>
      %79 = tpu.matmul %75, %78, %cst_68 {dimension_numbers = #tpu.dot_dimension_numbers<[1], [0], [0], [1], [0, 0, 1, 1], [], []>} : vector<128x8xbf16>, vector<8x32xbf16>, vector<128x32xf32> -> vector<128x32xf32>
      %80 = arith.addf %77, %79 : vector<128x32xf32>
      %c0_69 = arith.constant 0 : index
      %c0_70 = arith.constant 0 : index
      %81 = vector.load %arg9[%c0_69, %c0_70] : memref<1x32xf32, #tpu.memory_space<vmem>>, vector<1x32xf32>
      %82 = vector.broadcast %81 : vector<1x32xf32> to vector<128x32xf32>
      %83 = arith.addf %80, %82 : vector<128x32xf32>
      %84 = tpu.transpose %83, [1, 0] : vector<128x32xf32> -> vector<32x128xf32>
      %c0_71 = arith.constant 0 : index
      %c0_72 = arith.constant 0 : index
      %c0_73 = arith.constant 0 : index
      %85 = vector.load %arg6[%c0_71, %c0_72, %c0_73] : memref<1x32x128xf32, #tpu.memory_space<vmem>>, vector<1x32x128xf32>
      %86 = vector.shape_cast %85 : vector<1x32x128xf32> to vector<32x128xf32>
      %87 = arith.addf %84, %86 : vector<32x128xf32>
      %c0_74 = arith.constant 0 : index
      %c0_75 = arith.constant 0 : index
      %c0_76 = arith.constant 0 : index
      %88 = vector.load %arg10[%c0_74, %c0_75, %c0_76] : memref<1x32x128xf32, #tpu.memory_space<vmem>>, vector<1x32x128xf32>
      %89 = vector.shape_cast %88 : vector<1x32x128xf32> to vector<32x128xf32>
      %90 = vector.shape_cast %87 : vector<32x128xf32> to vector<1x32x128xf32>
      tpu.vector_store %arg10[%c0_74, %c0_75, %c0_76], %90 {strides = array<i32>} : memref<1x32x128xf32, #tpu.memory_space<vmem>>, vector<1x32x128xf32>,
    } else {
    }
    return
  }
  func.func @transform_0(%arg0: i32, %arg1: i32, %arg2: i32) -> (i32, i32, i32, i32) {
    %c0_i32 = arith.constant 0 : i32
    %c0_i32_0 = arith.constant 0 : i32
    %c0_i32_1 = arith.constant 0 : i32
    return %arg0, %c0_i32, %arg1, %c0_i32_0 : i32, i32, i32, i32
  }
  func.func @transform_1(%arg0: i32, %arg1: i32, %arg2: i32) -> (i32, i32, i32, i32) {
    %c0_i32 = arith.constant 0 : i32
    %c0_i32_0 = arith.constant 0 : i32
    %c0_i32_1 = arith.constant 0 : i32
    return %arg0, %c0_i32, %c0_i32_0, %arg2 : i32, i32, i32, i32
  }
  func.func @transform_2(%arg0: i32, %arg1: i32, %arg2: i32) -> (i32, i32, i32, i32) {
    %c0_i32 = arith.constant 0 : i32
    %c0_i32_0 = arith.constant 0 : i32
    %c0_i32_1 = arith.constant 0 : i32
    return %arg0, %c0_i32, %c0_i32_0, %arg2 : i32, i32, i32, i32
  }
  func.func @transform_3(%arg0: i32, %arg1: i32, %arg2: i32) -> (i32, i32, i32) {
    %c0_i32 = arith.constant 0 : i32
    %c0_i32_0 = arith.constant 0 : i32
    return %arg0, %c0_i32, %arg1 : i32, i32, i32
  }
  func.func @transform_4(%arg0: i32, %arg1: i32, %arg2: i32) -> (i32, i32) {
    %c0_i32 = arith.constant 0 : i32
    %c0_i32_0 = arith.constant 0 : i32
    %c0_i32_1 = arith.constant 0 : i32
    return %c0_i32, %c0_i32_0 : i32, i32
  }
  func.func @transform_5(%arg0: i32, %arg1: i32, %arg2: i32) -> (i32, i32) {
    %c0_i32 = arith.constant 0 : i32
    %c0_i32_0 = arith.constant 0 : i32
    %c0_i32_1 = arith.constant 0 : i32
    return %c0_i32, %c0_i32_0 : i32, i32
  }
  func.func @transform_6(%arg0: i32, %arg1: i32, %arg2: i32) -> (i32, i32) {
    %c0_i32 = arith.constant 0 : i32
    %c0_i32_0 = arith.constant 0 : i32
    %c0_i32_1 = arith.constant 0 : i32
    return %c0_i32, %c0_i32_0 : i32, i32
  }
  func.func @transform_7(%arg0: i32, %arg1: i32, %arg2: i32) -> (i32, i32, i32) {
    %c0_i32 = arith.constant 0 : i32
    %c0_i32_0 = arith.constant 0 : i32
    return %arg0, %c0_i32, %arg1 : i32, i32, i32
  }
}

</mosaic_0001>

<llo_original>
// kernel: scc_module_forward.2
$region0: #{scc_module_forward.2}
  #allocation0 [shape = 'u32[]', space=smem, size = 0x4, offset = 0x4, fixed_abs, tag = 'smem constant byte address 0x4 - core index']
  #allocation1 [shape = 'u32[144,128]{1,0:T(1,128)}', space=vmem, size = 0x12000, scoped, tag = 'internal scratch']
  %s0 = inlined_call_operand.vmem [shape: f32[2,32,256], index: 0, kind: input, shape index: {}]
  %s1 = inlined_call_operand.vmem [shape: f32[2,32,256], index: 1, kind: input, shape index: {}]
  %s2 = inlined_call_operand.vmem [shape: f32[2,64,1], index: 2, kind: input, shape index: {}]
  %s3 = inlined_call_operand.vmem [shape: f32[2,64,1], index: 3, kind: input, shape index: {}]
  %s4 = inlined_call_operand.vmem [shape: bf16[48,64], index: 4, kind: input, shape index: {}]
  %s5 = inlined_call_operand.vmem [shape: f32[48,1], index: 5, kind: input, shape index: {}]
  %s6 = inlined_call_operand.vmem [shape: bf16[32,64], index: 6, kind: input, shape index: {}]
  %s7 = inlined_call_operand.vmem [shape: f32[32,1], index: 7, kind: input, shape index: {}]
  %s8 = inlined_call_operand.vmem [shape: f32[2,32,256], index: 8, kind: output, shape index: {0}]
  %s9 = inlined_call_operand.vmem [shape: bf16[2,2,256,8], index: 9, kind: output, shape index: {1}]
  %s10 = inlined_call_operand.vmem [shape: bf16[2,2,8,256], index: 10, kind: output, shape index: {2}]
  %s11 = inlined_call_operand.vmem [shape: bf16[2,2,8,256], index: 11, kind: output, shape index: {3}]
  %12 = xla_tuple %s8, %s9, %s10, %s11
  %s13 = sld [smem:[#allocation0]]
  $region310: #{scc_module_forward.2} parent=0
    _
  %s15 = ssub.s32 1, %s13
  %s16 = scalar_select 0, %s15, %s13
  $region1: #{scc_module_forward.2} parent=0
    #allocation2 [shape = 'u8[32768]{0}', space=vmem, size = 0x8000, scoped, tag = 'input window, operand 0']
    #allocation3 [shape = 'u8[32768]{0}', space=vmem, size = 0x8000, scoped, tag = 'input window, operand 1']
    #allocation4 [shape = 'u8[32768]{0}', space=vmem, size = 0x8000, scoped, tag = 'output window, operand 0']
    #allocation5 [shape = 'u8[131072]{0}', space=vmem, size = 0x20000, scoped, tag = 'output window, operand 1']
    #allocation6 [shape = 'u8[8192]{0}', space=vmem, size = 0x2000, scoped, tag = 'output window, operand 2']
    #allocation7 [shape = 'u8[8192]{0}', space=vmem, size = 0x2000, scoped, tag = 'output window, operand 3']
    loop: start=0, step=1, limit=6
    $region2: #{scc_module_forward.2} parent=1 // loop_pre_header
      _
    $region3: #{scc_module_forward.2} parent=1 // loop_header
      %s18 = sphi 0, %s22
      %p19 = scmp.ge.s32.totalorder %s18, 6
      %s25 = sphi 0, %s37
      %s26 = sphi 0, %s33
      %s27 = sphi 0, %s25
      %s28 = sphi 0, %s26
      %s29 = sphi 0, %s27
      %s30 = sphi 0, %s28
      %s42 = sphi 0, %s44
      %s45 = sphi 0, %s42
      %s46 = sphi 0, %s45
      %s62 = sphi 0, %s46
      %s70 = sphi 0, %s72
      %s73 = sphi 0, %s70
      %s74 = sphi 0, %s73
      %s90 = sphi 0, %s74
      %s96 = sphi 0, %s98
      %s99 = sphi 0, %s96
      %s100 = sphi 0, %s99
      %s116 = sphi 0, %s100
      %s122 = sphi 0, %s124
      %s125 = sphi 0, %s122
      %s126 = sphi 0, %s125
      %s142 = sphi 0, %s126
      %s146 = sphi 0, %s146
      %s148 = sphi 0, %s146
      %s149 = sphi 0, %s148
      %s163 = sphi 0, %s149
      %s167 = sphi 0, %s167
      %s169 = sphi 0, %s167
      %s170 = sphi 0, %s169
      %s184 = sphi 0, %s170
      %s188 = sphi 0, %s188
      %s190 = sphi 0, %s188
      %s191 = sphi 0, %s190
      %s205 = sphi 0, %s191
      %s209 = sphi 0, %s209
      %s211 = sphi 0, %s209
      %s212 = sphi 0, %s211
      %s226 = sphi 0, %s212
      %s234 = sphi 0, %s236
      %s237 = sphi 0, %s234
      %s238 = sphi 0, %s237
      %s254 = sphi 0, %s238
      %s262 = sphi 0, %s264
      %s265 = sphi 0, %s262
      %s266 = sphi 0, %s265
      %s282 = sphi 0, %s266
      %s290 = sphi 0, %s292
      %s293 = sphi 0, %s290
      %s294 = sphi 0, %s293
      %s310 = sphi 0, %s294
      %s318 = sphi 0, %s320
      %s321 = sphi 0, %s318
      %s322 = sphi 0, %s321
      %s338 = sphi 0, %s322
    $region4: #{scc_module_forward.2} parent=1 // loop_header_branch
      %21 = sbr.rel (%p19) target = $region8
    $region5: #{scc_module_forward.2} parent=1 // loop_body
      %s23 = ssub.s32 %s18, 1
      %s24 = ssub.s32 %s18, 2
      %s31 = sadd.s32 1, %s26
      %p32 = scmp.ge.s32.totalorder %s31, 2
      %s33 = scalar_select %p32, 0, %s31
      %s34 = sadd.s32 1, %s25
      %s35 = scalar_select %p32, %s34, %s25
      %p36 = scmp.ge.s32.totalorder %s35, 2
      %s37 = scalar_select %p36, 0, %s35
      %s38 = ssub.s32 %s25, %s37
      %s39 = ssub.s32 %s26, %s33
      %s40 = sor.u32 %s38, %s39
      %p41 = scmp.eq.s32.totalorder %s40, 0
      %s43 = sadd.s32 %s42, 1
      %s44 = scalar_select %p41, %s42, %s43
      %p47 = pneg %p41
      %p48 = scmp.eq.s32.totalorder %s18, 3
      %p49 = por %p47, %p48
      %p50 = scmp.ne.s32.totalorder %s42, %s45
      %p51 = scmp.eq.s32.totalorder %s18, 0
      %p52 = por %p50, %p51
      %p53 = scmp.ne.s32.totalorder %s42, %s45
      %p54 = scmp.eq.s32.totalorder %s23, 3
      %p55 = por %p53, %p54
      %p56 = scmp.ne.s32.totalorder %s45, %s46
      %p57 = scmp.eq.s32.totalorder %s23, 0
      %p58 = por %p56, %p57
      %p59 = scmp.ne.s32.totalorder %s45, %s46
      %p60 = scmp.eq.s32.totalorder %s24, 3
      %p61 = por %p59, %p60
      %p63 = scmp.ne.s32.totalorder %s46, %s62
      %p64 = scmp.eq.s32.totalorder %s24, 0
      %p65 = por %p63, %p64
      %s66 = ssub.s32 %s25, %s37
      %s67 = ssub.s32 %s26, %s33
      %s68 = sor.u32 %s66, %s67
      %p69 = scmp.eq.s32.totalorder %s68, 0
      %s71 = sadd.s32 %s70, 1
      %s72 = scalar_select %p69, %s70, %s71
      %p75 = pneg %p69
      %p76 = scmp.eq.s32.totalorder %s18, 3
      %p77 = por %p75, %p76
      %p78 = scmp.ne.s32.totalorder %s70, %s73
      %p79 = scmp.eq.s32.totalorder %s18, 0
      %p80 = por %p78, %p79
      %p81 = scmp.ne.s32.totalorder %s70, %s73
      %p82 = scmp.eq.s32.totalorder %s23, 3
      %p83 = por %p81, %p82
      %p84 = scmp.ne.s32.totalorder %s73, %s74
      %p85 = scmp.eq.s32.totalorder %s23, 0
      %p86 = por %p84, %p85
      %p87 = scmp.ne.s32.totalorder %s73, %s74
      %p88 = scmp.eq.s32.totalorder %s24, 3
      %p89 = por %p87, %p88
      %p91 = scmp.ne.s32.totalorder %s74, %s90
      %p92 = scmp.eq.s32.totalorder %s24, 0
      %p93 = por %p91, %p92
      %s94 = ssub.s32 %s25, %s37
      %p95 = scmp.eq.s32.totalorder %s94, 0
      %s97 = sadd.s32 %s96, 1
      %s98 = scalar_select %p95, %s96, %s97
      %p101 = pneg %p95
      %p102 = scmp.eq.s32.totalorder %s18, 3
      %p103 = por %p101, %p102
      %p104 = scmp.ne.s32.totalorder %s96, %s99
      %p105 = scmp.eq.s32.totalorder %s18, 0
      %p106 = por %p104, %p105
      %p107 = scmp.ne.s32.totalorder %s96, %s99
      %p108 = scmp.eq.s32.totalorder %s23, 3
      %p109 = por %p107, %p108
      %p110 = scmp.ne.s32.totalorder %s99, %s100
      %p111 = scmp.eq.s32.totalorder %s23, 0
      %p112 = por %p110, %p111
      %p113 = scmp.ne.s32.totalorder %s99, %s100
      %p114 = scmp.eq.s32.totalorder %s24, 3
      %p115 = por %p113, %p114
      %p117 = scmp.ne.s32.totalorder %s100, %s116
      %p118 = scmp.eq.s32.totalorder %s24, 0
      %p119 = por %p117, %p118
      %s120 = ssub.s32 %s25, %s37
      %p121 = scmp.eq.s32.totalorder %s120, 0
      %s123 = sadd.s32 %s122, 1
      %s124 = scalar_select %p121, %s122, %s123
      %p127 = pneg %p121
      %p128 = scmp.eq.s32.totalorder %s18, 3
      %p129 = por %p127, %p128
      %p130 = scmp.ne.s32.totalorder %s122, %s125
      %p131 = scmp.eq.s32.totalorder %s18, 0
      %p132 = por %p130, %p131
      %p133 = scmp.ne.s32.totalorder %s122, %s125
      %p134 = scmp.eq.s32.totalorder %s23, 3
      %p135 = por %p133, %p134
      %p136 = scmp.ne.s32.totalorder %s125, %s126
      %p137 = scmp.eq.s32.totalorder %s23, 0
      %p138 = por %p136, %p137
      %p139 = scmp.ne.s32.totalorder %s125, %s126
      %p140 = scmp.eq.s32.totalorder %s24, 3
      %p141 = por %p139, %p140
      %p143 = scmp.ne.s32.totalorder %s126, %s142
      %p144 = scmp.eq.s32.totalorder %s24, 0
      %p145 = por %p143, %p144
      %s147 = sadd.s32 %s146, 1
      %p150 = scmp.eq.s32.totalorder %s18, 3
      %p151 = scmp.ne.s32.totalorder %s146, %s148
      %p152 = scmp.eq.s32.totalorder %s18, 0
      %p153 = por %p151, %p152
      %p154 = scmp.ne.s32.totalorder %s146, %s148
      %p155 = scmp.eq.s32.totalorder %s23, 3
      %p156 = por %p154, %p155
      %p157 = scmp.ne.s32.totalorder %s148, %s149
      %p158 = scmp.eq.s32.totalorder %s23, 0
      %p159 = por %p157, %p158
      %p160 = scmp.ne.s32.totalorder %s148, %s149
      %p161 = scmp.eq.s32.totalorder %s24, 3
      %p162 = por %p160, %p161
      %p164 = scmp.ne.s32.totalorder %s149, %s163
      %p165 = scmp.eq.s32.totalorder %s24, 0
      %p166 = por %p164, %p165
      %s168 = sadd.s32 %s167, 1
      %p171 = scmp.eq.s32.totalorder %s18, 3
      %p172 = scmp.ne.s32.totalorder %s167, %s169
      %p173 = scmp.eq.s32.totalorder %s18, 0
      %p174 = por %p172, %p173
      %p175 = scmp.ne.s32.totalorder %s167, %s169
      %p176 = scmp.eq.s32.totalorder %s23, 3
      %p177 = por %p175, %p176
      %p178 = scmp.ne.s32.totalorder %s169, %s170
      %p179 = scmp.eq.s32.totalorder %s23, 0
      %p180 = por %p178, %p179
      %p181 = scmp.ne.s32.totalorder %s169, %s170
      %p182 = scmp.eq.s32.totalorder %s24, 3
      %p183 = por %p181, %p182
      %p185 = scmp.ne.s32.totalorder %s170, %s184
      %p186 = scmp.eq.s32.totalorder %s24, 0
      %p187 = por %p185, %p186
      %s189 = sadd.s32 %s188, 1
      %p192 = scmp.eq.s32.totalorder %s18, 3
      %p193 = scmp.ne.s32.totalorder %s188, %s190
      %p194 = scmp.eq.s32.totalorder %s18, 0
      %p195 = por %p193, %p194
      %p196 = scmp.ne.s32.totalorder %s188, %s190
      %p197 = scmp.eq.s32.totalorder %s23, 3
      %p198 = por %p196, %p197
      %p199 = scmp.ne.s32.totalorder %s190, %s191
      %p200 = scmp.eq.s32.totalorder %s23, 0
      %p201 = por %p199, %p200
      %p202 = scmp.ne.s32.totalorder %s190, %s191
      %p203 = scmp.eq.s32.totalorder %s24, 3
      %p204 = por %p202, %p203
      %p206 = scmp.ne.s32.totalorder %s191, %s205
      %p207 = scmp.eq.s32.totalorder %s24, 0
      %p208 = por %p206, %p207
      %s210 = sadd.s32 %s209, 1
      %p213 = scmp.eq.s32.totalorder %s18, 3
      %p214 = scmp.ne.s32.totalorder %s209, %s211
      %p215 = scmp.eq.s32.totalorder %s18, 0
      %p216 = por %p214, %p215
      %p217 = scmp.ne.s32.totalorder %s209, %s211
      %p218 = scmp.eq.s32.totalorder %s23, 3
      %p219 = por %p217, %p218
      %p220 = scmp.ne.s32.totalorder %s211, %s212
      %p221 = scmp.eq.s32.totalorder %s23, 0
      %p222 = por %p220, %p221
      %p223 = scmp.ne.s32.totalorder %s211, %s212
      %p224 = scmp.eq.s32.totalorder %s24, 3
      %p225 = por %p223, %p224
      %p227 = scmp.ne.s32.totalorder %s212, %s226
      %p228 = scmp.eq.s32.totalorder %s24, 0
      %p229 = por %p227, %p228
      %s230 = ssub.s32 %s25, %s37
      %s231 = ssub.s32 %s26, %s33
      %s232 = sor.u32 %s230, %s231
      %p233 = scmp.eq.s32.totalorder %s232, 0
      %s235 = sadd.s32 %s234, 1
      %s236 = scalar_select %p233, %s234, %s235
      %p239 = pneg %p233
      %p240 = scmp.eq.s32.totalorder %s18, 3
      %p241 = por %p239, %p240
      %p242 = scmp.ne.s32.totalorder %s234, %s237
      %p243 = scmp.eq.s32.totalorder %s18, 0
      %p244 = por %p242, %p243
      %p245 = scmp.ne.s32.totalorder %s234, %s237
      %p246 = scmp.eq.s32.totalorder %s23, 3
      %p247 = por %p245, %p246
      %p248 = scmp.ne.s32.totalorder %s237, %s238
      %p249 = scmp.eq.s32.totalorder %s23, 0
      %p250 = por %p248, %p249
      %p251 = scmp.ne.s32.totalorder %s237, %s238
      %p252 = scmp.eq.s32.totalorder %s24, 3
      %p253 = por %p251, %p252
      %p255 = scmp.ne.s32.totalorder %s238, %s254
      %p256 = scmp.eq.s32.totalorder %s24, 0
      %p257 = por %p255, %p256
      %s258 = ssub.s32 %s25, %s37
      %s259 = ssub.s32 %s26, %s33
      %s260 = sor.u32 %s258, %s259
      %p261 = scmp.eq.s32.totalorder %s260, 0
      %s263 = sadd.s32 %s262, 1
      %s264 = scalar_select %p261, %s262, %s263
      %p267 = pneg %p261
      %p268 = scmp.eq.s32.totalorder %s18, 3
      %p269 = por %p267, %p268
      %p270 = scmp.ne.s32.totalorder %s262, %s265
      %p271 = scmp.eq.s32.totalorder %s18, 0
      %p272 = por %p270, %p271
      %p273 = scmp.ne.s32.totalorder %s262, %s265
      %p274 = scmp.eq.s32.totalorder %s23, 3
      %p275 = por %p273, %p274
      %p276 = scmp.ne.s32.totalorder %s265, %s266
      %p277 = scmp.eq.s32.totalorder %s23, 0
      %p278 = por %p276, %p277
      %p279 = scmp.ne.s32.totalorder %s265, %s266
      %p280 = scmp.eq.s32.totalorder %s24, 3
      %p281 = por %p279, %p280
      %p283 = scmp.ne.s32.totalorder %s266, %s282
      %p284 = scmp.eq.s32.totalorder %s24, 0
      %p285 = por %p283, %p284
      %s286 = ssub.s32 %s25, %s37
      %s287 = ssub.s32 %s26, %s33
      %s288 = sor.u32 %s286, %s287
      %p289 = scmp.eq.s32.totalorder %s288, 0
      %s291 = sadd.s32 %s290, 1
      %s292 = scalar_select %p289, %s290, %s291
      %p295 = pneg %p289
      %p296 = scmp.eq.s32.totalorder %s18, 3
      %p297 = por %p295, %p296
      %p298 = scmp.ne.s32.totalorder %s290, %s293
      %p299 = scmp.eq.s32.totalorder %s18, 0
      %p300 = por %p298, %p299
      %p301 = scmp.ne.s32.totalorder %s290, %s293
      %p302 = scmp.eq.s32.totalorder %s23, 3
      %p303 = por %p301, %p302
      %p304 = scmp.ne.s32.totalorder %s293, %s294
      %p305 = scmp.eq.s32.totalorder %s23, 0
      %p306 = por %p304, %p305
      %p307 = scmp.ne.s32.totalorder %s293, %s294
      %p308 = scmp.eq.s32.totalorder %s24, 3
      %p309 = por %p307, %p308
      %p311 = scmp.ne.s32.totalorder %s294, %s310
      %p312 = scmp.eq.s32.totalorder %s24, 0
      %p313 = por %p311, %p312
      %s314 = ssub.s32 %s25, %s37
      %s315 = ssub.s32 %s26, %s33
      %s316 = sor.u32 %s314, %s315
      %p317 = scmp.eq.s32.totalorder %s316, 0
      %s319 = sadd.s32 %s318, 1
      %s320 = scalar_select %p317, %s318, %s319
      %p323 = pneg %p317
      %p324 = scmp.eq.s32.totalorder %s18, 3
      %p325 = por %p323, %p324
      %p326 = scmp.ne.s32.totalorder %s318, %s321
      %p327 = scmp.eq.s32.totalorder %s18, 0
      %p328 = por %p326, %p327
      %p329 = scmp.ne.s32.totalorder %s318, %s321
      %p330 = scmp.eq.s32.totalorder %s23, 3
      %p331 = por %p329, %p330
      %p332 = scmp.ne.s32.totalorder %s321, %s322
      %p333 = scmp.eq.s32.totalorder %s23, 0
      %p334 = por %p332, %p333
      %p335 = scmp.ne.s32.totalorder %s321, %s322
      %p336 = scmp.eq.s32.totalorder %s24, 3
      %p337 = por %p335, %p336
      %p339 = scmp.ne.s32.totalorder %s322, %s338
      %p340 = scmp.eq.s32.totalorder %s24, 0
      %p341 = por %p339, %p340
      %p342 = scmp.le.s32.totalorder 1, %s18
      %p343 = scmp.lt.s32.totalorder %s18, 5
      %p344 = pnand %p342, %p343
      %p345 = pneg %p344
      // Predicated region
      $region9: #{scc_module_forward.2} parent=5 // pred_check
        _
      $region10: #{scc_module_forward.2} parent=5 // pred_check_branch
        %347 = sbr.rel (%p344) target = $region12
      $region11: #{scc_module_forward.2} parent=5 // pred_region
        %s348 = ssub.s32 %s18, 1
        // Predicated region
        $region13: #{scc_module_forward.2} parent=11 // pred_check
          %p349 = pneg %p159
        $region14: #{scc_module_forward.2} parent=11 // pred_check_branch
          %351 = sbr.rel (%p349) target = $region16
        $region15: #{scc_module_forward.2} parent=11 // pred_region
          _
        $region16: #{scc_module_forward.2} parent=11 // pred_fallthru
          _
        // Predicated region
        $region17: #{scc_module_forward.2} parent=11 // pred_check
          %p352 = pneg %p180
        $region18: #{scc_module_forward.2} parent=11 // pred_check_branch
          %354 = sbr.rel (%p352) target = $region20
        $region19: #{scc_module_forward.2} parent=11 // pred_region
          _
        $region20: #{scc_module_forward.2} parent=11 // pred_fallthru
          _
        // Predicated region
        $region21: #{scc_module_forward.2} parent=11 // pred_check
          %p355 = pneg %p201
        $region22: #{scc_module_forward.2} parent=11 // pred_check_branch
          %357 = sbr.rel (%p355) target = $region24
        $region23: #{scc_module_forward.2} parent=11 // pred_region
          _
        $region24: #{scc_module_forward.2} parent=11 // pred_fallthru
          _
        // Predicated region
        $region25: #{scc_module_forward.2} parent=11 // pred_check
          %p358 = pneg %p222
        $region26: #{scc_module_forward.2} parent=11 // pred_check_branch
          %360 = sbr.rel (%p358) target = $region28
        $region27: #{scc_module_forward.2} parent=11 // pred_region
          _
        $region28: #{scc_module_forward.2} parent=11 // pred_fallthru
          _
      $region12: #{scc_module_forward.2} parent=5 // pred_fallthru
        _
      %p361 = scmp.lt.s32.totalorder %s18, 4
      // Predicated region
      $region29: #{scc_module_forward.2} parent=5 // pred_check
        %p362 = pneg %p361
      $region30: #{scc_module_forward.2} parent=5 // pred_check_branch
        %364 = sbr.rel (%p362) target = $region32
      $region31: #{scc_module_forward.2} parent=5 // pred_region
        // Predicated region
        $region33: #{scc_module_forward.2} parent=31 // pred_check
          %p365 = pneg %p52
        $region34: #{scc_module_forward.2} parent=31 // pred_check_branch
          %367 = sbr.rel (%p365) target = $region36
        $region35: #{scc_module_forward.2} parent=31 // pred_region
          %s368 = sand.u32 %s42, 1
          %s369 = sand.u32 %s42, 1
          %s370 = smul.addr %s369, 32
          %s371 = scalar_lea.vmem [#allocation2], %s370
          %s372 = smul.addr %s25, 8
          %s373 = sadd.s32 %s26, %s372
          %s374 = smul.addr %s373, 8
          %s375 = scalar_lea.vmem %s0, %s374
          // Predicated region
          $region37: #{scc_module_forward.2} parent=35 // pred_check
            _
          $region38: #{scc_module_forward.2} parent=35 // pred_check_branch
            %377 = sbr.rel (0) target = $region40
          $region39: #{scc_module_forward.2} parent=35 // pred_region
            // Predicated region
            $region41: #{scc_module_forward.2} parent=39 // pred_check
              _
            $region42: #{scc_module_forward.2} parent=39 // pred_check_branch
              %379 = sbr.rel (0) target = $region44
            $region43: #{scc_module_forward.2} parent=39 // pred_region
              // Predicated region
              $region56: #{scc_module_forward.2} parent=43 // pred_check
                _
              $region57: #{scc_module_forward.2} parent=43 // pred_check_branch
                %400 = sbr.rel (0) target = $region59
              $region58: #{scc_module_forward.2} parent=43 // pred_region
                loop: start=0, step=1, limit=1
                $region60: #{scc_module_forward.2} parent=58 // loop_pre_header
                  _
                $region61: #{scc_module_forward.2} parent=58 // loop_header
                  %s402 = sphi 0, %s406
                  %p403 = scmp.ge.s32.totalorder %s402, 1
                  %s407 = sphi %s375, %s375
                  %s408 = sphi %s371, %s371
                $region62: #{scc_module_forward.2} parent=58 // loop_header_branch
                  %405 = sbr.rel (%p403) target = $region66
                $region63: #{scc_module_forward.2} parent=58 // loop_body
                  %v409 = vld [vmem:[%s407] sm:$0xff]
                  %410 = vst [vmem:[%s408] sm:$0xff] %v409
                  %v411 = vld [vmem:[%s407 + $0x10] sm:$0xff]
                  %412 = vst [vmem:[%s408 + $0x8] sm:$0xff] %v411
                  %v413 = vld [vmem:[%s407 + $0x20] sm:$0xff]
                  %414 = vst [vmem:[%s408 + $0x10] sm:$0xff] %v413
                  %v415 = vld [vmem:[%s407 + $0x30] sm:$0xff]
                  %416 = vst [vmem:[%s408 + $0x18] sm:$0xff] %v415
                $region64: #{scc_module_forward.2} parent=58 // loop_footer
                  %s406 = sadd.s32 1, %s402
                $region65: #{scc_module_forward.2} parent=58 // loop_footer_branch
                  %401 = sbr.rel target = $region61
                $region66: #{scc_module_forward.2} parent=58 // loop_exit
                  _
              $region59: #{scc_module_forward.2} parent=43 // pred_fallthru
                _
              // Predicated region
              $region67: #{scc_module_forward.2} parent=43 // pred_check
                _
              $region68: #{scc_module_forward.2} parent=43 // pred_check_branch
                %418 = sbr.rel target = $region70
              $region69: #{scc_module_forward.2} parent=43 // pred_region
                _
              $region70: #{scc_module_forward.2} parent=43 // pred_fallthru
                _
            $region44: #{scc_module_forward.2} parent=39 // pred_fallthru
              _
            // Predicated region
            $region45: #{scc_module_forward.2} parent=39 // pred_check
              _
            $region46: #{scc_module_forward.2} parent=39 // pred_check_branch
              %381 = sbr.rel target = $region48
            $region47: #{scc_module_forward.2} parent=39 // pred_region
              loop: start=0, step=1, limit=1
              $region49: #{scc_module_forward.2} parent=47 // loop_pre_header
                _
              $region50: #{scc_module_forward.2} parent=47 // loop_header
                %s384 = sphi 0, %s388
                %p385 = scmp.ge.s32.totalorder %s384, 1
                %s389 = sphi %s375, %s375
                %s390 = sphi %s371, %s371
              $region51: #{scc_module_forward.2} parent=47 // loop_header_branch
                %387 = sbr.rel (%p385) target = $region55
              $region52: #{scc_module_forward.2} parent=47 // loop_body
                %v391 = vld [vmem:[%s389] sm:$0xff]
                %392 = vst [vmem:[%s390] sm:$0xff] %v391
                %v393 = vld [vmem:[%s389 + $0x10] sm:$0xff]
                %394 = vst [vmem:[%s390 + $0x8] sm:$0xff] %v393
                %v395 = vld [vmem:[%s389 + $0x20] sm:$0xff]
                %396 = vst [vmem:[%s390 + $0x10] sm:$0xff] %v395
                %v397 = vld [vmem:[%s389 + $0x30] sm:$0xff]
                %398 = vst [vmem:[%s390 + $0x18] sm:$0xff] %v397
              $region53: #{scc_module_forward.2} parent=47 // loop_footer
                %s388 = sadd.s32 1, %s384
              $region54: #{scc_module_forward.2} parent=47 // loop_footer_branch
                %383 = sbr.rel target = $region50
              $region55: #{scc_module_forward.2} parent=47 // loop_exit
                _
            $region48: #{scc_module_forward.2} parent=39 // pred_fallthru
              _
          $region40: #{scc_module_forward.2} parent=35 // pred_fallthru
            _
          %419 = vnop
        $region36: #{scc_module_forward.2} parent=31 // pred_fallthru
          _
        // Predicated region
        $region71: #{scc_module_forward.2} parent=31 // pred_check
          %p420 = pneg %p80
        $region72: #{scc_module_forward.2} parent=31 // pred_check_branch
          %422 = sbr.rel (%p420) target = $region74
        $region73: #{scc_module_forward.2} parent=31 // pred_region
          %s423 = sand.u32 %s70, 1
          %s424 = sand.u32 %s70, 1
          %s425 = smul.addr %s424, 32
          %s426 = scalar_lea.vmem [#allocation3], %s425
          %s427 = smul.addr %s25, 8
          %s428 = sadd.s32 %s26, %s427
          %s429 = smul.addr %s428, 8
          %s430 = scalar_lea.vmem %s1, %s429
          // Predicated region
          $region75: #{scc_module_forward.2} parent=73 // pred_check
            _
          $region76: #{scc_module_forward.2} parent=73 // pred_check_branch
            %432 = sbr.rel (0) target = $region78
          $region77: #{scc_module_forward.2} parent=73 // pred_region
            // Predicated region
            $region79: #{scc_module_forward.2} parent=77 // pred_check
              _
            $region80: #{scc_module_forward.2} parent=77 // pred_check_branch
              %434 = sbr.rel (0) target = $region82
            $region81: #{scc_module_forward.2} parent=77 // pred_region
              // Predicated region
              $region94: #{scc_module_forward.2} parent=81 // pred_check
                _
              $region95: #{scc_module_forward.2} parent=81 // pred_check_branch
                %455 = sbr.rel (0) target = $region97
              $region96: #{scc_module_forward.2} parent=81 // pred_region
                loop: start=0, step=1, limit=1
                $region98: #{scc_module_forward.2} parent=96 // loop_pre_header
                  _
                $region99: #{scc_module_forward.2} parent=96 // loop_header
                  %s457 = sphi 0, %s461
                  %p458 = scmp.ge.s32.totalorder %s457, 1
                  %s462 = sphi %s430, %s430
                  %s463 = sphi %s426, %s426
                $region100: #{scc_module_forward.2} parent=96 // loop_header_branch
                  %460 = sbr.rel (%p458) target = $region104
                $region101: #{scc_module_forward.2} parent=96 // loop_body
                  %v464 = vld [vmem:[%s462] sm:$0xff]
                  %465 = vst [vmem:[%s463] sm:$0xff] %v464
                  %v466 = vld [vmem:[%s462 + $0x10] sm:$0xff]
                  %467 = vst [vmem:[%s463 + $0x8] sm:$0xff] %v466
                  %v468 = vld [vmem:[%s462 + $0x20] sm:$0xff]
                  %469 = vst [vmem:[%s463 + $0x10] sm:$0xff] %v468
                  %v470 = vld [vmem:[%s462 + $0x30] sm:$0xff]
                  %471 = vst [vmem:[%s463 + $0x18] sm:$0xff] %v470
                $region102: #{scc_module_forward.2} parent=96 // loop_footer
                  %s461 = sadd.s32 1, %s457
                $region103: #{scc_module_forward.2} parent=96 // loop_footer_branch
                  %456 = sbr.rel target = $region99
                $region104: #{scc_module_forward.2} parent=96 // loop_exit
                  _
              $region97: #{scc_module_forward.2} parent=81 // pred_fallthru
                _
              // Predicated region
              $region105: #{scc_module_forward.2} parent=81 // pred_check
                _
              $region106: #{scc_module_forward.2} parent=81 // pred_check_branch
                %473 = sbr.rel target = $region108
              $region107: #{scc_module_forward.2} parent=81 // pred_region
                _
              $region108: #{scc_module_forward.2} parent=81 // pred_fallthru
                _
            $region82: #{scc_module_forward.2} parent=77 // pred_fallthru
              _
            // Predicated region
            $region83: #{scc_module_forward.2} parent=77 // pred_check
              _
            $region84: #{scc_module_forward.2} parent=77 // pred_check_branch
              %436 = sbr.rel target = $region86
            $region85: #{scc_module_forward.2} parent=77 // pred_region
              loop: start=0, step=1, limit=1
              $region87: #{scc_module_forward.2} parent=85 // loop_pre_header
                _
              $region88: #{scc_module_forward.2} parent=85 // loop_header
                %s439 = sphi 0, %s443
                %p440 = scmp.ge.s32.totalorder %s439, 1
                %s444 = sphi %s430, %s430
                %s445 = sphi %s426, %s426
              $region89: #{scc_module_forward.2} parent=85 // loop_header_branch
                %442 = sbr.rel (%p440) target = $region93
              $region90: #{scc_module_forward.2} parent=85 // loop_body
                %v446 = vld [vmem:[%s444] sm:$0xff]
                %447 = vst [vmem:[%s445] sm:$0xff] %v446
                %v448 = vld [vmem:[%s444 + $0x10] sm:$0xff]
                %449 = vst [vmem:[%s445 + $0x8] sm:$0xff] %v448
                %v450 = vld [vmem:[%s444 + $0x20] sm:$0xff]
                %451 = vst [vmem:[%s445 + $0x10] sm:$0xff] %v450
                %v452 = vld [vmem:[%s444 + $0x30] sm:$0xff]
                %453 = vst [vmem:[%s445 + $0x18] sm:$0xff] %v452
              $region91: #{scc_module_forward.2} parent=85 // loop_footer
                %s443 = sadd.s32 1, %s439
              $region92: #{scc_module_forward.2} parent=85 // loop_footer_branch
                %438 = sbr.rel target = $region88
              $region93: #{scc_module_forward.2} parent=85 // loop_exit
                _
            $region86: #{scc_module_forward.2} parent=77 // pred_fallthru
              _
          $region78: #{scc_module_forward.2} parent=73 // pred_fallthru
            _
          %474 = vnop
        $region74: #{scc_module_forward.2} parent=31 // pred_fallthru
          _
        // Predicated region
        $region109: #{scc_module_forward.2} parent=31 // pred_check
          %p475 = pneg %p106
        $region110: #{scc_module_forward.2} parent=31 // pred_check_branch
          %477 = sbr.rel (%p475) target = $region112
        $region111: #{scc_module_forward.2} parent=31 // pred_region
          %p478 = scmp.lt.s32.totalorder %s25, 1
          %s479 = scalar_select %p478, %s25, 1
          %s480 = smul.addr %s479, 8
          %s481 = smul.addr %s480, 8
          %s482 = scalar_lea.vmem %s2, %s481
        $region112: #{scc_module_forward.2} parent=31 // pred_fallthru
          _
        // Predicated region
        $region113: #{scc_module_forward.2} parent=31 // pred_check
          %p483 = pneg %p132
        $region114: #{scc_module_forward.2} parent=31 // pred_check_branch
          %485 = sbr.rel (%p483) target = $region116
        $region115: #{scc_module_forward.2} parent=31 // pred_region
          %p486 = scmp.lt.s32.totalorder %s25, 1
          %s487 = scalar_select %p486, %s25, 1
          %s488 = smul.addr %s487, 8
          %s489 = smul.addr %s488, 8
          %s490 = scalar_lea.vmem %s3, %s489
        $region116: #{scc_module_forward.2} parent=31 // pred_fallthru
          _
      $region32: #{scc_module_forward.2} parent=5 // pred_fallthru
        _
      %p491 = scmp.le.s32.totalorder 1, %s18
      %p492 = scmp.lt.s32.totalorder %s18, 5
      %p493 = pnand %p491, %p492
      %p494 = pneg %p493
      // Predicated region
      $region117: #{scc_module_forward.2} parent=5 // pred_check
        _
      $region118: #{scc_module_forward.2} parent=5 // pred_check_branch
        %496 = sbr.rel (%p493) target = $region120
      $region119: #{scc_module_forward.2} parent=5 // pred_region
        %s497 = ssub.s32 %s18, 1
        %s498 = sand.u32 %s45, 1
        %s499 = sand.u32 %s45, 1
        %s500 = smul.addr %s499, 32
        %s501 = scalar_lea.vmem [#allocation2], %s500
        // Predicated region
        $region121: #{scc_module_forward.2} parent=119 // pred_check
          %p502 = pneg %p58
        $region122: #{scc_module_forward.2} parent=119 // pred_check_branch
          %504 = sbr.rel (%p502) target = $region124
        $region123: #{scc_module_forward.2} parent=119 // pred_region
          _
        $region124: #{scc_module_forward.2} parent=119 // pred_fallthru
          _
        %s505 = sand.u32 %s73, 1
        %s506 = sand.u32 %s73, 1
        %s507 = smul.addr %s506, 32
        %s508 = scalar_lea.vmem [#allocation3], %s507
        // Predicated region
        $region125: #{scc_module_forward.2} parent=119 // pred_check
          %p509 = pneg %p86
        $region126: #{scc_module_forward.2} parent=119 // pred_check_branch
          %511 = sbr.rel (%p509) target = $region128
        $region127: #{scc_module_forward.2} parent=119 // pred_region
          _
        $region128: #{scc_module_forward.2} parent=119 // pred_fallthru
          _
        %s512 = sand.u32 %s45, 1
        %s513 = sand.u32 %s45, 1
        %s514 = smul.addr %s513, 32
        %s515 = scalar_lea.vmem [#allocation2], %s514
        %p516 = pneg %p58
        %p517 = pneg %p55
        %s518 = sand.u32 %s73, 1
        %s519 = sand.u32 %s73, 1
        %s520 = smul.addr %s519, 32
        %s521 = scalar_lea.vmem [#allocation3], %s520
        %p522 = pneg %p86
        %p523 = pneg %p83
        %p524 = scmp.lt.s32.totalorder %s27, 1
        %s525 = scalar_select %p524, %s27, 1
        %s526 = smul.addr %s525, 8
        %s527 = smul.addr %s526, 8
        %s528 = scalar_lea.vmem %s2, %s527
        %p529 = pneg %p112
        %p530 = pneg %p109
        %p531 = scmp.lt.s32.totalorder %s27, 1
        %s532 = scalar_select %p531, %s27, 1
        %s533 = smul.addr %s532, 8
        %s534 = smul.addr %s533, 8
        %s535 = scalar_lea.vmem %s3, %s534
        %p536 = pneg %p138
        %p537 = pneg %p135
        %p538 = pneg %p159
        %p539 = pneg %p156
        %p540 = pneg %p180
        %p541 = pneg %p177
        %p542 = pneg %p201
        %p543 = pneg %p198
        %p544 = pneg %p222
        %p545 = pneg %p219
        %p546 = pneg %p250
        %p547 = pneg %p247
        %s548 = sand.u32 %s237, 1
        %s549 = sand.u32 %s237, 1
        %s550 = smul.addr %s549, 32
        %s551 = scalar_lea.vmem [#allocation4], %s550
        %p552 = pneg %p278
        %p553 = pneg %p275
        %s554 = sand.u32 %s265, 1
        %s555 = sand.u32 %s265, 1
        %s556 = smul.addr %s555, 128
        %s557 = scalar_lea.vmem [#allocation5], %s556
        %p558 = pneg %p306
        %p559 = pneg %p303
        %s560 = sand.u32 %s293, 1
        %s561 = sand.u32 %s293, 1
        %s562 = smul.addr %s561, 8
        %s563 = scalar_lea.vmem [#allocation6], %s562
        %p564 = pneg %p334
        %p565 = pneg %p331
        %s566 = sand.u32 %s321, 1
        %s567 = sand.u32 %s321, 1
        %s568 = smul.addr %s567, 8
        %s569 = scalar_lea.vmem [#allocation7], %s568
        %p570 = scmp.lt.s32.totalorder %s27, 1
        %s571 = scalar_select %p570, %s27, 1
        %s572 = smul.addr %s571, 8
        %s573 = smul.addr %s572, 8
        %s574 = scalar_lea.vmem %s2, %s573
        %p575 = scmp.lt.s32.totalorder %s27, 1
        %s576 = scalar_select %p575, %s27, 1
        %s577 = smul.addr %s576, 8
        %s578 = smul.addr %s577, 8
        %s579 = scalar_lea.vmem %s3, %s578
        %s580 = smul.u32 16, %s28
        %v582 = vld [vmem:[%s501] sm:$0xff]
        %v583 = vld [vmem:[%s501 + $0x8] sm:$0xff]
        %v584 = vld [vmem:[%s501 + $0x10] sm:$0xff]
        %v585 = vld [vmem:[%s501 + $0x18] sm:$0xff]
        %v586 = vld [vmem:[%s508] sm:$0xff]
        %v587 = vld [vmem:[%s508 + $0x8] sm:$0xff]
        %v588 = vld [vmem:[%s508 + $0x10] sm:$0xff]
        %v589 = vld [vmem:[%s508 + $0x18] sm:$0xff]
        %v590 = vld [vmem:[%s574] sm:$0xff]
        %v591 = vld [vmem:[%s574 + $0x8] sm:$0xff]
        %v592 = vld [vmem:[%s574 + $0x10] sm:$0xff]
        %v593 = vld [vmem:[%s574 + $0x18] sm:$0xff]
        %v594 = vld [vmem:[%s574 + $0x20] sm:$0xff]
        %v595 = vld [vmem:[%s574 + $0x28] sm:$0xff]
        %v596 = vld [vmem:[%s574 + $0x30] sm:$0xff]
        %v597 = vld [vmem:[%s574 + $0x38] sm:$0xff]
        %599 = vset.pattern.permute.xlu0 0
        %600 = vperm.xlu0 %599, %v590
        %v601 = vpop.permute.xlu0 %600
        %604 = vset.pattern.permute.xlu0 0
        %605 = vperm.xlu0 %604, %v591
        %v606 = vpop.permute.xlu0 %605
        %609 = vset.pattern.permute.xlu0 0
        %610 = vperm.xlu0 %609, %v592
        %v611 = vpop.permute.xlu0 %610
        %614 = vset.pattern.permute.xlu0 0
        %615 = vperm.xlu0 %614, %v593
        %v616 = vpop.permute.xlu0 %615
        %619 = vset.pattern.permute.xlu0 0
        %620 = vperm.xlu0 %619, %v594
        %v621 = vpop.permute.xlu0 %620
        %624 = vset.pattern.permute.xlu0 0
        %625 = vperm.xlu0 %624, %v595
        %v626 = vpop.permute.xlu0 %625
        %629 = vset.pattern.permute.xlu0 0
        %630 = vperm.xlu0 %629, %v596
        %v631 = vpop.permute.xlu0 %630
        %634 = vset.pattern.permute.xlu0 0
        %635 = vperm.xlu0 %634, %v597
        %v636 = vpop.permute.xlu0 %635
        %v638 = vmul.f32 %v582, %v601
        %v639 = vmul.f32 %v583, %v606
        %v640 = vmul.f32 %v584, %v611
        %v641 = vmul.f32 %v585, %v616
        %v642 = vmul.f32 %v586, %v621
        %v643 = vmul.f32 %v587, %v626
        %v644 = vmul.f32 %v588, %v631
        %v645 = vmul.f32 %v589, %v636
        %v646 = vadd.f32 %v638, %v639
        %v647 = vadd.f32 %v646, %v640
        %v648 = vadd.f32 %v647, %v641
        %v649 = vadd.f32 %v648, %v642
        %v650 = vadd.f32 %v649, %v643
        %v651 = vadd.f32 %v650, %v644
        %v652 = vadd.f32 %v651, %v645
        %v653 = vrot.slane %v652, 4
        %v654 = vadd.f32 %v652, %v653
        %v655 = vrot.slane %v654, 2
        %v656 = vadd.f32 %v654, %v655
        %v657 = vrot.slane %v656, 1
        %v658 = vadd.f32 %v656, %v657
        %v659 = vmul.f32 %v658, 0.00024414063
        %v660 = vxor.u32 %v659, 2147483648
        %v661 = vmul.f32 %v660, 1.442695
        %v662 = vpow.pop %v661
        %v663 = vadd.f32 %v662, 1.0
        %v664 = vrcp.pop %v663
        %v665 = vmul.f32 1.0, %v664
        %v666 = vld [vmem:[%s579] sm:$0xff]
        %v667 = vld [vmem:[%s579 + $0x8] sm:$0xff]
        %v668 = vld [vmem:[%s579 + $0x10] sm:$0xff]
        %v669 = vld [vmem:[%s579 + $0x18] sm:$0xff]
        %v670 = vld [vmem:[%s579 + $0x20] sm:$0xff]
        %v671 = vld [vmem:[%s579 + $0x28] sm:$0xff]
        %v672 = vld [vmem:[%s579 + $0x30] sm:$0xff]
        %v673 = vld [vmem:[%s579 + $0x38] sm:$0xff]
        %675 = vset.pattern.permute.xlu0 0
        %676 = vperm.xlu0 %675, %v666
        %v677 = vpop.permute.xlu0 %676
        %680 = vset.pattern.permute.xlu0 0
        %681 = vperm.xlu0 %680, %v667
        %v682 = vpop.permute.xlu0 %681
        %685 = vset.pattern.permute.xlu0 0
        %686 = vperm.xlu0 %685, %v668
        %v687 = vpop.permute.xlu0 %686
        %690 = vset.pattern.permute.xlu0 0
        %691 = vperm.xlu0 %690, %v669
        %v692 = vpop.permute.xlu0 %691
        %695 = vset.pattern.permute.xlu0 0
        %696 = vperm.xlu0 %695, %v670
        %v697 = vpop.permute.xlu0 %696
        %700 = vset.pattern.permute.xlu0 0
        %701 = vperm.xlu0 %700, %v671
        %v702 = vpop.permute.xlu0 %701
        %705 = vset.pattern.permute.xlu0 0
        %706 = vperm.xlu0 %705, %v672
        %v707 = vpop.permute.xlu0 %706
        %710 = vset.pattern.permute.xlu0 0
        %711 = vperm.xlu0 %710, %v673
        %v712 = vpop.permute.xlu0 %711
        %v714 = vmul.f32 %v582, %v677
        %v715 = vmul.f32 %v583, %v682
        %v716 = vmul.f32 %v584, %v687
        %v717 = vmul.f32 %v585, %v692
        %v718 = vmul.f32 %v586, %v697
        %v719 = vmul.f32 %v587, %v702
        %v720 = vmul.f32 %v588, %v707
        %v721 = vmul.f32 %v589, %v712
        %v722 = vmul.f32 %v714, %v665
        %v723 = vmul.f32 %v715, %v665
        %v724 = vmul.f32 %v716, %v665
        %v725 = vmul.f32 %v717, %v665
        %v726 = vmul.f32 %v718, %v665
        %v727 = vmul.f32 %v719, %v665
        %v728 = vmul.f32 %v720, %v665
        %v729 = vmul.f32 %v721, %v665
        %v730 = vpack.c.bf16 %v723, %v722
        %v731 = vpack.c.bf16 %v725, %v724
        %v732 = vpack.c.bf16 %v727, %v726
        %v733 = vpack.c.bf16 %v729, %v728
        %v734 = vpack.c.bf16 %v583, %v582
        %v735 = vpack.c.bf16 %v585, %v584
        %v736 = vpack.c.bf16 %v587, %v586
        %v737 = vpack.c.bf16 %v589, %v588
        %v738 = vld [vmem:[%s4] sm:$0xf]
        %v739 = vld [vmem:[%s4 + $0x4] sm:$0xf]
        %v740 = vld [vmem:[%s4 + $0x8] sm:$0xf]
        %v741 = vld [vmem:[%s4 + $0xc] sm:$0xf]
        %v742 = vld [vmem:[%s4 + $0x10] sm:$0xf]
        %v743 = vld [vmem:[%s4 + $0x14] sm:$0xf]
        %v744 = vld [vmem:[%s5] sm:$0xff]
        %v745 = vld [vmem:[%s5 + $0x8] sm:$0xff]
        %v746 = vld [vmem:[%s5 + $0x10] sm:$0xff]
        %v747 = vld [vmem:[%s5 + $0x18] sm:$0xff]
        %v748 = vld [vmem:[%s5 + $0x20] sm:$0xff]
        %v749 = vld [vmem:[%s5 + $0x28] sm:$0xff]
        %751 = vset.pattern.permute.xlu0 0
        %752 = vperm.xlu0 %751, %v744
        %v753 = vpop.permute.xlu0 %752
        %756 = vset.pattern.permute.xlu0 0
        %757 = vperm.xlu0 %756, %v745
        %v758 = vpop.permute.xlu0 %757
        %761 = vset.pattern.permute.xlu0 0
        %762 = vperm.xlu0 %761, %v746
        %v763 = vpop.permute.xlu0 %762
        %766 = vset.pattern.permute.xlu0 0
        %767 = vperm.xlu0 %766, %v747
        %v768 = vpop.permute.xlu0 %767
        %771 = vset.pattern.permute.xlu0 0
        %772 = vperm.xlu0 %771, %v748
        %v773 = vpop.permute.xlu0 %772
        %776 = vset.pattern.permute.xlu0 0
        %777 = vperm.xlu0 %776, %v749
        %v778 = vpop.permute.xlu0 %777
        %v786 = vunpack.c.l.b16 %v738
        %v787 = vunpack.c.l.b16 %v739
        %v788 = vunpack.c.l.b16 %v740
        %v789 = vunpack.c.l.b16 %v741
        %v790 = vunpack.c.l.b16 %v742
        %v791 = vunpack.c.l.b16 %v743
        %v792 = vpack.c.b16 %v787, %v786
        %v793 = vpack.c.b16 %v789, %v788
        %v794 = vpack.c.b16 %v791, %v790
        %vm795 = vcmask 523264
        %v797 = vsel %vm795, %v792, 0
        %v800 = vsel %vm795, %v793, 0
        %v803 = vsel %vm795, %v794, 0
        %805 = vmatprep.subr.bf16.mxu0 0
        %806 = vmatpush1.bf16.msra.mxu0 %v730
        %807 = vmatprep.subr.bf16.mxu0 0
        %808 = vmatpush1.bf16.msra.mxu0 %v731
        %809 = vmatprep.subr.bf16.mxu0 0
        %810 = vmatpush1.bf16.msra.mxu0 %v732
        %811 = vmatprep.subr.bf16.mxu0 0
        %812 = vmatpush1.bf16.msra.mxu0 %v733
        %813 = vmatprep.subr.bf16.mxu0 0
        %814 = vmatpush1.bf16.msra.mxu0 0
        %815 = vmatprep.subr.bf16.mxu0 0
        %816 = vmatpush1.bf16.msra.mxu0 0
        %817 = vmatprep.subr.bf16.mxu0 0
        %818 = vmatpush1.bf16.msra.mxu0 0
        %819 = vmatprep.subr.bf16.mxu0 0
        %820 = vmatpush1.bf16.msra.mxu0 0
        %821 = vmatprep.subr.bf16.mxu0 0
        %822 = vmatpush1.bf16.msra.mxu0 0
        %823 = vmatprep.subr.bf16.mxu0 0
        %824 = vmatpush1.bf16.msra.mxu0 0
        %825 = vmatprep.subr.bf16.mxu0 0
        %826 = vmatpush1.bf16.msra.mxu0 0
        %827 = vmatprep.subr.bf16.mxu0 0
        %828 = vmatpush1.bf16.msra.mxu0 0
        %829 = vmatprep.subr.bf16.mxu0 0
        %830 = vmatpush1.bf16.msra.mxu0 0
        %831 = vmatprep.subr.bf16.mxu0 0
        %832 = vmatpush1.bf16.msra.mxu0 0
        %833 = vmatprep.subr.bf16.mxu0 0
        %834 = vmatpush1.bf16.msra.mxu0 0
        %835 = vmatprep.subr.bf16.mxu0 0
        %836 = vmatpush1.bf16.msra.mxu0 0
        %837 = vmatprep.mubr.bf16.mxu0 0
        %838 = vmatmul.mubr.bf16.gmra.mrb[0].mxu0 %v797
        %v839 = vpop.f32.mrb[0].mxu0
        %v840 = vadd.f32 %v753, %v839
        %v841 = vpop.f32.mrb[0].mxu0
        %v842 = vpop.f32.mrb[0].mxu0
        %v843 = vadd.f32 %v758, %v842
        %v844 = vpop.f32.mrb[0].mxu0
        %845 = vmatprep.mubr.bf16.mxu0 0
        %846 = vmatmul.mubr.bf16.gmra.mrb[0].mxu0 %v800
        %v847 = vpop.f32.mrb[0].mxu0
        %v848 = vadd.f32 %v763, %v847
        %v849 = vpop.f32.mrb[0].mxu0
        %v850 = vpop.f32.mrb[0].mxu0
        %v851 = vadd.f32 %v768, %v850
        %v852 = vpop.f32.mrb[0].mxu0
        %853 = vmatprep.mubr.bf16.mxu0 0
        %854 = vmatmul.mubr.bf16.gmra.mrb[0].mxu0 %v803
        %v855 = vpop.f32.mrb[0].mxu0
        %v856 = vadd.f32 %v773, %v855
        %v857 = vpop.f32.mrb[0].mxu0
        %v858 = vpop.f32.mrb[0].mxu0
        %v859 = vadd.f32 %v778, %v858
        %v860 = vpop.f32.mrb[0].mxu0
        %861 = vdwg.mxu0
        %v862 = vld [vmem:[%s6] sm:$0xf]
        %v863 = vld [vmem:[%s6 + $0x4] sm:$0xf]
        %v864 = vld [vmem:[%s6 + $0x8] sm:$0xf]
        %v865 = vld [vmem:[%s6 + $0xc] sm:$0xf]
        %v866 = vld [vmem:[%s7] sm:$0xff]
        %v867 = vld [vmem:[%s7 + $0x8] sm:$0xff]
        %v868 = vld [vmem:[%s7 + $0x10] sm:$0xff]
        %v869 = vld [vmem:[%s7 + $0x18] sm:$0xff]
        %871 = vset.pattern.permute.xlu0 0
        %872 = vperm.xlu0 %871, %v866
        %v873 = vpop.permute.xlu0 %872
        %876 = vset.pattern.permute.xlu0 0
        %877 = vperm.xlu0 %876, %v867
        %v878 = vpop.permute.xlu0 %877
        %881 = vset.pattern.permute.xlu0 0
        %882 = vperm.xlu0 %881, %v868
        %v883 = vpop.permute.xlu0 %882
        %886 = vset.pattern.permute.xlu0 0
        %887 = vperm.xlu0 %886, %v869
        %v888 = vpop.permute.xlu0 %887
        %v894 = vunpack.c.l.b16 %v862
        %v895 = vunpack.c.l.b16 %v863
        %v896 = vunpack.c.l.b16 %v864
        %v897 = vunpack.c.l.b16 %v865
        %v898 = vpack.c.b16 %v895, %v894
        %v899 = vpack.c.b16 %v897, %v896
        %v901 = vsel %vm795, %v898, 0
        %v904 = vsel %vm795, %v899, 0
        %906 = vmatprep.subr.bf16.mxu0 0
        %907 = vmatpush1.bf16.msra.mxu0 %v734
        %908 = vmatprep.subr.bf16.mxu0 0
        %909 = vmatpush1.bf16.msra.mxu0 %v735
        %910 = vmatprep.subr.bf16.mxu0 0
        %911 = vmatpush1.bf16.msra.mxu0 %v736
        %912 = vmatprep.subr.bf16.mxu0 0
        %913 = vmatpush1.bf16.msra.mxu0 %v737
        %914 = vmatprep.subr.bf16.mxu0 0
        %915 = vmatpush1.bf16.msra.mxu0 0
        %916 = vmatprep.subr.bf16.mxu0 0
        %917 = vmatpush1.bf16.msra.mxu0 0
        %918 = vmatprep.subr.bf16.mxu0 0
        %919 = vmatpush1.bf16.msra.mxu0 0
        %920 = vmatprep.subr.bf16.mxu0 0
        %921 = vmatpush1.bf16.msra.mxu0 0
        %922 = vmatprep.subr.bf16.mxu0 0
        %923 = vmatpush1.bf16.msra.mxu0 0
        %924 = vmatprep.subr.bf16.mxu0 0
        %925 = vmatpush1.bf16.msra.mxu0 0
        %926 = vmatprep.subr.bf16.mxu0 0
        %927 = vmatpush1.bf16.msra.mxu0 0
        %928 = vmatprep.subr.bf16.mxu0 0
        %929 = vmatpush1.bf16.msra.mxu0 0
        %930 = vmatprep.subr.bf16.mxu0 0
        %931 = vmatpush1.bf16.msra.mxu0 0
        %932 = vmatprep.subr.bf16.mxu0 0
        %933 = vmatpush1.bf16.msra.mxu0 0
        %934 = vmatprep.subr.bf16.mxu0 0
        %935 = vmatpush1.bf16.msra.mxu0 0
        %936 = vmatprep.subr.bf16.mxu0 0
        %937 = vmatpush1.bf16.msra.mxu0 0
        %938 = vmatprep.mubr.bf16.mxu0 0
        %939 = vmatmul.mubr.bf16.gmra.mrb[0].mxu0 %v901
        %v940 = vpop.f32.mrb[0].mxu0
        %v941 = vadd.f32 %v873, %v940
        %v942 = vpop.f32.mrb[0].mxu0
        %v943 = vpop.f32.mrb[0].mxu0
        %v944 = vadd.f32 %v878, %v943
        %v945 = vpop.f32.mrb[0].mxu0
        %946 = vmatprep.mubr.bf16.mxu0 0
        %947 = vmatmul.mubr.bf16.gmra.mrb[0].mxu0 %v904
        %v948 = vpop.f32.mrb[0].mxu0
        %v949 = vadd.f32 %v883, %v948
        %v950 = vpop.f32.mrb[0].mxu0
        %v951 = vpop.f32.mrb[0].mxu0
        %v952 = vadd.f32 %v888, %v951
        %v953 = vpop.f32.mrb[0].mxu0
        %954 = vdwg.mxu0
        %955 = vst [vmem:[%s551] sm:$0xff] %v840
        %956 = vst [vmem:[%s551 + $0x8] sm:$0xff] %v843
        %957 = vst [vmem:[%s551 + $0x10] sm:$0xff] %v848
        %958 = vst [vmem:[%s551 + $0x18] sm:$0xff] %v851
        %v959 = vpack.c.bf16 %v856, %v856
        %960 = vst [vmem:[%s569] sm:$0xf] %v959
        %v961 = vpack.c.bf16 %v859, %v859
        %s962 = scalar_lea.vmem %s569, 4 [#allocation7]
        %963 = vst [vmem:[%s962] sm:$0xf] %v961
        %964 = vxpose.xlu0.b32.start [1/16] %v941, 128
        %965 = vxpose.xlu0.b32.cont [2/16] 0.0, 128
        %966 = vxpose.xlu0.b32.cont [3/16] 0.0, 128
        %967 = vxpose.xlu0.b32.cont [4/16] 0.0, 128
        %968 = vxpose.xlu0.b32.cont [5/16] 0.0, 128
        %969 = vxpose.xlu0.b32.cont [6/16] 0.0, 128
        %970 = vxpose.xlu0.b32.cont [7/16] 0.0, 128
        %971 = vxpose.xlu0.b32.cont [8/16] 0.0, 128
        %972 = vxpose.xlu0.b32.cont [9/16] 0.0, 128
        %973 = vxpose.xlu0.b32.cont [10/16] 0.0, 128
        %974 = vxpose.xlu0.b32.cont [11/16] 0.0, 128
        %975 = vxpose.xlu0.b32.cont [12/16] 0.0, 128
        %976 = vxpose.xlu0.b32.cont [13/16] 0.0, 128
        %977 = vxpose.xlu0.b32.cont [14/16] 0.0, 128
        %978 = vxpose.xlu0.b32.cont [15/16] 0.0, 128
        %979 = vxpose.xlu0.b32.end [16/16] 0.0, 128
        %v980 = vpop.trf.xlu0
        %v981 = vpop.trf.xlu0
        %v982 = vpop.trf.xlu0
        %v983 = vpop.trf.xlu0
        %v984 = vpop.trf.xlu0
        %v985 = vpop.trf.xlu0
        %v986 = vpop.trf.xlu0
        %v987 = vpop.trf.xlu0
        %v988 = vpop.trf.xlu0
        %v989 = vpop.trf.xlu0
        %v990 = vpop.trf.xlu0
        %v991 = vpop.trf.xlu0
        %v992 = vpop.trf.xlu0
        %v993 = vpop.trf.xlu0
        %v994 = vpop.trf.xlu0
        %v995 = vpop.trf.xlu0
        %v996 = vpack.c.bf16 %v981, %v980
        %v997 = vpack.c.bf16 %v983, %v982
        %v998 = vpack.c.bf16 %v985, %v984
        %v999 = vpack.c.bf16 %v987, %v986
        %v1000 = vpack.c.bf16 %v989, %v988
        %v1001 = vpack.c.bf16 %v991, %v990
        %v1002 = vpack.c.bf16 %v993, %v992
        %v1003 = vpack.c.bf16 %v995, %v994
        %v1012 = vunpack.c.l.b16 %v996
        %v1013 = vunpack.c.h.b16 %v996
        %v1014 = vunpack.c.l.b16 %v997
        %v1015 = vunpack.c.h.b16 %v997
        %v1016 = vunpack.c.l.b16 %v998
        %v1017 = vunpack.c.h.b16 %v998
        %v1018 = vunpack.c.l.b16 %v999
        %v1019 = vunpack.c.h.b16 %v999
        %v1020 = vunpack.c.l.b16 %v1000
        %v1021 = vunpack.c.h.b16 %v1000
        %v1022 = vunpack.c.l.b16 %v1001
        %v1023 = vunpack.c.h.b16 %v1001
        %v1024 = vunpack.c.l.b16 %v1002
        %v1025 = vunpack.c.h.b16 %v1002
        %v1026 = vunpack.c.l.b16 %v1003
        %v1027 = vunpack.c.h.b16 %v1003
        %v1028 = vpack.c.b16 %v1012, %v1012
        %v1029 = vpack.c.b16 %v1013, %v1013
        %v1030 = vpack.c.b16 %v1014, %v1014
        %v1031 = vpack.c.b16 %v1015, %v1015
        %v1032 = vpack.c.b16 %v1016, %v1016
        %v1033 = vpack.c.b16 %v1017, %v1017
        %v1034 = vpack.c.b16 %v1018, %v1018
        %v1035 = vpack.c.b16 %v1019, %v1019
        %v1036 = vpack.c.b16 %v1020, %v1020
        %v1037 = vpack.c.b16 %v1021, %v1021
        %v1038 = vpack.c.b16 %v1022, %v1022
        %v1039 = vpack.c.b16 %v1023, %v1023
        %v1040 = vpack.c.b16 %v1024, %v1024
        %v1041 = vpack.c.b16 %v1025, %v1025
        %v1042 = vpack.c.b16 %v1026, %v1026
        %v1043 = vpack.c.b16 %v1027, %v1027
        %vm1060 = vcmask 60416
        %1061 = vst.msk [vmem:[%s557] sm:$0xf] %vm1060, %v1028
        %1062 = vst.msk [vmem:[%s557 + $0x4] sm:$0xf] %vm1060, %v1029
        %1063 = vst.msk [vmem:[%s557 + $0x8] sm:$0xf] %vm1060, %v1030
        %1064 = vst.msk [vmem:[%s557 + $0xc] sm:$0xf] %vm1060, %v1031
        %1065 = vst.msk [vmem:[%s557 + $0x10] sm:$0xf] %vm1060, %v1032
        %1066 = vst.msk [vmem:[%s557 + $0x14] sm:$0xf] %vm1060, %v1033
        %1067 = vst.msk [vmem:[%s557 + $0x18] sm:$0xf] %vm1060, %v1034
        %1068 = vst.msk [vmem:[%s557 + $0x1c] sm:$0xf] %vm1060, %v1035
        %1069 = vst.msk [vmem:[%s557 + $0x20] sm:$0xf] %vm1060, %v1036
        %1070 = vst.msk [vmem:[%s557 + $0x24] sm:$0xf] %vm1060, %v1037
        %1071 = vst.msk [vmem:[%s557 + $0x28] sm:$0xf] %vm1060, %v1038
        %1072 = vst.msk [vmem:[%s557 + $0x2c] sm:$0xf] %vm1060, %v1039
        %1073 = vst.msk [vmem:[%s557 + $0x30] sm:$0xf] %vm1060, %v1040
        %1074 = vst.msk [vmem:[%s557 + $0x34] sm:$0xf] %vm1060, %v1041
        %1075 = vst.msk [vmem:[%s557 + $0x38] sm:$0xf] %vm1060, %v1042
        %1076 = vst.msk [vmem:[%s557 + $0x3c] sm:$0xf] %vm1060, %v1043
        %1077 = vxpose.xlu0.b32.start [1/16] %v944, 128
        %1078 = vxpose.xlu0.b32.cont [2/16] 0.0, 128
        %1079 = vxpose.xlu0.b32.cont [3/16] 0.0, 128
        %1080 = vxpose.xlu0.b32.cont [4/16] 0.0, 128
        %1081 = vxpose.xlu0.b32.cont [5/16] 0.0, 128
        %1082 = vxpose.xlu0.b32.cont [6/16] 0.0, 128
        %1083 = vxpose.xlu0.b32.cont [7/16] 0.0, 128
        %1084 = vxpose.xlu0.b32.cont [8/16] 0.0, 128
        %1085 = vxpose.xlu0.b32.cont [9/16] 0.0, 128
        %1086 = vxpose.xlu0.b32.cont [10/16] 0.0, 128
        %1087 = vxpose.xlu0.b32.cont [11/16] 0.0, 128
        %1088 = vxpose.xlu0.b32.cont [12/16] 0.0, 128
        %1089 = vxpose.xlu0.b32.cont [13/16] 0.0, 128
        %1090 = vxpose.xlu0.b32.cont [14/16] 0.0, 128
        %1091 = vxpose.xlu0.b32.cont [15/16] 0.0, 128
        %1092 = vxpose.xlu0.b32.end [16/16] 0.0, 128
        %v1093 = vpop.trf.xlu0
        %v1094 = vpop.trf.xlu0
        %v1095 = vpop.trf.xlu0
        %v1096 = vpop.trf.xlu0
        %v1097 = vpop.trf.xlu0
        %v1098 = vpop.trf.xlu0
        %v1099 = vpop.trf.xlu0
        %v1100 = vpop.trf.xlu0
        %v1101 = vpop.trf.xlu0
        %v1102 = vpop.trf.xlu0
        %v1103 = vpop.trf.xlu0
        %v1104 = vpop.trf.xlu0
        %v1105 = vpop.trf.xlu0
        %v1106 = vpop.trf.xlu0
        %v1107 = vpop.trf.xlu0
        %v1108 = vpop.trf.xlu0
        %v1109 = vpack.c.bf16 %v1094, %v1093
        %v1110 = vpack.c.bf16 %v1096, %v1095
        %v1111 = vpack.c.bf16 %v1098, %v1097
        %v1112 = vpack.c.bf16 %v1100, %v1099
        %v1113 = vpack.c.bf16 %v1102, %v1101
        %v1114 = vpack.c.bf16 %v1104, %v1103
        %v1115 = vpack.c.bf16 %v1106, %v1105
        %v1116 = vpack.c.bf16 %v1108, %v1107
        %v1125 = vunpack.c.l.b16 %v1109
        %v1126 = vunpack.c.h.b16 %v1109
        %v1127 = vunpack.c.l.b16 %v1110
        %v1128 = vunpack.c.h.b16 %v1110
        %v1129 = vunpack.c.l.b16 %v1111
        %v1130 = vunpack.c.h.b16 %v1111
        %v1131 = vunpack.c.l.b16 %v1112
        %v1132 = vunpack.c.h.b16 %v1112
        %v1133 = vunpack.c.l.b16 %v1113
        %v1134 = vunpack.c.h.b16 %v1113
        %v1135 = vunpack.c.l.b16 %v1114
        %v1136 = vunpack.c.h.b16 %v1114
        %v1137 = vunpack.c.l.b16 %v1115
        %v1138 = vunpack.c.h.b16 %v1115
        %v1139 = vunpack.c.l.b16 %v1116
        %v1140 = vunpack.c.h.b16 %v1116
        %v1141 = vpack.c.b16 %v1125, %v1125
        %v1142 = vpack.c.b16 %v1126, %v1126
        %v1143 = vpack.c.b16 %v1127, %v1127
        %v1144 = vpack.c.b16 %v1128, %v1128
        %v1145 = vpack.c.b16 %v1129, %v1129
        %v1146 = vpack.c.b16 %v1130, %v1130
        %v1147 = vpack.c.b16 %v1131, %v1131
        %v1148 = vpack.c.b16 %v1132, %v1132
        %v1149 = vpack.c.b16 %v1133, %v1133
        %v1150 = vpack.c.b16 %v1134, %v1134
        %v1151 = vpack.c.b16 %v1135, %v1135
        %v1152 = vpack.c.b16 %v1136, %v1136
        %v1153 = vpack.c.b16 %v1137, %v1137
        %v1154 = vpack.c.b16 %v1138, %v1138
        %v1155 = vpack.c.b16 %v1139, %v1139
        %v1156 = vpack.c.b16 %v1140, %v1140
        %s1173 = scalar_lea.vmem %s557, 64 [#allocation5]
        %1174 = vst.msk [vmem:[%s1173] sm:$0xf] %vm1060, %v1141
        %1175 = vst.msk [vmem:[%s1173 + $0x4] sm:$0xf] %vm1060, %v1142
        %1176 = vst.msk [vmem:[%s1173 + $0x8] sm:$0xf] %vm1060, %v1143
        %1177 = vst.msk [vmem:[%s1173 + $0xc] sm:$0xf] %vm1060, %v1144
        %1178 = vst.msk [vmem:[%s1173 + $0x10] sm:$0xf] %vm1060, %v1145
        %1179 = vst.msk [vmem:[%s1173 + $0x14] sm:$0xf] %vm1060, %v1146
        %1180 = vst.msk [vmem:[%s1173 + $0x18] sm:$0xf] %vm1060, %v1147
        %1181 = vst.msk [vmem:[%s1173 + $0x1c] sm:$0xf] %vm1060, %v1148
        %1182 = vst.msk [vmem:[%s1173 + $0x20] sm:$0xf] %vm1060, %v1149
        %1183 = vst.msk [vmem:[%s1173 + $0x24] sm:$0xf] %vm1060, %v1150
        %1184 = vst.msk [vmem:[%s1173 + $0x28] sm:$0xf] %vm1060, %v1151
        %1185 = vst.msk [vmem:[%s1173 + $0x2c] sm:$0xf] %vm1060, %v1152
        %1186 = vst.msk [vmem:[%s1173 + $0x30] sm:$0xf] %vm1060, %v1153
        %1187 = vst.msk [vmem:[%s1173 + $0x34] sm:$0xf] %vm1060, %v1154
        %1188 = vst.msk [vmem:[%s1173 + $0x38] sm:$0xf] %vm1060, %v1155
        %1189 = vst.msk [vmem:[%s1173 + $0x3c] sm:$0xf] %vm1060, %v1156
        %v1190 = vpack.c.bf16 %v949, %v949
        %1191 = vst [vmem:[%s563] sm:$0xf] %v1190
        %v1192 = vpack.c.bf16 %v952, %v952
        %s1193 = scalar_lea.vmem %s563, 4 [#allocation6]
        %1194 = vst [vmem:[%s1193] sm:$0xf] %v1192
        %s1195 = sand.u32 %s237, 1
        %s1196 = sand.u32 %s237, 1
        %s1197 = smul.addr %s1196, 32
        %s1198 = scalar_lea.vmem [#allocation4], %s1197
        %s1199 = sand.u32 %s265, 1
        %s1200 = sand.u32 %s265, 1
        %s1201 = smul.addr %s1200, 128
        %s1202 = scalar_lea.vmem [#allocation5], %s1201
        %s1203 = sand.u32 %s293, 1
        %s1204 = sand.u32 %s293, 1
        %s1205 = smul.addr %s1204, 8
        %s1206 = scalar_lea.vmem [#allocation6], %s1205
        %s1207 = sand.u32 %s321, 1
        %s1208 = sand.u32 %s321, 1
        %s1209 = smul.addr %s1208, 8
        %s1210 = scalar_lea.vmem [#allocation7], %s1209
        // Predicated region
        $region129: #{scc_module_forward.2} parent=119 // pred_check
          %p1211 = pneg %p247
        $region130: #{scc_module_forward.2} parent=119 // pred_check_branch
          %1213 = sbr.rel (%p1211) target = $region132
        $region131: #{scc_module_forward.2} parent=119 // pred_region
          %s1214 = smul.addr %s27, 8
          %s1215 = sadd.s32 %s28, %s1214
          %s1216 = smul.addr %s1215, 8
          %s1217 = scalar_lea.vmem %s8, %s1216
          // Predicated region
          $region133: #{scc_module_forward.2} parent=131 // pred_check
            _
          $region134: #{scc_module_forward.2} parent=131 // pred_check_branch
            %1219 = sbr.rel (0) target = $region136
          $region135: #{scc_module_forward.2} parent=131 // pred_region
            // Predicated region
            $region137: #{scc_module_forward.2} parent=135 // pred_check
              _
            $region138: #{scc_module_forward.2} parent=135 // pred_check_branch
              %1221 = sbr.rel (0) target = $region140
            $region139: #{scc_module_forward.2} parent=135 // pred_region
              // Predicated region
              $region152: #{scc_module_forward.2} parent=139 // pred_check
                _
              $region153: #{scc_module_forward.2} parent=139 // pred_check_branch
                %1242 = sbr.rel (0) target = $region155
              $region154: #{scc_module_forward.2} parent=139 // pred_region
                loop: start=0, step=1, limit=1
                $region156: #{scc_module_forward.2} parent=154 // loop_pre_header
                  _
                $region157: #{scc_module_forward.2} parent=154 // loop_header
                  %s1244 = sphi 0, %s1248
                  %p1245 = scmp.ge.s32.totalorder %s1244, 1
                  %s1249 = sphi %s1198, %s1198
                  %s1250 = sphi %s1217, %s1217
                $region158: #{scc_module_forward.2} parent=154 // loop_header_branch
                  %1247 = sbr.rel (%p1245) target = $region162
                $region159: #{scc_module_forward.2} parent=154 // loop_body
                  %v1251 = vld [vmem:[%s1249] sm:$0xff]
                  %1252 = vst [vmem:[%s1250] sm:$0xff] %v1251
                  %v1253 = vld [vmem:[%s1249 + $0x8] sm:$0xff]
                  %1254 = vst [vmem:[%s1250 + $0x10] sm:$0xff] %v1253
                  %v1255 = vld [vmem:[%s1249 + $0x10] sm:$0xff]
                  %1256 = vst [vmem:[%s1250 + $0x20] sm:$0xff] %v1255
                  %v1257 = vld [vmem:[%s1249 + $0x18] sm:$0xff]
                  %1258 = vst [vmem:[%s1250 + $0x30] sm:$0xff] %v1257
                $region160: #{scc_module_forward.2} parent=154 // loop_footer
                  %s1248 = sadd.s32 1, %s1244
                $region161: #{scc_module_forward.2} parent=154 // loop_footer_branch
                  %1243 = sbr.rel target = $region157
                $region162: #{scc_module_forward.2} parent=154 // loop_exit
                  _
              $region155: #{scc_module_forward.2} parent=139 // pred_fallthru
                _
              // Predicated region
              $region163: #{scc_module_forward.2} parent=139 // pred_check
                _
              $region164: #{scc_module_forward.2} parent=139 // pred_check_branch
                %1260 = sbr.rel target = $region166
              $region165: #{scc_module_forward.2} parent=139 // pred_region
                _
              $region166: #{scc_module_forward.2} parent=139 // pred_fallthru
                _
            $region140: #{scc_module_forward.2} parent=135 // pred_fallthru
              _
            // Predicated region
            $region141: #{scc_module_forward.2} parent=135 // pred_check
              _
            $region142: #{scc_module_forward.2} parent=135 // pred_check_branch
              %1223 = sbr.rel target = $region144
            $region143: #{scc_module_forward.2} parent=135 // pred_region
              loop: start=0, step=1, limit=1
              $region145: #{scc_module_forward.2} parent=143 // loop_pre_header
                _
              $region146: #{scc_module_forward.2} parent=143 // loop_header
                %s1226 = sphi 0, %s1230
                %p1227 = scmp.ge.s32.totalorder %s1226, 1
                %s1231 = sphi %s1198, %s1198
                %s1232 = sphi %s1217, %s1217
              $region147: #{scc_module_forward.2} parent=143 // loop_header_branch
                %1229 = sbr.rel (%p1227) target = $region151
              $region148: #{scc_module_forward.2} parent=143 // loop_body
                %v1233 = vld [vmem:[%s1231] sm:$0xff]
                %1234 = vst [vmem:[%s1232] sm:$0xff] %v1233
                %v1235 = vld [vmem:[%s1231 + $0x8] sm:$0xff]
                %1236 = vst [vmem:[%s1232 + $0x10] sm:$0xff] %v1235
                %v1237 = vld [vmem:[%s1231 + $0x10] sm:$0xff]
                %1238 = vst [vmem:[%s1232 + $0x20] sm:$0xff] %v1237
                %v1239 = vld [vmem:[%s1231 + $0x18] sm:$0xff]
                %1240 = vst [vmem:[%s1232 + $0x30] sm:$0xff] %v1239
              $region149: #{scc_module_forward.2} parent=143 // loop_footer
                %s1230 = sadd.s32 1, %s1226
              $region150: #{scc_module_forward.2} parent=143 // loop_footer_branch
                %1225 = sbr.rel target = $region146
              $region151: #{scc_module_forward.2} parent=143 // loop_exit
                _
            $region144: #{scc_module_forward.2} parent=135 // pred_fallthru
              _
          $region136: #{scc_module_forward.2} parent=131 // pred_fallthru
            _
          %1261 = vnop
        $region132: #{scc_module_forward.2} parent=119 // pred_fallthru
          _
        // Predicated region
        $region167: #{scc_module_forward.2} parent=119 // pred_check
          %p1262 = pneg %p275
        $region168: #{scc_module_forward.2} parent=119 // pred_check_branch
          %1264 = sbr.rel (%p1262) target = $region170
        $region169: #{scc_module_forward.2} parent=119 // pred_region
          %s1265 = smul.u32 16, %s28
          %s1266 = smul.addr %s27, 64
          %s1267 = sadd.s32 %s1265, %s1266
          %s1268 = smul.addr %s1267, 4
          %s1269 = scalar_lea.vmem %s9, %s1268
          // Predicated region
          $region171: #{scc_module_forward.2} parent=169 // pred_check
            _
          $region172: #{scc_module_forward.2} parent=169 // pred_check_branch
            %1271 = sbr.rel (0) target = $region174
          $region173: #{scc_module_forward.2} parent=169 // pred_region
            // Predicated region
            $region175: #{scc_module_forward.2} parent=173 // pred_check
              _
            $region176: #{scc_module_forward.2} parent=173 // pred_check_branch
              %1273 = sbr.rel target = $region178
            $region177: #{scc_module_forward.2} parent=173 // pred_region
              // Predicated region
              $region190: #{scc_module_forward.2} parent=177 // pred_check
                _
              $region191: #{scc_module_forward.2} parent=177 // pred_check_branch
                %1350 = sbr.rel (0) target = $region193
              $region192: #{scc_module_forward.2} parent=177 // pred_region
                loop: start=0, step=1, limit=1
                $region194: #{scc_module_forward.2} parent=192 // loop_pre_header
                  _
                $region195: #{scc_module_forward.2} parent=192 // loop_header
                  %s1352 = sphi 0, %s1356
                  %p1353 = scmp.ge.s32.totalorder %s1352, 1
                  %s1357 = sphi %s1202, %s1202
                  %s1358 = sphi %s1269, %s1269
                $region196: #{scc_module_forward.2} parent=192 // loop_header_branch
                  %1355 = sbr.rel (%p1353) target = $region200
                $region197: #{scc_module_forward.2} parent=192 // loop_body
                  _
                $region198: #{scc_module_forward.2} parent=192 // loop_footer
                  %s1356 = sadd.s32 1, %s1352
                $region199: #{scc_module_forward.2} parent=192 // loop_footer_branch
                  %1351 = sbr.rel target = $region195
                $region200: #{scc_module_forward.2} parent=192 // loop_exit
                  _
                loop: start=0, step=1, limit=1
                $region201: #{scc_module_forward.2} parent=192 // loop_pre_header
                  _
                $region202: #{scc_module_forward.2} parent=192 // loop_header
                  %s1361 = sphi 0, %s1365
                  %p1362 = scmp.ge.s32.totalorder %s1361, 1
                  %s1366 = sphi %s1202, %s1202
                  %s1367 = sphi %s1269, %s1269
                $region203: #{scc_module_forward.2} parent=192 // loop_header_branch
                  %1364 = sbr.rel (%p1362) target = $region207
                $region204: #{scc_module_forward.2} parent=192 // loop_body
                  %v1368 = vld [vmem:[%s1366] sm:$0xf]
                  %1369 = vst [vmem:[%s1367] sm:$0xf] %v1368
                  %v1370 = vld [vmem:[%s1366 + $0x4] sm:$0xf]
                  %1371 = vst [vmem:[%s1367 + $0x4] sm:$0xf] %v1370
                  %v1372 = vld [vmem:[%s1366 + $0x8] sm:$0xf]
                  %1373 = vst [vmem:[%s1367 + $0x8] sm:$0xf] %v1372
                  %v1374 = vld [vmem:[%s1366 + $0xc] sm:$0xf]
                  %1375 = vst [vmem:[%s1367 + $0xc] sm:$0xf] %v1374
                  %v1376 = vld [vmem:[%s1366 + $0x10] sm:$0xf]
                  %1377 = vst [vmem:[%s1367 + $0x10] sm:$0xf] %v1376
                  %v1378 = vld [vmem:[%s1366 + $0x14] sm:$0xf]
                  %1379 = vst [vmem:[%s1367 + $0x14] sm:$0xf] %v1378
                  %v1380 = vld [vmem:[%s1366 + $0x18] sm:$0xf]
                  %1381 = vst [vmem:[%s1367 + $0x18] sm:$0xf] %v1380
                  %v1382 = vld [vmem:[%s1366 + $0x1c] sm:$0xf]
                  %1383 = vst [vmem:[%s1367 + $0x1c] sm:$0xf] %v1382
                  %v1384 = vld [vmem:[%s1366 + $0x20] sm:$0xf]
                  %1385 = vst [vmem:[%s1367 + $0x20] sm:$0xf] %v1384
                  %v1386 = vld [vmem:[%s1366 + $0x24] sm:$0xf]
                  %1387 = vst [vmem:[%s1367 + $0x24] sm:$0xf] %v1386
                  %v1388 = vld [vmem:[%s1366 + $0x28] sm:$0xf]
                  %1389 = vst [vmem:[%s1367 + $0x28] sm:$0xf] %v1388
                  %v1390 = vld [vmem:[%s1366 + $0x2c] sm:$0xf]
                  %1391 = vst [vmem:[%s1367 + $0x2c] sm:$0xf] %v1390
                  %v1392 = vld [vmem:[%s1366 + $0x30] sm:$0xf]
                  %1393 = vst [vmem:[%s1367 + $0x30] sm:$0xf] %v1392
                  %v1394 = vld [vmem:[%s1366 + $0x34] sm:$0xf]
                  %1395 = vst [vmem:[%s1367 + $0x34] sm:$0xf] %v1394
                  %v1396 = vld [vmem:[%s1366 + $0x38] sm:$0xf]
                  %1397 = vst [vmem:[%s1367 + $0x38] sm:$0xf] %v1396
                  %v1398 = vld [vmem:[%s1366 + $0x3c] sm:$0xf]
                  %1399 = vst [vmem:[%s1367 + $0x3c] sm:$0xf] %v1398
                  %v1400 = vld [vmem:[%s1366 + $0x40] sm:$0xf]
                  %1401 = vst [vmem:[%s1367 + $0x80] sm:$0xf] %v1400
                  %v1402 = vld [vmem:[%s1366 + $0x44] sm:$0xf]
                  %1403 = vst [vmem:[%s1367 + $0x84] sm:$0xf] %v1402
                  %v1404 = vld [vmem:[%s1366 + $0x48] sm:$0xf]
                  %1405 = vst [vmem:[%s1367 + $0x88] sm:$0xf] %v1404
                  %v1406 = vld [vmem:[%s1366 + $0x4c] sm:$0xf]
                  %1407 = vst [vmem:[%s1367 + $0x8c] sm:$0xf] %v1406
                  %v1408 = vld [vmem:[%s1366 + $0x50] sm:$0xf]
                  %1409 = vst [vmem:[%s1367 + $0x90] sm:$0xf] %v1408
                  %v1410 = vld [vmem:[%s1366 + $0x54] sm:$0xf]
                  %1411 = vst [vmem:[%s1367 + $0x94] sm:$0xf] %v1410
                  %v1412 = vld [vmem:[%s1366 + $0x58] sm:$0xf]
                  %1413 = vst [vmem:[%s1367 + $0x98] sm:$0xf] %v1412
                  %v1414 = vld [vmem:[%s1366 + $0x5c] sm:$0xf]
                  %1415 = vst [vmem:[%s1367 + $0x9c] sm:$0xf] %v1414
                  %v1416 = vld [vmem:[%s1366 + $0x60] sm:$0xf]
                  %1417 = vst [vmem:[%s1367 + $0xa0] sm:$0xf] %v1416
                  %v1418 = vld [vmem:[%s1366 + $0x64] sm:$0xf]
                  %1419 = vst [vmem:[%s1367 + $0xa4] sm:$0xf] %v1418
                  %v1420 = vld [vmem:[%s1366 + $0x68] sm:$0xf]
                  %1421 = vst [vmem:[%s1367 + $0xa8] sm:$0xf] %v1420
                  %v1422 = vld [vmem:[%s1366 + $0x6c] sm:$0xf]
                  %1423 = vst [vmem:[%s1367 + $0xac] sm:$0xf] %v1422
                  %v1424 = vld [vmem:[%s1366 + $0x70] sm:$0xf]
                  %1425 = vst [vmem:[%s1367 + $0xb0] sm:$0xf] %v1424
                  %v1426 = vld [vmem:[%s1366 + $0x74] sm:$0xf]
                  %1427 = vst [vmem:[%s1367 + $0xb4] sm:$0xf] %v1426
                  %v1428 = vld [vmem:[%s1366 + $0x78] sm:$0xf]
                  %1429 = vst [vmem:[%s1367 + $0xb8] sm:$0xf] %v1428
                  %v1430 = vld [vmem:[%s1366 + $0x7c] sm:$0xf]
                  %1431 = vst [vmem:[%s1367 + $0xbc] sm:$0xf] %v1430
                $region205: #{scc_module_forward.2} parent=192 // loop_footer
                  %s1365 = sadd.s32 1, %s1361
                $region206: #{scc_module_forward.2} parent=192 // loop_footer_branch
                  %1360 = sbr.rel target = $region202
                $region207: #{scc_module_forward.2} parent=192 // loop_exit
                  _
              $region193: #{scc_module_forward.2} parent=177 // pred_fallthru
                _
            $region178: #{scc_module_forward.2} parent=173 // pred_fallthru
              _
            // Predicated region
            $region179: #{scc_module_forward.2} parent=173 // pred_check
              _
            $region180: #{scc_module_forward.2} parent=173 // pred_check_branch
              %1275 = sbr.rel (0) target = $region182
            $region181: #{scc_module_forward.2} parent=173 // pred_region
              loop: start=0, step=1, limit=1
              $region183: #{scc_module_forward.2} parent=181 // loop_pre_header
                _
              $region184: #{scc_module_forward.2} parent=181 // loop_header
                %s1278 = sphi 0, %s1282
                %p1279 = scmp.ge.s32.totalorder %s1278, 1
                %s1283 = sphi %s1202, %s1202
                %s1284 = sphi %s1269, %s1269
              $region185: #{scc_module_forward.2} parent=181 // loop_header_branch
                %1281 = sbr.rel (%p1279) target = $region189
              $region186: #{scc_module_forward.2} parent=181 // loop_body
                %v1285 = vld [vmem:[%s1283] sm:$0xf]
                %1286 = vst [vmem:[%s1284] sm:$0xf] %v1285
                %v1287 = vld [vmem:[%s1283 + $0x4] sm:$0xf]
                %1288 = vst [vmem:[%s1284 + $0x4] sm:$0xf] %v1287
                %v1289 = vld [vmem:[%s1283 + $0x8] sm:$0xf]
                %1290 = vst [vmem:[%s1284 + $0x8] sm:$0xf] %v1289
                %v1291 = vld [vmem:[%s1283 + $0xc] sm:$0xf]
                %1292 = vst [vmem:[%s1284 + $0xc] sm:$0xf] %v1291
                %v1293 = vld [vmem:[%s1283 + $0x10] sm:$0xf]
                %1294 = vst [vmem:[%s1284 + $0x10] sm:$0xf] %v1293
                %v1295 = vld [vmem:[%s1283 + $0x14] sm:$0xf]
                %1296 = vst [vmem:[%s1284 + $0x14] sm:$0xf] %v1295
                %v1297 = vld [vmem:[%s1283 + $0x18] sm:$0xf]
                %1298 = vst [vmem:[%s1284 + $0x18] sm:$0xf] %v1297
                %v1299 = vld [vmem:[%s1283 + $0x1c] sm:$0xf]
                %1300 = vst [vmem:[%s1284 + $0x1c] sm:$0xf] %v1299
                %v1301 = vld [vmem:[%s1283 + $0x20] sm:$0xf]
                %1302 = vst [vmem:[%s1284 + $0x20] sm:$0xf] %v1301
                %v1303 = vld [vmem:[%s1283 + $0x24] sm:$0xf]
                %1304 = vst [vmem:[%s1284 + $0x24] sm:$0xf] %v1303
                %v1305 = vld [vmem:[%s1283 + $0x28] sm:$0xf]
                %1306 = vst [vmem:[%s1284 + $0x28] sm:$0xf] %v1305
                %v1307 = vld [vmem:[%s1283 + $0x2c] sm:$0xf]
                %1308 = vst [vmem:[%s1284 + $0x2c] sm:$0xf] %v1307
                %v1309 = vld [vmem:[%s1283 + $0x30] sm:$0xf]
                %1310 = vst [vmem:[%s1284 + $0x30] sm:$0xf] %v1309
                %v1311 = vld [vmem:[%s1283 + $0x34] sm:$0xf]
                %1312 = vst [vmem:[%s1284 + $0x34] sm:$0xf] %v1311
                %v1313 = vld [vmem:[%s1283 + $0x38] sm:$0xf]
                %1314 = vst [vmem:[%s1284 + $0x38] sm:$0xf] %v1313
                %v1315 = vld [vmem:[%s1283 + $0x3c] sm:$0xf]
                %1316 = vst [vmem:[%s1284 + $0x3c] sm:$0xf] %v1315
                %v1317 = vld [vmem:[%s1283 + $0x40] sm:$0xf]
                %1318 = vst [vmem:[%s1284 + $0x80] sm:$0xf] %v1317
                %v1319 = vld [vmem:[%s1283 + $0x44] sm:$0xf]
                %1320 = vst [vmem:[%s1284 + $0x84] sm:$0xf] %v1319
                %v1321 = vld [vmem:[%s1283 + $0x48] sm:$0xf]
                %1322 = vst [vmem:[%s1284 + $0x88] sm:$0xf] %v1321
                %v1323 = vld [vmem:[%s1283 + $0x4c] sm:$0xf]
                %1324 = vst [vmem:[%s1284 + $0x8c] sm:$0xf] %v1323
                %v1325 = vld [vmem:[%s1283 + $0x50] sm:$0xf]
                %1326 = vst [vmem:[%s1284 + $0x90] sm:$0xf] %v1325
                %v1327 = vld [vmem:[%s1283 + $0x54] sm:$0xf]
                %1328 = vst [vmem:[%s1284 + $0x94] sm:$0xf] %v1327
                %v1329 = vld [vmem:[%s1283 + $0x58] sm:$0xf]
                %1330 = vst [vmem:[%s1284 + $0x98] sm:$0xf] %v1329
                %v1331 = vld [vmem:[%s1283 + $0x5c] sm:$0xf]
                %1332 = vst [vmem:[%s1284 + $0x9c] sm:$0xf] %v1331
                %v1333 = vld [vmem:[%s1283 + $0x60] sm:$0xf]
                %1334 = vst [vmem:[%s1284 + $0xa0] sm:$0xf] %v1333
                %v1335 = vld [vmem:[%s1283 + $0x64] sm:$0xf]
                %1336 = vst [vmem:[%s1284 + $0xa4] sm:$0xf] %v1335
                %v1337 = vld [vmem:[%s1283 + $0x68] sm:$0xf]
                %1338 = vst [vmem:[%s1284 + $0xa8] sm:$0xf] %v1337
                %v1339 = vld [vmem:[%s1283 + $0x6c] sm:$0xf]
                %1340 = vst [vmem:[%s1284 + $0xac] sm:$0xf] %v1339
                %v1341 = vld [vmem:[%s1283 + $0x70] sm:$0xf]
                %1342 = vst [vmem:[%s1284 + $0xb0] sm:$0xf] %v1341
                %v1343 = vld [vmem:[%s1283 + $0x74] sm:$0xf]
                %1344 = vst [vmem:[%s1284 + $0xb4] sm:$0xf] %v1343
                %v1345 = vld [vmem:[%s1283 + $0x78] sm:$0xf]
                %1346 = vst [vmem:[%s1284 + $0xb8] sm:$0xf] %v1345
                %v1347 = vld [vmem:[%s1283 + $0x7c] sm:$0xf]
                %1348 = vst [vmem:[%s1284 + $0xbc] sm:$0xf] %v1347
              $region187: #{scc_module_forward.2} parent=181 // loop_footer
                %s1282 = sadd.s32 1, %s1278
              $region188: #{scc_module_forward.2} parent=181 // loop_footer_branch
                %1277 = sbr.rel target = $region184
              $region189: #{scc_module_forward.2} parent=181 // loop_exit
                _
            $region182: #{scc_module_forward.2} parent=173 // pred_fallthru
              _
          $region174: #{scc_module_forward.2} parent=169 // pred_fallthru
            _
          %1432 = vnop
        $region170: #{scc_module_forward.2} parent=119 // pred_fallthru
          _
        // Predicated region
        $region208: #{scc_module_forward.2} parent=119 // pred_check
          %p1433 = pneg %p303
        $region209: #{scc_module_forward.2} parent=119 // pred_check_branch
          %1435 = sbr.rel (%p1433) target = $region211
        $region210: #{scc_module_forward.2} parent=119 // pred_region
          %s1436 = smul.addr %s27, 4
          %s1437 = sadd.s32 %s28, %s1436
          %s1438 = smul.addr %s1437, 4
          %s1439 = scalar_lea.vmem %s10, %s1438
          // Predicated region
          $region212: #{scc_module_forward.2} parent=210 // pred_check
            _
          $region213: #{scc_module_forward.2} parent=210 // pred_check_branch
            %1441 = sbr.rel (0) target = $region215
          $region214: #{scc_module_forward.2} parent=210 // pred_region
            // Predicated region
            $region216: #{scc_module_forward.2} parent=214 // pred_check
              _
            $region217: #{scc_module_forward.2} parent=214 // pred_check_branch
              %1443 = sbr.rel target = $region219
            $region218: #{scc_module_forward.2} parent=214 // pred_region
              // Predicated region
              $region231: #{scc_module_forward.2} parent=218 // pred_check
                _
              $region232: #{scc_module_forward.2} parent=218 // pred_check_branch
                %1460 = sbr.rel (0) target = $region234
              $region233: #{scc_module_forward.2} parent=218 // pred_region
                loop: start=0, step=1, limit=1
                $region235: #{scc_module_forward.2} parent=233 // loop_pre_header
                  _
                $region236: #{scc_module_forward.2} parent=233 // loop_header
                  %s1462 = sphi 0, %s1466
                  %p1463 = scmp.ge.s32.totalorder %s1462, 1
                  %s1467 = sphi %s1206, %s1206
                  %s1468 = sphi %s1439, %s1439
                $region237: #{scc_module_forward.2} parent=233 // loop_header_branch
                  %1465 = sbr.rel (%p1463) target = $region241
                $region238: #{scc_module_forward.2} parent=233 // loop_body
                  _
                $region239: #{scc_module_forward.2} parent=233 // loop_footer
                  %s1466 = sadd.s32 1, %s1462
                $region240: #{scc_module_forward.2} parent=233 // loop_footer_branch
                  %1461 = sbr.rel target = $region236
                $region241: #{scc_module_forward.2} parent=233 // loop_exit
                  _
                loop: start=0, step=1, limit=1
                $region242: #{scc_module_forward.2} parent=233 // loop_pre_header
                  _
                $region243: #{scc_module_forward.2} parent=233 // loop_header
                  %s1471 = sphi 0, %s1475
                  %p1472 = scmp.ge.s32.totalorder %s1471, 1
                  %s1476 = sphi %s1206, %s1206
                  %s1477 = sphi %s1439, %s1439
                $region244: #{scc_module_forward.2} parent=233 // loop_header_branch
                  %1474 = sbr.rel (%p1472) target = $region248
                $region245: #{scc_module_forward.2} parent=233 // loop_body
                  %v1478 = vld [vmem:[%s1476] sm:$0xf]
                  %1479 = vst [vmem:[%s1477] sm:$0xf] %v1478
                  %v1480 = vld [vmem:[%s1476 + $0x4] sm:$0xf]
                  %1481 = vst [vmem:[%s1477 + $0x8] sm:$0xf] %v1480
                $region246: #{scc_module_forward.2} parent=233 // loop_footer
                  %s1475 = sadd.s32 1, %s1471
                $region247: #{scc_module_forward.2} parent=233 // loop_footer_branch
                  %1470 = sbr.rel target = $region243
                $region248: #{scc_module_forward.2} parent=233 // loop_exit
                  _
              $region234: #{scc_module_forward.2} parent=218 // pred_fallthru
                _
            $region219: #{scc_module_forward.2} parent=214 // pred_fallthru
              _
            // Predicated region
            $region220: #{scc_module_forward.2} parent=214 // pred_check
              _
            $region221: #{scc_module_forward.2} parent=214 // pred_check_branch
              %1445 = sbr.rel (0) target = $region223
            $region222: #{scc_module_forward.2} parent=214 // pred_region
              loop: start=0, step=1, limit=1
              $region224: #{scc_module_forward.2} parent=222 // loop_pre_header
                _
              $region225: #{scc_module_forward.2} parent=222 // loop_header
                %s1448 = sphi 0, %s1452
                %p1449 = scmp.ge.s32.totalorder %s1448, 1
                %s1453 = sphi %s1206, %s1206
                %s1454 = sphi %s1439, %s1439
              $region226: #{scc_module_forward.2} parent=222 // loop_header_branch
                %1451 = sbr.rel (%p1449) target = $region230
              $region227: #{scc_module_forward.2} parent=222 // loop_body
                %v1455 = vld [vmem:[%s1453] sm:$0xf]
                %1456 = vst [vmem:[%s1454] sm:$0xf] %v1455
                %v1457 = vld [vmem:[%s1453 + $0x4] sm:$0xf]
                %1458 = vst [vmem:[%s1454 + $0x8] sm:$0xf] %v1457
              $region228: #{scc_module_forward.2} parent=222 // loop_footer
                %s1452 = sadd.s32 1, %s1448
              $region229: #{scc_module_forward.2} parent=222 // loop_footer_branch
                %1447 = sbr.rel target = $region225
              $region230: #{scc_module_forward.2} parent=222 // loop_exit
                _
            $region223: #{scc_module_forward.2} parent=214 // pred_fallthru
              _
          $region215: #{scc_module_forward.2} parent=210 // pred_fallthru
            _
          %1482 = vnop
        $region211: #{scc_module_forward.2} parent=119 // pred_fallthru
          _
        // Predicated region
        $region249: #{scc_module_forward.2} parent=119 // pred_check
          %p1483 = pneg %p331
        $region250: #{scc_module_forward.2} parent=119 // pred_check_branch
          %1485 = sbr.rel (%p1483) target = $region252
        $region251: #{scc_module_forward.2} parent=119 // pred_region
          %s1486 = smul.addr %s27, 4
          %s1487 = sadd.s32 %s28, %s1486
          %s1488 = smul.addr %s1487, 4
          %s1489 = scalar_lea.vmem %s11, %s1488
          // Predicated region
          $region253: #{scc_module_forward.2} parent=251 // pred_check
            _
          $region254: #{scc_module_forward.2} parent=251 // pred_check_branch
            %1491 = sbr.rel (0) target = $region256
          $region255: #{scc_module_forward.2} parent=251 // pred_region
            // Predicated region
            $region257: #{scc_module_forward.2} parent=255 // pred_check
              _
            $region258: #{scc_module_forward.2} parent=255 // pred_check_branch
              %1493 = sbr.rel target = $region260
            $region259: #{scc_module_forward.2} parent=255 // pred_region
              // Predicated region
              $region272: #{scc_module_forward.2} parent=259 // pred_check
                _
              $region273: #{scc_module_forward.2} parent=259 // pred_check_branch
                %1510 = sbr.rel (0) target = $region275
              $region274: #{scc_module_forward.2} parent=259 // pred_region
                loop: start=0, step=1, limit=1
                $region276: #{scc_module_forward.2} parent=274 // loop_pre_header
                  _
                $region277: #{scc_module_forward.2} parent=274 // loop_header
                  %s1512 = sphi 0, %s1516
                  %p1513 = scmp.ge.s32.totalorder %s1512, 1
                  %s1517 = sphi %s1210, %s1210
                  %s1518 = sphi %s1489, %s1489
                $region278: #{scc_module_forward.2} parent=274 // loop_header_branch
                  %1515 = sbr.rel (%p1513) target = $region282
                $region279: #{scc_module_forward.2} parent=274 // loop_body
                  _
                $region280: #{scc_module_forward.2} parent=274 // loop_footer
                  %s1516 = sadd.s32 1, %s1512
                $region281: #{scc_module_forward.2} parent=274 // loop_footer_branch
                  %1511 = sbr.rel target = $region277
                $region282: #{scc_module_forward.2} parent=274 // loop_exit
                  _
                loop: start=0, step=1, limit=1
                $region283: #{scc_module_forward.2} parent=274 // loop_pre_header
                  _
                $region284: #{scc_module_forward.2} parent=274 // loop_header
                  %s1521 = sphi 0, %s1525
                  %p1522 = scmp.ge.s32.totalorder %s1521, 1
                  %s1526 = sphi %s1210, %s1210
                  %s1527 = sphi %s1489, %s1489
                $region285: #{scc_module_forward.2} parent=274 // loop_header_branch
                  %1524 = sbr.rel (%p1522) target = $region289
                $region286: #{scc_module_forward.2} parent=274 // loop_body
                  %v1528 = vld [vmem:[%s1526] sm:$0xf]
                  %1529 = vst [vmem:[%s1527] sm:$0xf] %v1528
                  %v1530 = vld [vmem:[%s1526 + $0x4] sm:$0xf]
                  %1531 = vst [vmem:[%s1527 + $0x8] sm:$0xf] %v1530
                $region287: #{scc_module_forward.2} parent=274 // loop_footer
                  %s1525 = sadd.s32 1, %s1521
                $region288: #{scc_module_forward.2} parent=274 // loop_footer_branch
                  %1520 = sbr.rel target = $region284
                $region289: #{scc_module_forward.2} parent=274 // loop_exit
                  _
              $region275: #{scc_module_forward.2} parent=259 // pred_fallthru
                _
            $region260: #{scc_module_forward.2} parent=255 // pred_fallthru
              _
            // Predicated region
            $region261: #{scc_module_forward.2} parent=255 // pred_check
              _
            $region262: #{scc_module_forward.2} parent=255 // pred_check_branch
              %1495 = sbr.rel (0) target = $region264
            $region263: #{scc_module_forward.2} parent=255 // pred_region
              loop: start=0, step=1, limit=1
              $region265: #{scc_module_forward.2} parent=263 // loop_pre_header
                _
              $region266: #{scc_module_forward.2} parent=263 // loop_header
                %s1498 = sphi 0, %s1502
                %p1499 = scmp.ge.s32.totalorder %s1498, 1
                %s1503 = sphi %s1210, %s1210
                %s1504 = sphi %s1489, %s1489
              $region267: #{scc_module_forward.2} parent=263 // loop_header_branch
                %1501 = sbr.rel (%p1499) target = $region271
              $region268: #{scc_module_forward.2} parent=263 // loop_body
                %v1505 = vld [vmem:[%s1503] sm:$0xf]
                %1506 = vst [vmem:[%s1504] sm:$0xf] %v1505
                %v1507 = vld [vmem:[%s1503 + $0x4] sm:$0xf]
                %1508 = vst [vmem:[%s1504 + $0x8] sm:$0xf] %v1507
              $region269: #{scc_module_forward.2} parent=263 // loop_footer
                %s1502 = sadd.s32 1, %s1498
              $region270: #{scc_module_forward.2} parent=263 // loop_footer_branch
                %1497 = sbr.rel target = $region266
              $region271: #{scc_module_forward.2} parent=263 // loop_exit
                _
            $region264: #{scc_module_forward.2} parent=255 // pred_fallthru
              _
          $region256: #{scc_module_forward.2} parent=251 // pred_fallthru
            _
          %1532 = vnop
        $region252: #{scc_module_forward.2} parent=119 // pred_fallthru
          _
      $region120: #{scc_module_forward.2} parent=5 // pred_fallthru
        _
      %p1533 = scmp.le.s32.totalorder 2, %s18
      // Predicated region
      $region290: #{scc_module_forward.2} parent=5 // pred_check
        %p1534 = pneg %p1533
      $region291: #{scc_module_forward.2} parent=5 // pred_check_branch
        %1536 = sbr.rel (%p1534) target = $region293
      $region292: #{scc_module_forward.2} parent=5 // pred_region
        %s1537 = ssub.s32 %s18, 2
        // Predicated region
        $region294: #{scc_module_forward.2} parent=292 // pred_check
          %p1538 = pneg %p253
        $region295: #{scc_module_forward.2} parent=292 // pred_check_branch
          %1540 = sbr.rel (%p1538) target = $region297
        $region296: #{scc_module_forward.2} parent=292 // pred_region
          %s1541 = sand.u32 %s238, 1
          %s1542 = sand.u32 %s238, 1
          %s1543 = smul.addr %s1542, 32
          %s1544 = scalar_lea.vmem [#allocation4], %s1543
        $region297: #{scc_module_forward.2} parent=292 // pred_fallthru
          _
        // Predicated region
        $region298: #{scc_module_forward.2} parent=292 // pred_check
          %p1545 = pneg %p281
        $region299: #{scc_module_forward.2} parent=292 // pred_check_branch
          %1547 = sbr.rel (%p1545) target = $region301
        $region300: #{scc_module_forward.2} parent=292 // pred_region
          %s1548 = sand.u32 %s266, 1
          %s1549 = sand.u32 %s266, 1
          %s1550 = smul.addr %s1549, 128
          %s1551 = scalar_lea.vmem [#allocation5], %s1550
        $region301: #{scc_module_forward.2} parent=292 // pred_fallthru
          _
        // Predicated region
        $region302: #{scc_module_forward.2} parent=292 // pred_check
          %p1552 = pneg %p309
        $region303: #{scc_module_forward.2} parent=292 // pred_check_branch
          %1554 = sbr.rel (%p1552) target = $region305
        $region304: #{scc_module_forward.2} parent=292 // pred_region
          %s1555 = sand.u32 %s294, 1
          %s1556 = sand.u32 %s294, 1
          %s1557 = smul.addr %s1556, 8
          %s1558 = scalar_lea.vmem [#allocation6], %s1557
        $region305: #{scc_module_forward.2} parent=292 // pred_fallthru
          _
        // Predicated region
        $region306: #{scc_module_forward.2} parent=292 // pred_check
          %p1559 = pneg %p337
        $region307: #{scc_module_forward.2} parent=292 // pred_check_branch
          %1561 = sbr.rel (%p1559) target = $region309
        $region308: #{scc_module_forward.2} parent=292 // pred_region
          %s1562 = sand.u32 %s322, 1
          %s1563 = sand.u32 %s322, 1
          %s1564 = smul.addr %s1563, 8
          %s1565 = scalar_lea.vmem [#allocation7], %s1564
        $region309: #{scc_module_forward.2} parent=292 // pred_fallthru
          _
      $region293: #{scc_module_forward.2} parent=5 // pred_fallthru
        _
    $region6: #{scc_module_forward.2} parent=1 // loop_footer
      %s22 = sadd.s32 1, %s18
    $region7: #{scc_module_forward.2} parent=1 // loop_footer_branch
      %17 = sbr.rel target = $region3
    $region8: #{scc_module_forward.2} parent=1 // loop_exit
      _

// kernel: scc_module_forward.3
$region0: #{scc_module_forward.3}
  #allocation0 [shape = 'u32[]', space=smem, size = 0x4, offset = 0x4, fixed_abs, tag = 'smem constant byte address 0x4 - core index']
  #allocation1 [shape = 'u32[144,128]{1,0:T(1,128)}', space=vmem, size = 0x12000, scoped, tag = 'internal scratch']
  #allocation2 [shape = 'f32[128,1]{1,0:T(8,128)}', space=vmem, size = 0x10000, scoped, tag = 'scratch operand']
  #allocation3 [shape = 'f32[128,1]{1,0:T(8,128)}', space=vmem, size = 0x10000, scoped, tag = 'scratch operand']
  #allocation4 [shape = 'f32[128,1]{1,0:T(8,128)}', space=vmem, size = 0x10000, scoped, tag = 'scratch operand']
  #allocation5 [shape = 'f32[128,1]{1,0:T(8,128)}', space=vmem, size = 0x10000, scoped, tag = 'scratch operand']
  #allocation6 [shape = 'f32[128,8]{1,0:T(8,128)}', space=vmem, size = 0x10000, scoped, tag = 'scratch operand']
  #allocation7 [shape = 'f32[128,8]{1,0:T(8,128)}', space=vmem, size = 0x10000, scoped, tag = 'scratch operand']
  %s0 = inlined_call_operand.vmem [shape: bf16[2,2,256,8], index: 0, kind: input, shape index: {}]
  %s1 = inlined_call_operand.vmem [shape: bf16[2,2,8,256], index: 1, kind: input, shape index: {}]
  %s2 = inlined_call_operand.vmem [shape: bf16[2,2,8,256], index: 2, kind: input, shape index: {}]
  %s3 = inlined_call_operand.vmem [shape: f32[2,32,256], index: 3, kind: input, shape index: {}]
  %s4 = inlined_call_operand.vmem [shape: bf16[8,32], index: 4, kind: input, shape index: {}]
  %s5 = inlined_call_operand.vmem [shape: bf16[8,32], index: 5, kind: input, shape index: {}]
  %s6 = inlined_call_operand.vmem [shape: f32[1,32], index: 6, kind: input, shape index: {}]
  %s7 = inlined_call_operand.vmem [shape: f32[2,32,256], index: 7, kind: output, shape index: {}]
  %s8 = sld [smem:[#allocation0]]
  $region264: #{scc_module_forward.3} parent=0
    _
  %s10 = ssub.s32 1, %s8
  %s11 = scalar_select 0, %s10, %s8
  $region1: #{scc_module_forward.3} parent=0
    #allocation8 [shape = 'u8[131072]{0}', space=vmem, size = 0x20000, scoped, tag = 'input window, operand 0']
    #allocation9 [shape = 'u8[8192]{0}', space=vmem, size = 0x2000, scoped, tag = 'input window, operand 1']
    #allocation10 [shape = 'u8[8192]{0}', space=vmem, size = 0x2000, scoped, tag = 'input window, operand 2']
    #allocation11 [shape = 'u8[32768]{0}', space=vmem, size = 0x8000, scoped, tag = 'input window, operand 3']
    #allocation12 [shape = 'u8[32768]{0}', space=vmem, size = 0x8000, scoped, tag = 'output window, operand 0']
    loop: start=0, step=1, limit=10
    $region2: #{scc_module_forward.3} parent=1 // loop_pre_header
      _
    $region3: #{scc_module_forward.3} parent=1 // loop_header
      %s13 = sphi 0, %s17
      %p14 = scmp.ge.s32.totalorder %s13, 10
      %s20 = sphi 0, %s39
      %s21 = sphi 0, %s35
      %s22 = sphi 0, %s31
      %s23 = sphi 0, %s20
      %s24 = sphi 0, %s21
      %s25 = sphi 0, %s22
      %s26 = sphi 0, %s23
      %s27 = sphi 0, %s24
      %s28 = sphi 0, %s25
      %s44 = sphi 0, %s46
      %s47 = sphi 0, %s44
      %s48 = sphi 0, %s47
      %s64 = sphi 0, %s48
      %s72 = sphi 0, %s74
      %s75 = sphi 0, %s72
      %s76 = sphi 0, %s75
      %s92 = sphi 0, %s76
      %s100 = sphi 0, %s102
      %s103 = sphi 0, %s100
      %s104 = sphi 0, %s103
      %s120 = sphi 0, %s104
      %s128 = sphi 0, %s130
      %s131 = sphi 0, %s128
      %s132 = sphi 0, %s131
      %s148 = sphi 0, %s132
      %s152 = sphi 0, %s152
      %s154 = sphi 0, %s152
      %s155 = sphi 0, %s154
      %s169 = sphi 0, %s155
      %s173 = sphi 0, %s173
      %s175 = sphi 0, %s173
      %s176 = sphi 0, %s175
      %s190 = sphi 0, %s176
      %s194 = sphi 0, %s194
      %s196 = sphi 0, %s194
      %s197 = sphi 0, %s196
      %s211 = sphi 0, %s197
      %s219 = sphi 0, %s221
      %s222 = sphi 0, %s219
      %s223 = sphi 0, %s222
      %s239 = sphi 0, %s223
    $region4: #{scc_module_forward.3} parent=1 // loop_header_branch
      %16 = sbr.rel (%p14) target = $region8
    $region5: #{scc_module_forward.3} parent=1 // loop_body
      %s18 = ssub.s32 %s13, 1
      %s19 = ssub.s32 %s13, 2
      %s29 = sadd.s32 1, %s22
      %p30 = scmp.ge.s32.totalorder %s29, 2
      %s31 = scalar_select %p30, 0, %s29
      %s32 = sadd.s32 1, %s21
      %s33 = scalar_select %p30, %s32, %s21
      %p34 = scmp.ge.s32.totalorder %s33, 2
      %s35 = scalar_select %p34, 0, %s33
      %s36 = sadd.s32 1, %s20
      %s37 = scalar_select %p34, %s36, %s20
      %p38 = scmp.ge.s32.totalorder %s37, 2
      %s39 = scalar_select %p38, 0, %s37
      %s40 = ssub.s32 %s20, %s39
      %s41 = ssub.s32 %s21, %s35
      %s42 = sor.u32 %s40, %s41
      %p43 = scmp.eq.s32.totalorder %s42, 0
      %s45 = sadd.s32 %s44, 1
      %s46 = scalar_select %p43, %s44, %s45
      %p49 = pneg %p43
      %p50 = scmp.eq.s32.totalorder %s13, 7
      %p51 = por %p49, %p50
      %p52 = scmp.ne.s32.totalorder %s44, %s47
      %p53 = scmp.eq.s32.totalorder %s13, 0
      %p54 = por %p52, %p53
      %p55 = scmp.ne.s32.totalorder %s44, %s47
      %p56 = scmp.eq.s32.totalorder %s18, 7
      %p57 = por %p55, %p56
      %p58 = scmp.ne.s32.totalorder %s47, %s48
      %p59 = scmp.eq.s32.totalorder %s18, 0
      %p60 = por %p58, %p59
      %p61 = scmp.ne.s32.totalorder %s47, %s48
      %p62 = scmp.eq.s32.totalorder %s19, 7
      %p63 = por %p61, %p62
      %p65 = scmp.ne.s32.totalorder %s48, %s64
      %p66 = scmp.eq.s32.totalorder %s19, 0
      %p67 = por %p65, %p66
      %s68 = ssub.s32 %s20, %s39
      %s69 = ssub.s32 %s22, %s31
      %s70 = sor.u32 %s68, %s69
      %p71 = scmp.eq.s32.totalorder %s70, 0
      %s73 = sadd.s32 %s72, 1
      %s74 = scalar_select %p71, %s72, %s73
      %p77 = pneg %p71
      %p78 = scmp.eq.s32.totalorder %s13, 7
      %p79 = por %p77, %p78
      %p80 = scmp.ne.s32.totalorder %s72, %s75
      %p81 = scmp.eq.s32.totalorder %s13, 0
      %p82 = por %p80, %p81
      %p83 = scmp.ne.s32.totalorder %s72, %s75
      %p84 = scmp.eq.s32.totalorder %s18, 7
      %p85 = por %p83, %p84
      %p86 = scmp.ne.s32.totalorder %s75, %s76
      %p87 = scmp.eq.s32.totalorder %s18, 0
      %p88 = por %p86, %p87
      %p89 = scmp.ne.s32.totalorder %s75, %s76
      %p90 = scmp.eq.s32.totalorder %s19, 7
      %p91 = por %p89, %p90
      %p93 = scmp.ne.s32.totalorder %s76, %s92
      %p94 = scmp.eq.s32.totalorder %s19, 0
      %p95 = por %p93, %p94
      %s96 = ssub.s32 %s20, %s39
      %s97 = ssub.s32 %s22, %s31
      %s98 = sor.u32 %s96, %s97
      %p99 = scmp.eq.s32.totalorder %s98, 0
      %s101 = sadd.s32 %s100, 1
      %s102 = scalar_select %p99, %s100, %s101
      %p105 = pneg %p99
      %p106 = scmp.eq.s32.totalorder %s13, 7
      %p107 = por %p105, %p106
      %p108 = scmp.ne.s32.totalorder %s100, %s103
      %p109 = scmp.eq.s32.totalorder %s13, 0
      %p110 = por %p108, %p109
      %p111 = scmp.ne.s32.totalorder %s100, %s103
      %p112 = scmp.eq.s32.totalorder %s18, 7
      %p113 = por %p111, %p112
      %p114 = scmp.ne.s32.totalorder %s103, %s104
      %p115 = scmp.eq.s32.totalorder %s18, 0
      %p116 = por %p114, %p115
      %p117 = scmp.ne.s32.totalorder %s103, %s104
      %p118 = scmp.eq.s32.totalorder %s19, 7
      %p119 = por %p117, %p118
      %p121 = scmp.ne.s32.totalorder %s104, %s120
      %p122 = scmp.eq.s32.totalorder %s19, 0
      %p123 = por %p121, %p122
      %s124 = ssub.s32 %s20, %s39
      %s125 = ssub.s32 %s21, %s35
      %s126 = sor.u32 %s124, %s125
      %p127 = scmp.eq.s32.totalorder %s126, 0
      %s129 = sadd.s32 %s128, 1
      %s130 = scalar_select %p127, %s128, %s129
      %p133 = pneg %p127
      %p134 = scmp.eq.s32.totalorder %s13, 7
      %p135 = por %p133, %p134
      %p136 = scmp.ne.s32.totalorder %s128, %s131
      %p137 = scmp.eq.s32.totalorder %s13, 0
      %p138 = por %p136, %p137
      %p139 = scmp.ne.s32.totalorder %s128, %s131
      %p140 = scmp.eq.s32.totalorder %s18, 7
      %p141 = por %p139, %p140
      %p142 = scmp.ne.s32.totalorder %s131, %s132
      %p143 = scmp.eq.s32.totalorder %s18, 0
      %p144 = por %p142, %p143
      %p145 = scmp.ne.s32.totalorder %s131, %s132
      %p146 = scmp.eq.s32.totalorder %s19, 7
      %p147 = por %p145, %p146
      %p149 = scmp.ne.s32.totalorder %s132, %s148
      %p150 = scmp.eq.s32.totalorder %s19, 0
      %p151 = por %p149, %p150
      %s153 = sadd.s32 %s152, 1
      %p156 = scmp.eq.s32.totalorder %s13, 7
      %p157 = scmp.ne.s32.totalorder %s152, %s154
      %p158 = scmp.eq.s32.totalorder %s13, 0
      %p159 = por %p157, %p158
      %p160 = scmp.ne.s32.totalorder %s152, %s154
      %p161 = scmp.eq.s32.totalorder %s18, 7
      %p162 = por %p160, %p161
      %p163 = scmp.ne.s32.totalorder %s154, %s155
      %p164 = scmp.eq.s32.totalorder %s18, 0
      %p165 = por %p163, %p164
      %p166 = scmp.ne.s32.totalorder %s154, %s155
      %p167 = scmp.eq.s32.totalorder %s19, 7
      %p168 = por %p166, %p167
      %p170 = scmp.ne.s32.totalorder %s155, %s169
      %p171 = scmp.eq.s32.totalorder %s19, 0
      %p172 = por %p170, %p171
      %s174 = sadd.s32 %s173, 1
      %p177 = scmp.eq.s32.totalorder %s13, 7
      %p178 = scmp.ne.s32.totalorder %s173, %s175
      %p179 = scmp.eq.s32.totalorder %s13, 0
      %p180 = por %p178, %p179
      %p181 = scmp.ne.s32.totalorder %s173, %s175
      %p182 = scmp.eq.s32.totalorder %s18, 7
      %p183 = por %p181, %p182
      %p184 = scmp.ne.s32.totalorder %s175, %s176
      %p185 = scmp.eq.s32.totalorder %s18, 0
      %p186 = por %p184, %p185
      %p187 = scmp.ne.s32.totalorder %s175, %s176
      %p188 = scmp.eq.s32.totalorder %s19, 7
      %p189 = por %p187, %p188
      %p191 = scmp.ne.s32.totalorder %s176, %s190
      %p192 = scmp.eq.s32.totalorder %s19, 0
      %p193 = por %p191, %p192
      %s195 = sadd.s32 %s194, 1
      %p198 = scmp.eq.s32.totalorder %s13, 7
      %p199 = scmp.ne.s32.totalorder %s194, %s196
      %p200 = scmp.eq.s32.totalorder %s13, 0
      %p201 = por %p199, %p200
      %p202 = scmp.ne.s32.totalorder %s194, %s196
      %p203 = scmp.eq.s32.totalorder %s18, 7
      %p204 = por %p202, %p203
      %p205 = scmp.ne.s32.totalorder %s196, %s197
      %p206 = scmp.eq.s32.totalorder %s18, 0
      %p207 = por %p205, %p206
      %p208 = scmp.ne.s32.totalorder %s196, %s197
      %p209 = scmp.eq.s32.totalorder %s19, 7
      %p210 = por %p208, %p209
      %p212 = scmp.ne.s32.totalorder %s197, %s211
      %p213 = scmp.eq.s32.totalorder %s19, 0
      %p214 = por %p212, %p213
      %s215 = ssub.s32 %s20, %s39
      %s216 = ssub.s32 %s21, %s35
      %s217 = sor.u32 %s215, %s216
      %p218 = scmp.eq.s32.totalorder %s217, 0
      %s220 = sadd.s32 %s219, 1
      %s221 = scalar_select %p218, %s219, %s220
      %p224 = pneg %p218
      %p225 = scmp.eq.s32.totalorder %s13, 7
      %p226 = por %p224, %p225
      %p227 = scmp.ne.s32.totalorder %s219, %s222
      %p228 = scmp.eq.s32.totalorder %s13, 0
      %p229 = por %p227, %p228
      %p230 = scmp.ne.s32.totalorder %s219, %s222
      %p231 = scmp.eq.s32.totalorder %s18, 7
      %p232 = por %p230, %p231
      %p233 = scmp.ne.s32.totalorder %s222, %s223
      %p234 = scmp.eq.s32.totalorder %s18, 0
      %p235 = por %p233, %p234
      %p236 = scmp.ne.s32.totalorder %s222, %s223
      %p237 = scmp.eq.s32.totalorder %s19, 7
      %p238 = por %p236, %p237
      %p240 = scmp.ne.s32.totalorder %s223, %s239
      %p241 = scmp.eq.s32.totalorder %s19, 0
      %p242 = por %p240, %p241
      %p243 = scmp.le.s32.totalorder 1, %s13
      %p244 = scmp.lt.s32.totalorder %s13, 9
      %p245 = pnand %p243, %p244
      %p246 = pneg %p245
      // Predicated region
      $region9: #{scc_module_forward.3} parent=5 // pred_check
        _
      $region10: #{scc_module_forward.3} parent=5 // pred_check_branch
        %248 = sbr.rel (%p245) target = $region12
      $region11: #{scc_module_forward.3} parent=5 // pred_region
        %s249 = ssub.s32 %s13, 1
        // Predicated region
        $region13: #{scc_module_forward.3} parent=11 // pred_check
          %p250 = pneg %p165
        $region14: #{scc_module_forward.3} parent=11 // pred_check_branch
          %252 = sbr.rel (%p250) target = $region16
        $region15: #{scc_module_forward.3} parent=11 // pred_region
          _
        $region16: #{scc_module_forward.3} parent=11 // pred_fallthru
          _
        // Predicated region
        $region17: #{scc_module_forward.3} parent=11 // pred_check
          %p253 = pneg %p186
        $region18: #{scc_module_forward.3} parent=11 // pred_check_branch
          %255 = sbr.rel (%p253) target = $region20
        $region19: #{scc_module_forward.3} parent=11 // pred_region
          _
        $region20: #{scc_module_forward.3} parent=11 // pred_fallthru
          _
        // Predicated region
        $region21: #{scc_module_forward.3} parent=11 // pred_check
          %p256 = pneg %p207
        $region22: #{scc_module_forward.3} parent=11 // pred_check_branch
          %258 = sbr.rel (%p256) target = $region24
        $region23: #{scc_module_forward.3} parent=11 // pred_region
          _
        $region24: #{scc_module_forward.3} parent=11 // pred_fallthru
          _
      $region12: #{scc_module_forward.3} parent=5 // pred_fallthru
        _
      %p259 = scmp.lt.s32.totalorder %s13, 8
      // Predicated region
      $region25: #{scc_module_forward.3} parent=5 // pred_check
        %p260 = pneg %p259
      $region26: #{scc_module_forward.3} parent=5 // pred_check_branch
        %262 = sbr.rel (%p260) target = $region28
      $region27: #{scc_module_forward.3} parent=5 // pred_region
        // Predicated region
        $region29: #{scc_module_forward.3} parent=27 // pred_check
          %p263 = pneg %p54
        $region30: #{scc_module_forward.3} parent=27 // pred_check_branch
          %265 = sbr.rel (%p263) target = $region32
        $region31: #{scc_module_forward.3} parent=27 // pred_region
          %s266 = sand.u32 %s44, 1
          %s267 = sand.u32 %s44, 1
          %s268 = smul.addr %s267, 128
          %s269 = scalar_lea.vmem [#allocation8], %s268
          %s270 = smul.u32 16, %s21
          %s271 = smul.addr %s20, 64
          %s272 = sadd.s32 %s270, %s271
          %s273 = smul.addr %s272, 4
          %s274 = scalar_lea.vmem %s0, %s273
          // Predicated region
          $region33: #{scc_module_forward.3} parent=31 // pred_check
            _
          $region34: #{scc_module_forward.3} parent=31 // pred_check_branch
            %276 = sbr.rel (0) target = $region36
          $region35: #{scc_module_forward.3} parent=31 // pred_region
            // Predicated region
            $region37: #{scc_module_forward.3} parent=35 // pred_check
              _
            $region38: #{scc_module_forward.3} parent=35 // pred_check_branch
              %278 = sbr.rel target = $region40
            $region39: #{scc_module_forward.3} parent=35 // pred_region
              // Predicated region
              $region52: #{scc_module_forward.3} parent=39 // pred_check
                _
              $region53: #{scc_module_forward.3} parent=39 // pred_check_branch
                %355 = sbr.rel (0) target = $region55
              $region54: #{scc_module_forward.3} parent=39 // pred_region
                loop: start=0, step=1, limit=1
                $region56: #{scc_module_forward.3} parent=54 // loop_pre_header
                  _
                $region57: #{scc_module_forward.3} parent=54 // loop_header
                  %s357 = sphi 0, %s361
                  %p358 = scmp.ge.s32.totalorder %s357, 1
                  %s362 = sphi %s274, %s274
                  %s363 = sphi %s269, %s269
                $region58: #{scc_module_forward.3} parent=54 // loop_header_branch
                  %360 = sbr.rel (%p358) target = $region62
                $region59: #{scc_module_forward.3} parent=54 // loop_body
                  _
                $region60: #{scc_module_forward.3} parent=54 // loop_footer
                  %s361 = sadd.s32 1, %s357
                $region61: #{scc_module_forward.3} parent=54 // loop_footer_branch
                  %356 = sbr.rel target = $region57
                $region62: #{scc_module_forward.3} parent=54 // loop_exit
                  _
                loop: start=0, step=1, limit=1
                $region63: #{scc_module_forward.3} parent=54 // loop_pre_header
                  _
                $region64: #{scc_module_forward.3} parent=54 // loop_header
                  %s366 = sphi 0, %s370
                  %p367 = scmp.ge.s32.totalorder %s366, 1
                  %s371 = sphi %s274, %s274
                  %s372 = sphi %s269, %s269
                $region65: #{scc_module_forward.3} parent=54 // loop_header_branch
                  %369 = sbr.rel (%p367) target = $region69
                $region66: #{scc_module_forward.3} parent=54 // loop_body
                  %v373 = vld [vmem:[%s371] sm:$0xf]
                  %374 = vst [vmem:[%s372] sm:$0xf] %v373
                  %v375 = vld [vmem:[%s371 + $0x4] sm:$0xf]
                  %376 = vst [vmem:[%s372 + $0x4] sm:$0xf] %v375
                  %v377 = vld [vmem:[%s371 + $0x8] sm:$0xf]
                  %378 = vst [vmem:[%s372 + $0x8] sm:$0xf] %v377
                  %v379 = vld [vmem:[%s371 + $0xc] sm:$0xf]
                  %380 = vst [vmem:[%s372 + $0xc] sm:$0xf] %v379
                  %v381 = vld [vmem:[%s371 + $0x10] sm:$0xf]
                  %382 = vst [vmem:[%s372 + $0x10] sm:$0xf] %v381
                  %v383 = vld [vmem:[%s371 + $0x14] sm:$0xf]
                  %384 = vst [vmem:[%s372 + $0x14] sm:$0xf] %v383
                  %v385 = vld [vmem:[%s371 + $0x18] sm:$0xf]
                  %386 = vst [vmem:[%s372 + $0x18] sm:$0xf] %v385
                  %v387 = vld [vmem:[%s371 + $0x1c] sm:$0xf]
                  %388 = vst [vmem:[%s372 + $0x1c] sm:$0xf] %v387
                  %v389 = vld [vmem:[%s371 + $0x20] sm:$0xf]
                  %390 = vst [vmem:[%s372 + $0x20] sm:$0xf] %v389
                  %v391 = vld [vmem:[%s371 + $0x24] sm:$0xf]
                  %392 = vst [vmem:[%s372 + $0x24] sm:$0xf] %v391
                  %v393 = vld [vmem:[%s371 + $0x28] sm:$0xf]
                  %394 = vst [vmem:[%s372 + $0x28] sm:$0xf] %v393
                  %v395 = vld [vmem:[%s371 + $0x2c] sm:$0xf]
                  %396 = vst [vmem:[%s372 + $0x2c] sm:$0xf] %v395
                  %v397 = vld [vmem:[%s371 + $0x30] sm:$0xf]
                  %398 = vst [vmem:[%s372 + $0x30] sm:$0xf] %v397
                  %v399 = vld [vmem:[%s371 + $0x34] sm:$0xf]
                  %400 = vst [vmem:[%s372 + $0x34] sm:$0xf] %v399
                  %v401 = vld [vmem:[%s371 + $0x38] sm:$0xf]
                  %402 = vst [vmem:[%s372 + $0x38] sm:$0xf] %v401
                  %v403 = vld [vmem:[%s371 + $0x3c] sm:$0xf]
                  %404 = vst [vmem:[%s372 + $0x3c] sm:$0xf] %v403
                  %v405 = vld [vmem:[%s371 + $0x80] sm:$0xf]
                  %406 = vst [vmem:[%s372 + $0x40] sm:$0xf] %v405
                  %v407 = vld [vmem:[%s371 + $0x84] sm:$0xf]
                  %408 = vst [vmem:[%s372 + $0x44] sm:$0xf] %v407
                  %v409 = vld [vmem:[%s371 + $0x88] sm:$0xf]
                  %410 = vst [vmem:[%s372 + $0x48] sm:$0xf] %v409
                  %v411 = vld [vmem:[%s371 + $0x8c] sm:$0xf]
                  %412 = vst [vmem:[%s372 + $0x4c] sm:$0xf] %v411
                  %v413 = vld [vmem:[%s371 + $0x90] sm:$0xf]
                  %414 = vst [vmem:[%s372 + $0x50] sm:$0xf] %v413
                  %v415 = vld [vmem:[%s371 + $0x94] sm:$0xf]
                  %416 = vst [vmem:[%s372 + $0x54] sm:$0xf] %v415
                  %v417 = vld [vmem:[%s371 + $0x98] sm:$0xf]
                  %418 = vst [vmem:[%s372 + $0x58] sm:$0xf] %v417
                  %v419 = vld [vmem:[%s371 + $0x9c] sm:$0xf]
                  %420 = vst [vmem:[%s372 + $0x5c] sm:$0xf] %v419
                  %v421 = vld [vmem:[%s371 + $0xa0] sm:$0xf]
                  %422 = vst [vmem:[%s372 + $0x60] sm:$0xf] %v421
                  %v423 = vld [vmem:[%s371 + $0xa4] sm:$0xf]
                  %424 = vst [vmem:[%s372 + $0x64] sm:$0xf] %v423
                  %v425 = vld [vmem:[%s371 + $0xa8] sm:$0xf]
                  %426 = vst [vmem:[%s372 + $0x68] sm:$0xf] %v425
                  %v427 = vld [vmem:[%s371 + $0xac] sm:$0xf]
                  %428 = vst [vmem:[%s372 + $0x6c] sm:$0xf] %v427
                  %v429 = vld [vmem:[%s371 + $0xb0] sm:$0xf]
                  %430 = vst [vmem:[%s372 + $0x70] sm:$0xf] %v429
                  %v431 = vld [vmem:[%s371 + $0xb4] sm:$0xf]
                  %432 = vst [vmem:[%s372 + $0x74] sm:$0xf] %v431
                  %v433 = vld [vmem:[%s371 + $0xb8] sm:$0xf]
                  %434 = vst [vmem:[%s372 + $0x78] sm:$0xf] %v433
                  %v435 = vld [vmem:[%s371 + $0xbc] sm:$0xf]
                  %436 = vst [vmem:[%s372 + $0x7c] sm:$0xf] %v435
                $region67: #{scc_module_forward.3} parent=54 // loop_footer
                  %s370 = sadd.s32 1, %s366
                $region68: #{scc_module_forward.3} parent=54 // loop_footer_branch
                  %365 = sbr.rel target = $region64
                $region69: #{scc_module_forward.3} parent=54 // loop_exit
                  _
              $region55: #{scc_module_forward.3} parent=39 // pred_fallthru
                _
            $region40: #{scc_module_forward.3} parent=35 // pred_fallthru
              _
            // Predicated region
            $region41: #{scc_module_forward.3} parent=35 // pred_check
              _
            $region42: #{scc_module_forward.3} parent=35 // pred_check_branch
              %280 = sbr.rel (0) target = $region44
            $region43: #{scc_module_forward.3} parent=35 // pred_region
              loop: start=0, step=1, limit=1
              $region45: #{scc_module_forward.3} parent=43 // loop_pre_header
                _
              $region46: #{scc_module_forward.3} parent=43 // loop_header
                %s283 = sphi 0, %s287
                %p284 = scmp.ge.s32.totalorder %s283, 1
                %s288 = sphi %s274, %s274
                %s289 = sphi %s269, %s269
              $region47: #{scc_module_forward.3} parent=43 // loop_header_branch
                %286 = sbr.rel (%p284) target = $region51
              $region48: #{scc_module_forward.3} parent=43 // loop_body
                %v290 = vld [vmem:[%s288] sm:$0xf]
                %291 = vst [vmem:[%s289] sm:$0xf] %v290
                %v292 = vld [vmem:[%s288 + $0x4] sm:$0xf]
                %293 = vst [vmem:[%s289 + $0x4] sm:$0xf] %v292
                %v294 = vld [vmem:[%s288 + $0x8] sm:$0xf]
                %295 = vst [vmem:[%s289 + $0x8] sm:$0xf] %v294
                %v296 = vld [vmem:[%s288 + $0xc] sm:$0xf]
                %297 = vst [vmem:[%s289 + $0xc] sm:$0xf] %v296
                %v298 = vld [vmem:[%s288 + $0x10] sm:$0xf]
                %299 = vst [vmem:[%s289 + $0x10] sm:$0xf] %v298
                %v300 = vld [vmem:[%s288 + $0x14] sm:$0xf]
                %301 = vst [vmem:[%s289 + $0x14] sm:$0xf] %v300
                %v302 = vld [vmem:[%s288 + $0x18] sm:$0xf]
                %303 = vst [vmem:[%s289 + $0x18] sm:$0xf] %v302
                %v304 = vld [vmem:[%s288 + $0x1c] sm:$0xf]
                %305 = vst [vmem:[%s289 + $0x1c] sm:$0xf] %v304
                %v306 = vld [vmem:[%s288 + $0x20] sm:$0xf]
                %307 = vst [vmem:[%s289 + $0x20] sm:$0xf] %v306
                %v308 = vld [vmem:[%s288 + $0x24] sm:$0xf]
                %309 = vst [vmem:[%s289 + $0x24] sm:$0xf] %v308
                %v310 = vld [vmem:[%s288 + $0x28] sm:$0xf]
                %311 = vst [vmem:[%s289 + $0x28] sm:$0xf] %v310
                %v312 = vld [vmem:[%s288 + $0x2c] sm:$0xf]
                %313 = vst [vmem:[%s289 + $0x2c] sm:$0xf] %v312
                %v314 = vld [vmem:[%s288 + $0x30] sm:$0xf]
                %315 = vst [vmem:[%s289 + $0x30] sm:$0xf] %v314
                %v316 = vld [vmem:[%s288 + $0x34] sm:$0xf]
                %317 = vst [vmem:[%s289 + $0x34] sm:$0xf] %v316
                %v318 = vld [vmem:[%s288 + $0x38] sm:$0xf]
                %319 = vst [vmem:[%s289 + $0x38] sm:$0xf] %v318
                %v320 = vld [vmem:[%s288 + $0x3c] sm:$0xf]
                %321 = vst [vmem:[%s289 + $0x3c] sm:$0xf] %v320
                %v322 = vld [vmem:[%s288 + $0x80] sm:$0xf]
                %323 = vst [vmem:[%s289 + $0x40] sm:$0xf] %v322
                %v324 = vld [vmem:[%s288 + $0x84] sm:$0xf]
                %325 = vst [vmem:[%s289 + $0x44] sm:$0xf] %v324
                %v326 = vld [vmem:[%s288 + $0x88] sm:$0xf]
                %327 = vst [vmem:[%s289 + $0x48] sm:$0xf] %v326
                %v328 = vld [vmem:[%s288 + $0x8c] sm:$0xf]
                %329 = vst [vmem:[%s289 + $0x4c] sm:$0xf] %v328
                %v330 = vld [vmem:[%s288 + $0x90] sm:$0xf]
                %331 = vst [vmem:[%s289 + $0x50] sm:$0xf] %v330
                %v332 = vld [vmem:[%s288 + $0x94] sm:$0xf]
                %333 = vst [vmem:[%s289 + $0x54] sm:$0xf] %v332
                %v334 = vld [vmem:[%s288 + $0x98] sm:$0xf]
                %335 = vst [vmem:[%s289 + $0x58] sm:$0xf] %v334
                %v336 = vld [vmem:[%s288 + $0x9c] sm:$0xf]
                %337 = vst [vmem:[%s289 + $0x5c] sm:$0xf] %v336
                %v338 = vld [vmem:[%s288 + $0xa0] sm:$0xf]
                %339 = vst [vmem:[%s289 + $0x60] sm:$0xf] %v338
                %v340 = vld [vmem:[%s288 + $0xa4] sm:$0xf]
                %341 = vst [vmem:[%s289 + $0x64] sm:$0xf] %v340
                %v342 = vld [vmem:[%s288 + $0xa8] sm:$0xf]
                %343 = vst [vmem:[%s289 + $0x68] sm:$0xf] %v342
                %v344 = vld [vmem:[%s288 + $0xac] sm:$0xf]
                %345 = vst [vmem:[%s289 + $0x6c] sm:$0xf] %v344
                %v346 = vld [vmem:[%s288 + $0xb0] sm:$0xf]
                %347 = vst [vmem:[%s289 + $0x70] sm:$0xf] %v346
                %v348 = vld [vmem:[%s288 + $0xb4] sm:$0xf]
                %349 = vst [vmem:[%s289 + $0x74] sm:$0xf] %v348
                %v350 = vld [vmem:[%s288 + $0xb8] sm:$0xf]
                %351 = vst [vmem:[%s289 + $0x78] sm:$0xf] %v350
                %v352 = vld [vmem:[%s288 + $0xbc] sm:$0xf]
                %353 = vst [vmem:[%s289 + $0x7c] sm:$0xf] %v352
              $region49: #{scc_module_forward.3} parent=43 // loop_footer
                %s287 = sadd.s32 1, %s283
              $region50: #{scc_module_forward.3} parent=43 // loop_footer_branch
                %282 = sbr.rel target = $region46
              $region51: #{scc_module_forward.3} parent=43 // loop_exit
                _
            $region44: #{scc_module_forward.3} parent=35 // pred_fallthru
              _
          $region36: #{scc_module_forward.3} parent=31 // pred_fallthru
            _
          %437 = vnop
        $region32: #{scc_module_forward.3} parent=27 // pred_fallthru
          _
        // Predicated region
        $region70: #{scc_module_forward.3} parent=27 // pred_check
          %p438 = pneg %p82
        $region71: #{scc_module_forward.3} parent=27 // pred_check_branch
          %440 = sbr.rel (%p438) target = $region73
        $region72: #{scc_module_forward.3} parent=27 // pred_region
          %s441 = sand.u32 %s72, 1
          %s442 = sand.u32 %s72, 1
          %s443 = smul.addr %s442, 8
          %s444 = scalar_lea.vmem [#allocation9], %s443
          %s445 = smul.addr %s20, 4
          %s446 = sadd.s32 %s22, %s445
          %s447 = smul.addr %s446, 4
          %s448 = scalar_lea.vmem %s1, %s447
          // Predicated region
          $region74: #{scc_module_forward.3} parent=72 // pred_check
            _
          $region75: #{scc_module_forward.3} parent=72 // pred_check_branch
            %450 = sbr.rel (0) target = $region77
          $region76: #{scc_module_forward.3} parent=72 // pred_region
            // Predicated region
            $region78: #{scc_module_forward.3} parent=76 // pred_check
              _
            $region79: #{scc_module_forward.3} parent=76 // pred_check_branch
              %452 = sbr.rel target = $region81
            $region80: #{scc_module_forward.3} parent=76 // pred_region
              // Predicated region
              $region93: #{scc_module_forward.3} parent=80 // pred_check
                _
              $region94: #{scc_module_forward.3} parent=80 // pred_check_branch
                %469 = sbr.rel (0) target = $region96
              $region95: #{scc_module_forward.3} parent=80 // pred_region
                loop: start=0, step=1, limit=1
                $region97: #{scc_module_forward.3} parent=95 // loop_pre_header
                  _
                $region98: #{scc_module_forward.3} parent=95 // loop_header
                  %s471 = sphi 0, %s475
                  %p472 = scmp.ge.s32.totalorder %s471, 1
                  %s476 = sphi %s448, %s448
                  %s477 = sphi %s444, %s444
                $region99: #{scc_module_forward.3} parent=95 // loop_header_branch
                  %474 = sbr.rel (%p472) target = $region103
                $region100: #{scc_module_forward.3} parent=95 // loop_body
                  _
                $region101: #{scc_module_forward.3} parent=95 // loop_footer
                  %s475 = sadd.s32 1, %s471
                $region102: #{scc_module_forward.3} parent=95 // loop_footer_branch
                  %470 = sbr.rel target = $region98
                $region103: #{scc_module_forward.3} parent=95 // loop_exit
                  _
                loop: start=0, step=1, limit=1
                $region104: #{scc_module_forward.3} parent=95 // loop_pre_header
                  _
                $region105: #{scc_module_forward.3} parent=95 // loop_header
                  %s480 = sphi 0, %s484
                  %p481 = scmp.ge.s32.totalorder %s480, 1
                  %s485 = sphi %s448, %s448
                  %s486 = sphi %s444, %s444
                $region106: #{scc_module_forward.3} parent=95 // loop_header_branch
                  %483 = sbr.rel (%p481) target = $region110
                $region107: #{scc_module_forward.3} parent=95 // loop_body
                  %v487 = vld [vmem:[%s485] sm:$0xf]
                  %488 = vst [vmem:[%s486] sm:$0xf] %v487
                  %v489 = vld [vmem:[%s485 + $0x8] sm:$0xf]
                  %490 = vst [vmem:[%s486 + $0x4] sm:$0xf] %v489
                $region108: #{scc_module_forward.3} parent=95 // loop_footer
                  %s484 = sadd.s32 1, %s480
                $region109: #{scc_module_forward.3} parent=95 // loop_footer_branch
                  %479 = sbr.rel target = $region105
                $region110: #{scc_module_forward.3} parent=95 // loop_exit
                  _
              $region96: #{scc_module_forward.3} parent=80 // pred_fallthru
                _
            $region81: #{scc_module_forward.3} parent=76 // pred_fallthru
              _
            // Predicated region
            $region82: #{scc_module_forward.3} parent=76 // pred_check
              _
            $region83: #{scc_module_forward.3} parent=76 // pred_check_branch
              %454 = sbr.rel (0) target = $region85
            $region84: #{scc_module_forward.3} parent=76 // pred_region
              loop: start=0, step=1, limit=1
              $region86: #{scc_module_forward.3} parent=84 // loop_pre_header
                _
              $region87: #{scc_module_forward.3} parent=84 // loop_header
                %s457 = sphi 0, %s461
                %p458 = scmp.ge.s32.totalorder %s457, 1
                %s462 = sphi %s448, %s448
                %s463 = sphi %s444, %s444
              $region88: #{scc_module_forward.3} parent=84 // loop_header_branch
                %460 = sbr.rel (%p458) target = $region92
              $region89: #{scc_module_forward.3} parent=84 // loop_body
                %v464 = vld [vmem:[%s462] sm:$0xf]
                %465 = vst [vmem:[%s463] sm:$0xf] %v464
                %v466 = vld [vmem:[%s462 + $0x8] sm:$0xf]
                %467 = vst [vmem:[%s463 + $0x4] sm:$0xf] %v466
              $region90: #{scc_module_forward.3} parent=84 // loop_footer
                %s461 = sadd.s32 1, %s457
              $region91: #{scc_module_forward.3} parent=84 // loop_footer_branch
                %456 = sbr.rel target = $region87
              $region92: #{scc_module_forward.3} parent=84 // loop_exit
                _
            $region85: #{scc_module_forward.3} parent=76 // pred_fallthru
              _
          $region77: #{scc_module_forward.3} parent=72 // pred_fallthru
            _
          %491 = vnop
        $region73: #{scc_module_forward.3} parent=27 // pred_fallthru
          _
        // Predicated region
        $region111: #{scc_module_forward.3} parent=27 // pred_check
          %p492 = pneg %p110
        $region112: #{scc_module_forward.3} parent=27 // pred_check_branch
          %494 = sbr.rel (%p492) target = $region114
        $region113: #{scc_module_forward.3} parent=27 // pred_region
          %s495 = sand.u32 %s100, 1
          %s496 = sand.u32 %s100, 1
          %s497 = smul.addr %s496, 8
          %s498 = scalar_lea.vmem [#allocation10], %s497
          %s499 = smul.addr %s20, 4
          %s500 = sadd.s32 %s22, %s499
          %s501 = smul.addr %s500, 4
          %s502 = scalar_lea.vmem %s2, %s501
          // Predicated region
          $region115: #{scc_module_forward.3} parent=113 // pred_check
            _
          $region116: #{scc_module_forward.3} parent=113 // pred_check_branch
            %504 = sbr.rel (0) target = $region118
          $region117: #{scc_module_forward.3} parent=113 // pred_region
            // Predicated region
            $region119: #{scc_module_forward.3} parent=117 // pred_check
              _
            $region120: #{scc_module_forward.3} parent=117 // pred_check_branch
              %506 = sbr.rel target = $region122
            $region121: #{scc_module_forward.3} parent=117 // pred_region
              // Predicated region
              $region134: #{scc_module_forward.3} parent=121 // pred_check
                _
              $region135: #{scc_module_forward.3} parent=121 // pred_check_branch
                %523 = sbr.rel (0) target = $region137
              $region136: #{scc_module_forward.3} parent=121 // pred_region
                loop: start=0, step=1, limit=1
                $region138: #{scc_module_forward.3} parent=136 // loop_pre_header
                  _
                $region139: #{scc_module_forward.3} parent=136 // loop_header
                  %s525 = sphi 0, %s529
                  %p526 = scmp.ge.s32.totalorder %s525, 1
                  %s530 = sphi %s502, %s502
                  %s531 = sphi %s498, %s498
                $region140: #{scc_module_forward.3} parent=136 // loop_header_branch
                  %528 = sbr.rel (%p526) target = $region144
                $region141: #{scc_module_forward.3} parent=136 // loop_body
                  _
                $region142: #{scc_module_forward.3} parent=136 // loop_footer
                  %s529 = sadd.s32 1, %s525
                $region143: #{scc_module_forward.3} parent=136 // loop_footer_branch
                  %524 = sbr.rel target = $region139
                $region144: #{scc_module_forward.3} parent=136 // loop_exit
                  _
                loop: start=0, step=1, limit=1
                $region145: #{scc_module_forward.3} parent=136 // loop_pre_header
                  _
                $region146: #{scc_module_forward.3} parent=136 // loop_header
                  %s534 = sphi 0, %s538
                  %p535 = scmp.ge.s32.totalorder %s534, 1
                  %s539 = sphi %s502, %s502
                  %s540 = sphi %s498, %s498
                $region147: #{scc_module_forward.3} parent=136 // loop_header_branch
                  %537 = sbr.rel (%p535) target = $region151
                $region148: #{scc_module_forward.3} parent=136 // loop_body
                  %v541 = vld [vmem:[%s539] sm:$0xf]
                  %542 = vst [vmem:[%s540] sm:$0xf] %v541
                  %v543 = vld [vmem:[%s539 + $0x8] sm:$0xf]
                  %544 = vst [vmem:[%s540 + $0x4] sm:$0xf] %v543
                $region149: #{scc_module_forward.3} parent=136 // loop_footer
                  %s538 = sadd.s32 1, %s534
                $region150: #{scc_module_forward.3} parent=136 // loop_footer_branch
                  %533 = sbr.rel target = $region146
                $region151: #{scc_module_forward.3} parent=136 // loop_exit
                  _
              $region137: #{scc_module_forward.3} parent=121 // pred_fallthru
                _
            $region122: #{scc_module_forward.3} parent=117 // pred_fallthru
              _
            // Predicated region
            $region123: #{scc_module_forward.3} parent=117 // pred_check
              _
            $region124: #{scc_module_forward.3} parent=117 // pred_check_branch
              %508 = sbr.rel (0) target = $region126
            $region125: #{scc_module_forward.3} parent=117 // pred_region
              loop: start=0, step=1, limit=1
              $region127: #{scc_module_forward.3} parent=125 // loop_pre_header
                _
              $region128: #{scc_module_forward.3} parent=125 // loop_header
                %s511 = sphi 0, %s515
                %p512 = scmp.ge.s32.totalorder %s511, 1
                %s516 = sphi %s502, %s502
                %s517 = sphi %s498, %s498
              $region129: #{scc_module_forward.3} parent=125 // loop_header_branch
                %514 = sbr.rel (%p512) target = $region133
              $region130: #{scc_module_forward.3} parent=125 // loop_body
                %v518 = vld [vmem:[%s516] sm:$0xf]
                %519 = vst [vmem:[%s517] sm:$0xf] %v518
                %v520 = vld [vmem:[%s516 + $0x8] sm:$0xf]
                %521 = vst [vmem:[%s517 + $0x4] sm:$0xf] %v520
              $region131: #{scc_module_forward.3} parent=125 // loop_footer
                %s515 = sadd.s32 1, %s511
              $region132: #{scc_module_forward.3} parent=125 // loop_footer_branch
                %510 = sbr.rel target = $region128
              $region133: #{scc_module_forward.3} parent=125 // loop_exit
                _
            $region126: #{scc_module_forward.3} parent=117 // pred_fallthru
              _
          $region118: #{scc_module_forward.3} parent=113 // pred_fallthru
            _
          %545 = vnop
        $region114: #{scc_module_forward.3} parent=27 // pred_fallthru
          _
        // Predicated region
        $region152: #{scc_module_forward.3} parent=27 // pred_check
          %p546 = pneg %p138
        $region153: #{scc_module_forward.3} parent=27 // pred_check_branch
          %548 = sbr.rel (%p546) target = $region155
        $region154: #{scc_module_forward.3} parent=27 // pred_region
          %s549 = sand.u32 %s128, 1
          %s550 = sand.u32 %s128, 1
          %s551 = smul.addr %s550, 32
          %s552 = scalar_lea.vmem [#allocation11], %s551
          %s553 = smul.addr %s20, 8
          %s554 = sadd.s32 %s21, %s553
          %s555 = smul.addr %s554, 8
          %s556 = scalar_lea.vmem %s3, %s555
          // Predicated region
          $region156: #{scc_module_forward.3} parent=154 // pred_check
            _
          $region157: #{scc_module_forward.3} parent=154 // pred_check_branch
            %558 = sbr.rel (0) target = $region159
          $region158: #{scc_module_forward.3} parent=154 // pred_region
            // Predicated region
            $region160: #{scc_module_forward.3} parent=158 // pred_check
              _
            $region161: #{scc_module_forward.3} parent=158 // pred_check_branch
              %560 = sbr.rel (0) target = $region163
            $region162: #{scc_module_forward.3} parent=158 // pred_region
              // Predicated region
              $region175: #{scc_module_forward.3} parent=162 // pred_check
                _
              $region176: #{scc_module_forward.3} parent=162 // pred_check_branch
                %581 = sbr.rel (0) target = $region178
              $region177: #{scc_module_forward.3} parent=162 // pred_region
                loop: start=0, step=1, limit=1
                $region179: #{scc_module_forward.3} parent=177 // loop_pre_header
                  _
                $region180: #{scc_module_forward.3} parent=177 // loop_header
                  %s583 = sphi 0, %s587
                  %p584 = scmp.ge.s32.totalorder %s583, 1
                  %s588 = sphi %s556, %s556
                  %s589 = sphi %s552, %s552
                $region181: #{scc_module_forward.3} parent=177 // loop_header_branch
                  %586 = sbr.rel (%p584) target = $region185
                $region182: #{scc_module_forward.3} parent=177 // loop_body
                  %v590 = vld [vmem:[%s588] sm:$0xff]
                  %591 = vst [vmem:[%s589] sm:$0xff] %v590
                  %v592 = vld [vmem:[%s588 + $0x10] sm:$0xff]
                  %593 = vst [vmem:[%s589 + $0x8] sm:$0xff] %v592
                  %v594 = vld [vmem:[%s588 + $0x20] sm:$0xff]
                  %595 = vst [vmem:[%s589 + $0x10] sm:$0xff] %v594
                  %v596 = vld [vmem:[%s588 + $0x30] sm:$0xff]
                  %597 = vst [vmem:[%s589 + $0x18] sm:$0xff] %v596
                $region183: #{scc_module_forward.3} parent=177 // loop_footer
                  %s587 = sadd.s32 1, %s583
                $region184: #{scc_module_forward.3} parent=177 // loop_footer_branch
                  %582 = sbr.rel target = $region180
                $region185: #{scc_module_forward.3} parent=177 // loop_exit
                  _
              $region178: #{scc_module_forward.3} parent=162 // pred_fallthru
                _
              // Predicated region
              $region186: #{scc_module_forward.3} parent=162 // pred_check
                _
              $region187: #{scc_module_forward.3} parent=162 // pred_check_branch
                %599 = sbr.rel target = $region189
              $region188: #{scc_module_forward.3} parent=162 // pred_region
                _
              $region189: #{scc_module_forward.3} parent=162 // pred_fallthru
                _
            $region163: #{scc_module_forward.3} parent=158 // pred_fallthru
              _
            // Predicated region
            $region164: #{scc_module_forward.3} parent=158 // pred_check
              _
            $region165: #{scc_module_forward.3} parent=158 // pred_check_branch
              %562 = sbr.rel target = $region167
            $region166: #{scc_module_forward.3} parent=158 // pred_region
              loop: start=0, step=1, limit=1
              $region168: #{scc_module_forward.3} parent=166 // loop_pre_header
                _
              $region169: #{scc_module_forward.3} parent=166 // loop_header
                %s565 = sphi 0, %s569
                %p566 = scmp.ge.s32.totalorder %s565, 1
                %s570 = sphi %s556, %s556
                %s571 = sphi %s552, %s552
              $region170: #{scc_module_forward.3} parent=166 // loop_header_branch
                %568 = sbr.rel (%p566) target = $region174
              $region171: #{scc_module_forward.3} parent=166 // loop_body
                %v572 = vld [vmem:[%s570] sm:$0xff]
                %573 = vst [vmem:[%s571] sm:$0xff] %v572
                %v574 = vld [vmem:[%s570 + $0x10] sm:$0xff]
                %575 = vst [vmem:[%s571 + $0x8] sm:$0xff] %v574
                %v576 = vld [vmem:[%s570 + $0x20] sm:$0xff]
                %577 = vst [vmem:[%s571 + $0x10] sm:$0xff] %v576
                %v578 = vld [vmem:[%s570 + $0x30] sm:$0xff]
                %579 = vst [vmem:[%s571 + $0x18] sm:$0xff] %v578
              $region172: #{scc_module_forward.3} parent=166 // loop_footer
                %s569 = sadd.s32 1, %s565
              $region173: #{scc_module_forward.3} parent=166 // loop_footer_branch
                %564 = sbr.rel target = $region169
              $region174: #{scc_module_forward.3} parent=166 // loop_exit
                _
            $region167: #{scc_module_forward.3} parent=158 // pred_fallthru
              _
          $region159: #{scc_module_forward.3} parent=154 // pred_fallthru
            _
          %600 = vnop
        $region155: #{scc_module_forward.3} parent=27 // pred_fallthru
          _
      $region28: #{scc_module_forward.3} parent=5 // pred_fallthru
        _
      %p601 = scmp.le.s32.totalorder 1, %s13
      %p602 = scmp.lt.s32.totalorder %s13, 9
      %p603 = pnand %p601, %p602
      %p604 = pneg %p603
      // Predicated region
      $region190: #{scc_module_forward.3} parent=5 // pred_check
        _
      $region191: #{scc_module_forward.3} parent=5 // pred_check_branch
        %606 = sbr.rel (%p603) target = $region193
      $region192: #{scc_module_forward.3} parent=5 // pred_region
        %s607 = ssub.s32 %s13, 1
        %s608 = sand.u32 %s47, 1
        %s609 = sand.u32 %s47, 1
        %s610 = smul.addr %s609, 128
        %s611 = scalar_lea.vmem [#allocation8], %s610
        // Predicated region
        $region194: #{scc_module_forward.3} parent=192 // pred_check
          %p612 = pneg %p60
        $region195: #{scc_module_forward.3} parent=192 // pred_check_branch
          %614 = sbr.rel (%p612) target = $region197
        $region196: #{scc_module_forward.3} parent=192 // pred_region
          _
        $region197: #{scc_module_forward.3} parent=192 // pred_fallthru
          _
        %s615 = sand.u32 %s75, 1
        %s616 = sand.u32 %s75, 1
        %s617 = smul.addr %s616, 8
        %s618 = scalar_lea.vmem [#allocation9], %s617
        // Predicated region
        $region198: #{scc_module_forward.3} parent=192 // pred_check
          %p619 = pneg %p88
        $region199: #{scc_module_forward.3} parent=192 // pred_check_branch
          %621 = sbr.rel (%p619) target = $region201
        $region200: #{scc_module_forward.3} parent=192 // pred_region
          _
        $region201: #{scc_module_forward.3} parent=192 // pred_fallthru
          _
        %s622 = sand.u32 %s103, 1
        %s623 = sand.u32 %s103, 1
        %s624 = smul.addr %s623, 8
        %s625 = scalar_lea.vmem [#allocation10], %s624
        // Predicated region
        $region202: #{scc_module_forward.3} parent=192 // pred_check
          %p626 = pneg %p116
        $region203: #{scc_module_forward.3} parent=192 // pred_check_branch
          %628 = sbr.rel (%p626) target = $region205
        $region204: #{scc_module_forward.3} parent=192 // pred_region
          _
        $region205: #{scc_module_forward.3} parent=192 // pred_fallthru
          _
        %s629 = sand.u32 %s131, 1
        %s630 = sand.u32 %s131, 1
        %s631 = smul.addr %s630, 32
        %s632 = scalar_lea.vmem [#allocation11], %s631
        // Predicated region
        $region206: #{scc_module_forward.3} parent=192 // pred_check
          %p633 = pneg %p144
        $region207: #{scc_module_forward.3} parent=192 // pred_check_branch
          %635 = sbr.rel (%p633) target = $region209
        $region208: #{scc_module_forward.3} parent=192 // pred_region
          _
        $region209: #{scc_module_forward.3} parent=192 // pred_fallthru
          _
        %s636 = sand.u32 %s47, 1
        %s637 = sand.u32 %s47, 1
        %s638 = smul.addr %s637, 128
        %s639 = scalar_lea.vmem [#allocation8], %s638
        %p640 = pneg %p60
        %p641 = pneg %p57
        %s642 = sand.u32 %s75, 1
        %s643 = sand.u32 %s75, 1
        %s644 = smul.addr %s643, 8
        %s645 = scalar_lea.vmem [#allocation9], %s644
        %p646 = pneg %p88
        %p647 = pneg %p85
        %s648 = sand.u32 %s103, 1
        %s649 = sand.u32 %s103, 1
        %s650 = smul.addr %s649, 8
        %s651 = scalar_lea.vmem [#allocation10], %s650
        %p652 = pneg %p116
        %p653 = pneg %p113
        %s654 = sand.u32 %s131, 1
        %s655 = sand.u32 %s131, 1
        %s656 = smul.addr %s655, 32
        %s657 = scalar_lea.vmem [#allocation11], %s656
        %p658 = pneg %p144
        %p659 = pneg %p141
        %p660 = pneg %p165
        %p661 = pneg %p162
        %p662 = pneg %p186
        %p663 = pneg %p183
        %p664 = pneg %p207
        %p665 = pneg %p204
        %p666 = pneg %p235
        %p667 = pneg %p232
        %s668 = sand.u32 %s222, 1
        %s669 = sand.u32 %s222, 1
        %s670 = smul.addr %s669, 32
        %s671 = scalar_lea.vmem [#allocation12], %s670
        %s672 = smul.u32 16, %s24
        %p674 = scmp.eq.s32.totalorder %s25, 0
        // Predicated region
        $region210: #{scc_module_forward.3} parent=192 // pred_check
          %p675 = pneg %p674
        $region211: #{scc_module_forward.3} parent=192 // pred_check_branch
          %677 = sbr.rel (%p675) target = $region213
        $region212: #{scc_module_forward.3} parent=192 // pred_region
          %vm678 = vcmask 7168
          %679 = vst.msk [vmem:[#allocation2] sm:$0xff] %vm678, -inf
          %680 = vst.msk [vmem:[#allocation2 + $0x8] sm:$0xff] %vm678, -inf
          %681 = vst.msk [vmem:[#allocation2 + $0x10] sm:$0xff] %vm678, -inf
          %682 = vst.msk [vmem:[#allocation2 + $0x18] sm:$0xff] %vm678, -inf
          %683 = vst.msk [vmem:[#allocation2 + $0x20] sm:$0xff] %vm678, -inf
          %684 = vst.msk [vmem:[#allocation2 + $0x28] sm:$0xff] %vm678, -inf
          %685 = vst.msk [vmem:[#allocation2 + $0x30] sm:$0xff] %vm678, -inf
          %686 = vst.msk [vmem:[#allocation2 + $0x38] sm:$0xff] %vm678, -inf
          %687 = vst.msk [vmem:[#allocation2 + $0x40] sm:$0xff] %vm678, -inf
          %688 = vst.msk [vmem:[#allocation2 + $0x48] sm:$0xff] %vm678, -inf
          %689 = vst.msk [vmem:[#allocation2 + $0x50] sm:$0xff] %vm678, -inf
          %690 = vst.msk [vmem:[#allocation2 + $0x58] sm:$0xff] %vm678, -inf
          %691 = vst.msk [vmem:[#allocation2 + $0x60] sm:$0xff] %vm678, -inf
          %692 = vst.msk [vmem:[#allocation2 + $0x68] sm:$0xff] %vm678, -inf
          %693 = vst.msk [vmem:[#allocation2 + $0x70] sm:$0xff] %vm678, -inf
          %694 = vst.msk [vmem:[#allocation2 + $0x78] sm:$0xff] %vm678, -inf
          %695 = vst.msk [vmem:[#allocation4] sm:$0xff] %vm678, -inf
          %696 = vst.msk [vmem:[#allocation4 + $0x8] sm:$0xff] %vm678, -inf
          %697 = vst.msk [vmem:[#allocation4 + $0x10] sm:$0xff] %vm678, -inf
          %698 = vst.msk [vmem:[#allocation4 + $0x18] sm:$0xff] %vm678, -inf
          %699 = vst.msk [vmem:[#allocation4 + $0x20] sm:$0xff] %vm678, -inf
          %700 = vst.msk [vmem:[#allocation4 + $0x28] sm:$0xff] %vm678, -inf
          %701 = vst.msk [vmem:[#allocation4 + $0x30] sm:$0xff] %vm678, -inf
          %702 = vst.msk [vmem:[#allocation4 + $0x38] sm:$0xff] %vm678, -inf
          %703 = vst.msk [vmem:[#allocation4 + $0x40] sm:$0xff] %vm678, -inf
          %704 = vst.msk [vmem:[#allocation4 + $0x48] sm:$0xff] %vm678, -inf
          %705 = vst.msk [vmem:[#allocation4 + $0x50] sm:$0xff] %vm678, -inf
          %706 = vst.msk [vmem:[#allocation4 + $0x58] sm:$0xff] %vm678, -inf
          %707 = vst.msk [vmem:[#allocation4 + $0x60] sm:$0xff] %vm678, -inf
          %708 = vst.msk [vmem:[#allocation4 + $0x68] sm:$0xff] %vm678, -inf
          %709 = vst.msk [vmem:[#allocation4 + $0x70] sm:$0xff] %vm678, -inf
          %710 = vst.msk [vmem:[#allocation4 + $0x78] sm:$0xff] %vm678, -inf
          %711 = vst.msk [vmem:[#allocation3] sm:$0xff] %vm678, 0.0
          %712 = vst.msk [vmem:[#allocation3 + $0x8] sm:$0xff] %vm678, 0.0
          %713 = vst.msk [vmem:[#allocation3 + $0x10] sm:$0xff] %vm678, 0.0
          %714 = vst.msk [vmem:[#allocation3 + $0x18] sm:$0xff] %vm678, 0.0
          %715 = vst.msk [vmem:[#allocation3 + $0x20] sm:$0xff] %vm678, 0.0
          %716 = vst.msk [vmem:[#allocation3 + $0x28] sm:$0xff] %vm678, 0.0
          %717 = vst.msk [vmem:[#allocation3 + $0x30] sm:$0xff] %vm678, 0.0
          %718 = vst.msk [vmem:[#allocation3 + $0x38] sm:$0xff] %vm678, 0.0
          %719 = vst.msk [vmem:[#allocation3 + $0x40] sm:$0xff] %vm678, 0.0
          %720 = vst.msk [vmem:[#allocation3 + $0x48] sm:$0xff] %vm678, 0.0
          %721 = vst.msk [vmem:[#allocation3 + $0x50] sm:$0xff] %vm678, 0.0
          %722 = vst.msk [vmem:[#allocation3 + $0x58] sm:$0xff] %vm678, 0.0
          %723 = vst.msk [vmem:[#allocation3 + $0x60] sm:$0xff] %vm678, 0.0
          %724 = vst.msk [vmem:[#allocation3 + $0x68] sm:$0xff] %vm678, 0.0
          %725 = vst.msk [vmem:[#allocation3 + $0x70] sm:$0xff] %vm678, 0.0
          %726 = vst.msk [vmem:[#allocation3 + $0x78] sm:$0xff] %vm678, 0.0
          %727 = vst.msk [vmem:[#allocation5] sm:$0xff] %vm678, 0.0
          %728 = vst.msk [vmem:[#allocation5 + $0x8] sm:$0xff] %vm678, 0.0
          %729 = vst.msk [vmem:[#allocation5 + $0x10] sm:$0xff] %vm678, 0.0
          %730 = vst.msk [vmem:[#allocation5 + $0x18] sm:$0xff] %vm678, 0.0
          %731 = vst.msk [vmem:[#allocation5 + $0x20] sm:$0xff] %vm678, 0.0
          %732 = vst.msk [vmem:[#allocation5 + $0x28] sm:$0xff] %vm678, 0.0
          %733 = vst.msk [vmem:[#allocation5 + $0x30] sm:$0xff] %vm678, 0.0
          %734 = vst.msk [vmem:[#allocation5 + $0x38] sm:$0xff] %vm678, 0.0
          %735 = vst.msk [vmem:[#allocation5 + $0x40] sm:$0xff] %vm678, 0.0
          %736 = vst.msk [vmem:[#allocation5 + $0x48] sm:$0xff] %vm678, 0.0
          %737 = vst.msk [vmem:[#allocation5 + $0x50] sm:$0xff] %vm678, 0.0
          %738 = vst.msk [vmem:[#allocation5 + $0x58] sm:$0xff] %vm678, 0.0
          %739 = vst.msk [vmem:[#allocation5 + $0x60] sm:$0xff] %vm678, 0.0
          %740 = vst.msk [vmem:[#allocation5 + $0x68] sm:$0xff] %vm678, 0.0
          %741 = vst.msk [vmem:[#allocation5 + $0x70] sm:$0xff] %vm678, 0.0
          %742 = vst.msk [vmem:[#allocation5 + $0x78] sm:$0xff] %vm678, 0.0
          %vm743 = vcmask 64512
          %744 = vst.msk [vmem:[#allocation6] sm:$0xff] %vm743, 0.0
          %745 = vst.msk [vmem:[#allocation6 + $0x8] sm:$0xff] %vm743, 0.0
          %746 = vst.msk [vmem:[#allocation6 + $0x10] sm:$0xff] %vm743, 0.0
          %747 = vst.msk [vmem:[#allocation6 + $0x18] sm:$0xff] %vm743, 0.0
          %748 = vst.msk [vmem:[#allocation6 + $0x20] sm:$0xff] %vm743, 0.0
          %749 = vst.msk [vmem:[#allocation6 + $0x28] sm:$0xff] %vm743, 0.0
          %750 = vst.msk [vmem:[#allocation6 + $0x30] sm:$0xff] %vm743, 0.0
          %751 = vst.msk [vmem:[#allocation6 + $0x38] sm:$0xff] %vm743, 0.0
          %752 = vst.msk [vmem:[#allocation6 + $0x40] sm:$0xff] %vm743, 0.0
          %753 = vst.msk [vmem:[#allocation6 + $0x48] sm:$0xff] %vm743, 0.0
          %754 = vst.msk [vmem:[#allocation6 + $0x50] sm:$0xff] %vm743, 0.0
          %755 = vst.msk [vmem:[#allocation6 + $0x58] sm:$0xff] %vm743, 0.0
          %756 = vst.msk [vmem:[#allocation6 + $0x60] sm:$0xff] %vm743, 0.0
          %757 = vst.msk [vmem:[#allocation6 + $0x68] sm:$0xff] %vm743, 0.0
          %758 = vst.msk [vmem:[#allocation6 + $0x70] sm:$0xff] %vm743, 0.0
          %759 = vst.msk [vmem:[#allocation6 + $0x78] sm:$0xff] %vm743, 0.0
          %760 = vst.msk [vmem:[#allocation7] sm:$0xff] %vm743, 0.0
          %761 = vst.msk [vmem:[#allocation7 + $0x8] sm:$0xff] %vm743, 0.0
          %762 = vst.msk [vmem:[#allocation7 + $0x10] sm:$0xff] %vm743, 0.0
          %763 = vst.msk [vmem:[#allocation7 + $0x18] sm:$0xff] %vm743, 0.0
          %764 = vst.msk [vmem:[#allocation7 + $0x20] sm:$0xff] %vm743, 0.0
          %765 = vst.msk [vmem:[#allocation7 + $0x28] sm:$0xff] %vm743, 0.0
          %766 = vst.msk [vmem:[#allocation7 + $0x30] sm:$0xff] %vm743, 0.0
          %767 = vst.msk [vmem:[#allocation7 + $0x38] sm:$0xff] %vm743, 0.0
          %768 = vst.msk [vmem:[#allocation7 + $0x40] sm:$0xff] %vm743, 0.0
          %769 = vst.msk [vmem:[#allocation7 + $0x48] sm:$0xff] %vm743, 0.0
          %770 = vst.msk [vmem:[#allocation7 + $0x50] sm:$0xff] %vm743, 0.0
          %771 = vst.msk [vmem:[#allocation7 + $0x58] sm:$0xff] %vm743, 0.0
          %772 = vst.msk [vmem:[#allocation7 + $0x60] sm:$0xff] %vm743, 0.0
          %773 = vst.msk [vmem:[#allocation7 + $0x68] sm:$0xff] %vm743, 0.0
          %774 = vst.msk [vmem:[#allocation7 + $0x70] sm:$0xff] %vm743, 0.0
          %775 = vst.msk [vmem:[#allocation7 + $0x78] sm:$0xff] %vm743, 0.0
        $region213: #{scc_module_forward.3} parent=192 // pred_fallthru
          _
        %v776 = vld [vmem:[%s611] sm:$0xf]
        %v777 = vld [vmem:[%s611 + $0x4] sm:$0xf]
        %v778 = vld [vmem:[%s611 + $0x8] sm:$0xf]
        %v779 = vld [vmem:[%s611 + $0xc] sm:$0xf]
        %v780 = vld [vmem:[%s611 + $0x10] sm:$0xf]
        %v781 = vld [vmem:[%s611 + $0x14] sm:$0xf]
        %v782 = vld [vmem:[%s611 + $0x18] sm:$0xf]
        %v783 = vld [vmem:[%s611 + $0x1c] sm:$0xf]
        %v784 = vld [vmem:[%s611 + $0x20] sm:$0xf]
        %v785 = vld [vmem:[%s611 + $0x24] sm:$0xf]
        %v786 = vld [vmem:[%s611 + $0x28] sm:$0xf]
        %v787 = vld [vmem:[%s611 + $0x2c] sm:$0xf]
        %v788 = vld [vmem:[%s611 + $0x30] sm:$0xf]
        %v789 = vld [vmem:[%s611 + $0x34] sm:$0xf]
        %v790 = vld [vmem:[%s611 + $0x38] sm:$0xf]
        %v791 = vld [vmem:[%s611 + $0x3c] sm:$0xf]
        %v792 = vld [vmem:[%s618] sm:$0xf]
        %v793 = vld [vmem:[%s625] sm:$0xf]
        %v810 = vunpack.c.l.b16 %v776
        %v811 = vunpack.c.l.b16 %v777
        %v812 = vunpack.c.l.b16 %v778
        %v813 = vunpack.c.l.b16 %v779
        %v814 = vunpack.c.l.b16 %v780
        %v815 = vunpack.c.l.b16 %v781
        %v816 = vunpack.c.l.b16 %v782
        %v817 = vunpack.c.l.b16 %v783
        %v818 = vunpack.c.l.b16 %v784
        %v819 = vunpack.c.l.b16 %v785
        %v820 = vunpack.c.l.b16 %v786
        %v821 = vunpack.c.l.b16 %v787
        %v822 = vunpack.c.l.b16 %v788
        %v823 = vunpack.c.l.b16 %v789
        %v824 = vunpack.c.l.b16 %v790
        %v825 = vunpack.c.l.b16 %v791
        %v826 = vpack.c.b16 %v811, %v810
        %v827 = vpack.c.b16 %v813, %v812
        %v828 = vpack.c.b16 %v815, %v814
        %v829 = vpack.c.b16 %v817, %v816
        %v830 = vpack.c.b16 %v819, %v818
        %v831 = vpack.c.b16 %v821, %v820
        %v832 = vpack.c.b16 %v823, %v822
        %v833 = vpack.c.b16 %v825, %v824
        %vm834 = vcmask 64512
        %v836 = vsel %vm834, %v826, 0
        %v839 = vsel %vm834, %v827, 0
        %v842 = vsel %vm834, %v828, 0
        %v845 = vsel %vm834, %v829, 0
        %v848 = vsel %vm834, %v830, 0
        %v851 = vsel %vm834, %v831, 0
        %v854 = vsel %vm834, %v832, 0
        %v857 = vsel %vm834, %v833, 0
        %vm859 = vcmask 1043456
        %v861 = vsel %vm859, %v792, 0
        %863 = vmatprep.subr.bf16.mxu0 0
        %864 = vmatpush1.bf16.msra.mxu0 %v861
        %865 = vmatprep.subr.bf16.mxu0 0
        %866 = vmatpush1.bf16.msra.mxu0 0
        %867 = vmatprep.subr.bf16.mxu0 0
        %868 = vmatpush1.bf16.msra.mxu0 0
        %869 = vmatprep.subr.bf16.mxu0 0
        %870 = vmatpush1.bf16.msra.mxu0 0
        %871 = vmatprep.subr.bf16.mxu0 0
        %872 = vmatpush1.bf16.msra.mxu0 0
        %873 = vmatprep.subr.bf16.mxu0 0
        %874 = vmatpush1.bf16.msra.mxu0 0
        %875 = vmatprep.subr.bf16.mxu0 0
        %876 = vmatpush1.bf16.msra.mxu0 0
        %877 = vmatprep.subr.bf16.mxu0 0
        %878 = vmatpush1.bf16.msra.mxu0 0
        %879 = vmatprep.subr.bf16.mxu0 0
        %880 = vmatpush1.bf16.msra.mxu0 0
        %881 = vmatprep.subr.bf16.mxu0 0
        %882 = vmatpush1.bf16.msra.mxu0 0
        %883 = vmatprep.subr.bf16.mxu0 0
        %884 = vmatpush1.bf16.msra.mxu0 0
        %885 = vmatprep.subr.bf16.mxu0 0
        %886 = vmatpush1.bf16.msra.mxu0 0
        %887 = vmatprep.subr.bf16.mxu0 0
        %888 = vmatpush1.bf16.msra.mxu0 0
        %889 = vmatprep.subr.bf16.mxu0 0
        %890 = vmatpush1.bf16.msra.mxu0 0
        %891 = vmatprep.subr.bf16.mxu0 0
        %892 = vmatpush1.bf16.msra.mxu0 0
        %893 = vmatprep.subr.bf16.mxu0 0
        %894 = vmatpush1.bf16.msra.mxu0 0
        %895 = vmatprep.mubr.bf16.mxu0 0
        %896 = vmatmul.mubr.bf16.gmra.mrb[0].mxu0 %v836
        %v897 = vpop.f32.mrb[0].mxu0
        %v898 = vadd.f32 0.0, %v897
        %v899 = vpop.f32.mrb[0].mxu0
        %v900 = vpop.f32.mrb[0].mxu0
        %v901 = vadd.f32 0.0, %v900
        %v902 = vpop.f32.mrb[0].mxu0
        %903 = vmatprep.mubr.bf16.mxu0 0
        %904 = vmatmul.mubr.bf16.gmra.mrb[0].mxu0 %v839
        %v905 = vpop.f32.mrb[0].mxu0
        %v906 = vadd.f32 0.0, %v905
        %v907 = vpop.f32.mrb[0].mxu0
        %v908 = vpop.f32.mrb[0].mxu0
        %v909 = vadd.f32 0.0, %v908
        %v910 = vpop.f32.mrb[0].mxu0
        %911 = vmatprep.mubr.bf16.mxu0 0
        %912 = vmatmul.mubr.bf16.gmra.mrb[0].mxu0 %v842
        %v913 = vpop.f32.mrb[0].mxu0
        %v914 = vadd.f32 0.0, %v913
        %v915 = vpop.f32.mrb[0].mxu0
        %v916 = vpop.f32.mrb[0].mxu0
        %v917 = vadd.f32 0.0, %v916
        %v918 = vpop.f32.mrb[0].mxu0
        %919 = vmatprep.mubr.bf16.mxu0 0
        %920 = vmatmul.mubr.bf16.gmra.mrb[0].mxu0 %v845
        %v921 = vpop.f32.mrb[0].mxu0
        %v922 = vadd.f32 0.0, %v921
        %v923 = vpop.f32.mrb[0].mxu0
        %v924 = vpop.f32.mrb[0].mxu0
        %v925 = vadd.f32 0.0, %v924
        %v926 = vpop.f32.mrb[0].mxu0
        %927 = vmatprep.mubr.bf16.mxu0 0
        %928 = vmatmul.mubr.bf16.gmra.mrb[0].mxu0 %v848
        %v929 = vpop.f32.mrb[0].mxu0
        %v930 = vadd.f32 0.0, %v929
        %v931 = vpop.f32.mrb[0].mxu0
        %v932 = vpop.f32.mrb[0].mxu0
        %v933 = vadd.f32 0.0, %v932
        %v934 = vpop.f32.mrb[0].mxu0
        %935 = vmatprep.mubr.bf16.mxu0 0
        %936 = vmatmul.mubr.bf16.gmra.mrb[0].mxu0 %v851
        %v937 = vpop.f32.mrb[0].mxu0
        %v938 = vadd.f32 0.0, %v937
        %v939 = vpop.f32.mrb[0].mxu0
        %v940 = vpop.f32.mrb[0].mxu0
        %v941 = vadd.f32 0.0, %v940
        %v942 = vpop.f32.mrb[0].mxu0
        %943 = vmatprep.mubr.bf16.mxu0 0
        %944 = vmatmul.mubr.bf16.gmra.mrb[0].mxu0 %v854
        %v945 = vpop.f32.mrb[0].mxu0
        %v946 = vadd.f32 0.0, %v945
        %v947 = vpop.f32.mrb[0].mxu0
        %v948 = vpop.f32.mrb[0].mxu0
        %v949 = vadd.f32 0.0, %v948
        %v950 = vpop.f32.mrb[0].mxu0
        %951 = vmatprep.mubr.bf16.mxu0 0
        %952 = vmatmul.mubr.bf16.gmra.mrb[0].mxu0 %v857
        %v953 = vpop.f32.mrb[0].mxu0
        %v954 = vadd.f32 0.0, %v953
        %v955 = vpop.f32.mrb[0].mxu0
        %v956 = vpop.f32.mrb[0].mxu0
        %v957 = vadd.f32 0.0, %v956
        %v958 = vpop.f32.mrb[0].mxu0
        %959 = vdwg.mxu0
        %v960 = vld [vmem:[#allocation2] sm:$0xff]
        %v961 = vld [vmem:[#allocation2 + $0x8] sm:$0xff]
        %v962 = vld [vmem:[#allocation2 + $0x10] sm:$0xff]
        %v963 = vld [vmem:[#allocation2 + $0x18] sm:$0xff]
        %v964 = vld [vmem:[#allocation2 + $0x20] sm:$0xff]
        %v965 = vld [vmem:[#allocation2 + $0x28] sm:$0xff]
        %v966 = vld [vmem:[#allocation2 + $0x30] sm:$0xff]
        %v967 = vld [vmem:[#allocation2 + $0x38] sm:$0xff]
        %v968 = vld [vmem:[#allocation2 + $0x40] sm:$0xff]
        %v969 = vld [vmem:[#allocation2 + $0x48] sm:$0xff]
        %v970 = vld [vmem:[#allocation2 + $0x50] sm:$0xff]
        %v971 = vld [vmem:[#allocation2 + $0x58] sm:$0xff]
        %v972 = vld [vmem:[#allocation2 + $0x60] sm:$0xff]
        %v973 = vld [vmem:[#allocation2 + $0x68] sm:$0xff]
        %v974 = vld [vmem:[#allocation2 + $0x70] sm:$0xff]
        %v975 = vld [vmem:[#allocation2 + $0x78] sm:$0xff]
        %976 = vmax.xlane.f32.xlu0 %v898
        %v977 = vpop.xlane.xlu0 %976
        %978 = vmax.xlane.f32.xlu0 %v901
        %v979 = vpop.xlane.xlu0 %978
        %980 = vmax.xlane.f32.xlu0 %v906
        %v981 = vpop.xlane.xlu0 %980
        %982 = vmax.xlane.f32.xlu0 %v909
        %v983 = vpop.xlane.xlu0 %982
        %984 = vmax.xlane.f32.xlu0 %v914
        %v985 = vpop.xlane.xlu0 %984
        %986 = vmax.xlane.f32.xlu0 %v917
        %v987 = vpop.xlane.xlu0 %986
        %988 = vmax.xlane.f32.xlu0 %v922
        %v989 = vpop.xlane.xlu0 %988
        %990 = vmax.xlane.f32.xlu0 %v925
        %v991 = vpop.xlane.xlu0 %990
        %992 = vmax.xlane.f32.xlu0 %v930
        %v993 = vpop.xlane.xlu0 %992
        %994 = vmax.xlane.f32.xlu0 %v933
        %v995 = vpop.xlane.xlu0 %994
        %996 = vmax.xlane.f32.xlu0 %v938
        %v997 = vpop.xlane.xlu0 %996
        %998 = vmax.xlane.f32.xlu0 %v941
        %v999 = vpop.xlane.xlu0 %998
        %1000 = vmax.xlane.f32.xlu0 %v946
        %v1001 = vpop.xlane.xlu0 %1000
        %1002 = vmax.xlane.f32.xlu0 %v949
        %v1003 = vpop.xlane.xlu0 %1002
        %1004 = vmax.xlane.f32.xlu0 %v954
        %v1005 = vpop.xlane.xlu0 %1004
        %1006 = vmax.xlane.f32.xlu0 %v957
        %v1007 = vpop.xlane.xlu0 %1006
        %v1008 = vmax.f32 %v960, %v977
        %v1009 = vmax.f32 %v961, %v979
        %v1010 = vmax.f32 %v962, %v981
        %v1011 = vmax.f32 %v963, %v983
        %v1012 = vmax.f32 %v964, %v985
        %v1013 = vmax.f32 %v965, %v987
        %v1014 = vmax.f32 %v966, %v989
        %v1015 = vmax.f32 %v967, %v991
        %v1016 = vmax.f32 %v968, %v993
        %v1017 = vmax.f32 %v969, %v995
        %v1018 = vmax.f32 %v970, %v997
        %v1019 = vmax.f32 %v971, %v999
        %v1020 = vmax.f32 %v972, %v1001
        %v1021 = vmax.f32 %v973, %v1003
        %v1022 = vmax.f32 %v974, %v1005
        %v1023 = vmax.f32 %v975, %v1007
        %v1024 = vsub.f32 %v960, %v1008
        %v1025 = vsub.f32 %v961, %v1009
        %v1026 = vsub.f32 %v962, %v1010
        %v1027 = vsub.f32 %v963, %v1011
        %v1028 = vsub.f32 %v964, %v1012
        %v1029 = vsub.f32 %v965, %v1013
        %v1030 = vsub.f32 %v966, %v1014
        %v1031 = vsub.f32 %v967, %v1015
        %v1032 = vsub.f32 %v968, %v1016
        %v1033 = vsub.f32 %v969, %v1017
        %v1034 = vsub.f32 %v970, %v1018
        %v1035 = vsub.f32 %v971, %v1019
        %v1036 = vsub.f32 %v972, %v1020
        %v1037 = vsub.f32 %v973, %v1021
        %v1038 = vsub.f32 %v974, %v1022
        %v1039 = vsub.f32 %v975, %v1023
        %v1040 = vmul.f32 %v1024, 1.442695
        %v1041 = vpow.pop %v1040
        %v1042 = vmul.f32 %v1025, 1.442695
        %v1043 = vpow.pop %v1042
        %v1044 = vmul.f32 %v1026, 1.442695
        %v1045 = vpow.pop %v1044
        %v1046 = vmul.f32 %v1027, 1.442695
        %v1047 = vpow.pop %v1046
        %v1048 = vmul.f32 %v1028, 1.442695
        %v1049 = vpow.pop %v1048
        %v1050 = vmul.f32 %v1029, 1.442695
        %v1051 = vpow.pop %v1050
        %v1052 = vmul.f32 %v1030, 1.442695
        %v1053 = vpow.pop %v1052
        %v1054 = vmul.f32 %v1031, 1.442695
        %v1055 = vpow.pop %v1054
        %v1056 = vmul.f32 %v1032, 1.442695
        %v1057 = vpow.pop %v1056
        %v1058 = vmul.f32 %v1033, 1.442695
        %v1059 = vpow.pop %v1058
        %v1060 = vmul.f32 %v1034, 1.442695
        %v1061 = vpow.pop %v1060
        %v1062 = vmul.f32 %v1035, 1.442695
        %v1063 = vpow.pop %v1062
        %v1064 = vmul.f32 %v1036, 1.442695
        %v1065 = vpow.pop %v1064
        %v1066 = vmul.f32 %v1037, 1.442695
        %v1067 = vpow.pop %v1066
        %v1068 = vmul.f32 %v1038, 1.442695
        %v1069 = vpow.pop %v1068
        %v1070 = vmul.f32 %v1039, 1.442695
        %v1071 = vpow.pop %v1070
        %1073 = vset.pattern.permute.xlu0 0
        %1074 = vperm.xlu0 %1073, %v1008
        %v1075 = vpop.permute.xlu0 %1074
        %1078 = vset.pattern.permute.xlu0 0
        %1079 = vperm.xlu0 %1078, %v1009
        %v1080 = vpop.permute.xlu0 %1079
        %1083 = vset.pattern.permute.xlu0 0
        %1084 = vperm.xlu0 %1083, %v1010
        %v1085 = vpop.permute.xlu0 %1084
        %1088 = vset.pattern.permute.xlu0 0
        %1089 = vperm.xlu0 %1088, %v1011
        %v1090 = vpop.permute.xlu0 %1089
        %1093 = vset.pattern.permute.xlu0 0
        %1094 = vperm.xlu0 %1093, %v1012
        %v1095 = vpop.permute.xlu0 %1094
        %1098 = vset.pattern.permute.xlu0 0
        %1099 = vperm.xlu0 %1098, %v1013
        %v1100 = vpop.permute.xlu0 %1099
        %1103 = vset.pattern.permute.xlu0 0
        %1104 = vperm.xlu0 %1103, %v1014
        %v1105 = vpop.permute.xlu0 %1104
        %1108 = vset.pattern.permute.xlu0 0
        %1109 = vperm.xlu0 %1108, %v1015
        %v1110 = vpop.permute.xlu0 %1109
        %1113 = vset.pattern.permute.xlu0 0
        %1114 = vperm.xlu0 %1113, %v1016
        %v1115 = vpop.permute.xlu0 %1114
        %1118 = vset.pattern.permute.xlu0 0
        %1119 = vperm.xlu0 %1118, %v1017
        %v1120 = vpop.permute.xlu0 %1119
        %1123 = vset.pattern.permute.xlu0 0
        %1124 = vperm.xlu0 %1123, %v1018
        %v1125 = vpop.permute.xlu0 %1124
        %1128 = vset.pattern.permute.xlu0 0
        %1129 = vperm.xlu0 %1128, %v1019
        %v1130 = vpop.permute.xlu0 %1129
        %1133 = vset.pattern.permute.xlu0 0
        %1134 = vperm.xlu0 %1133, %v1020
        %v1135 = vpop.permute.xlu0 %1134
        %1138 = vset.pattern.permute.xlu0 0
        %1139 = vperm.xlu0 %1138, %v1021
        %v1140 = vpop.permute.xlu0 %1139
        %1143 = vset.pattern.permute.xlu0 0
        %1144 = vperm.xlu0 %1143, %v1022
        %v1145 = vpop.permute.xlu0 %1144
        %1148 = vset.pattern.permute.xlu0 0
        %1149 = vperm.xlu0 %1148, %v1023
        %v1150 = vpop.permute.xlu0 %1149
        %v1152 = vsub.f32 %v898, %v1075
        %v1153 = vsub.f32 %v901, %v1080
        %v1154 = vsub.f32 %v906, %v1085
        %v1155 = vsub.f32 %v909, %v1090
        %v1156 = vsub.f32 %v914, %v1095
        %v1157 = vsub.f32 %v917, %v1100
        %v1158 = vsub.f32 %v922, %v1105
        %v1159 = vsub.f32 %v925, %v1110
        %v1160 = vsub.f32 %v930, %v1115
        %v1161 = vsub.f32 %v933, %v1120
        %v1162 = vsub.f32 %v938, %v1125
        %v1163 = vsub.f32 %v941, %v1130
        %v1164 = vsub.f32 %v946, %v1135
        %v1165 = vsub.f32 %v949, %v1140
        %v1166 = vsub.f32 %v954, %v1145
        %v1167 = vsub.f32 %v957, %v1150
        %v1168 = vmul.f32 %v1152, 1.442695
        %v1169 = vpow.pop %v1168
        %v1170 = vmul.f32 %v1153, 1.442695
        %v1171 = vpow.pop %v1170
        %v1172 = vmul.f32 %v1154, 1.442695
        %v1173 = vpow.pop %v1172
        %v1174 = vmul.f32 %v1155, 1.442695
        %v1175 = vpow.pop %v1174
        %v1176 = vmul.f32 %v1156, 1.442695
        %v1177 = vpow.pop %v1176
        %v1178 = vmul.f32 %v1157, 1.442695
        %v1179 = vpow.pop %v1178
        %v1180 = vmul.f32 %v1158, 1.442695
        %v1181 = vpow.pop %v1180
        %v1182 = vmul.f32 %v1159, 1.442695
        %v1183 = vpow.pop %v1182
        %v1184 = vmul.f32 %v1160, 1.442695
        %v1185 = vpow.pop %v1184
        %v1186 = vmul.f32 %v1161, 1.442695
        %v1187 = vpow.pop %v1186
        %v1188 = vmul.f32 %v1162, 1.442695
        %v1189 = vpow.pop %v1188
        %v1190 = vmul.f32 %v1163, 1.442695
        %v1191 = vpow.pop %v1190
        %v1192 = vmul.f32 %v1164, 1.442695
        %v1193 = vpow.pop %v1192
        %v1194 = vmul.f32 %v1165, 1.442695
        %v1195 = vpow.pop %v1194
        %v1196 = vmul.f32 %v1166, 1.442695
        %v1197 = vpow.pop %v1196
        %v1198 = vmul.f32 %v1167, 1.442695
        %v1199 = vpow.pop %v1198
        %v1200 = vld [vmem:[#allocation3] sm:$0xff]
        %v1201 = vld [vmem:[#allocation3 + $0x8] sm:$0xff]
        %v1202 = vld [vmem:[#allocation3 + $0x10] sm:$0xff]
        %v1203 = vld [vmem:[#allocation3 + $0x18] sm:$0xff]
        %v1204 = vld [vmem:[#allocation3 + $0x20] sm:$0xff]
        %v1205 = vld [vmem:[#allocation3 + $0x28] sm:$0xff]
        %v1206 = vld [vmem:[#allocation3 + $0x30] sm:$0xff]
        %v1207 = vld [vmem:[#allocation3 + $0x38] sm:$0xff]
        %v1208 = vld [vmem:[#allocation3 + $0x40] sm:$0xff]
        %v1209 = vld [vmem:[#allocation3 + $0x48] sm:$0xff]
        %v1210 = vld [vmem:[#allocation3 + $0x50] sm:$0xff]
        %v1211 = vld [vmem:[#allocation3 + $0x58] sm:$0xff]
        %v1212 = vld [vmem:[#allocation3 + $0x60] sm:$0xff]
        %v1213 = vld [vmem:[#allocation3 + $0x68] sm:$0xff]
        %v1214 = vld [vmem:[#allocation3 + $0x70] sm:$0xff]
        %v1215 = vld [vmem:[#allocation3 + $0x78] sm:$0xff]
        %v1216 = vmul.f32 %v1041, %v1200
        %v1217 = vmul.f32 %v1043, %v1201
        %v1218 = vmul.f32 %v1045, %v1202
        %v1219 = vmul.f32 %v1047, %v1203
        %v1220 = vmul.f32 %v1049, %v1204
        %v1221 = vmul.f32 %v1051, %v1205
        %v1222 = vmul.f32 %v1053, %v1206
        %v1223 = vmul.f32 %v1055, %v1207
        %v1224 = vmul.f32 %v1057, %v1208
        %v1225 = vmul.f32 %v1059, %v1209
        %v1226 = vmul.f32 %v1061, %v1210
        %v1227 = vmul.f32 %v1063, %v1211
        %v1228 = vmul.f32 %v1065, %v1212
        %v1229 = vmul.f32 %v1067, %v1213
        %v1230 = vmul.f32 %v1069, %v1214
        %v1231 = vmul.f32 %v1071, %v1215
        %1232 = vadd.xlane.f32.xlu0 %v1169
        %v1233 = vpop.xlane.xlu0 %1232
        %1234 = vadd.xlane.f32.xlu0 %v1171
        %v1235 = vpop.xlane.xlu0 %1234
        %1236 = vadd.xlane.f32.xlu0 %v1173
        %v1237 = vpop.xlane.xlu0 %1236
        %1238 = vadd.xlane.f32.xlu0 %v1175
        %v1239 = vpop.xlane.xlu0 %1238
        %1240 = vadd.xlane.f32.xlu0 %v1177
        %v1241 = vpop.xlane.xlu0 %1240
        %1242 = vadd.xlane.f32.xlu0 %v1179
        %v1243 = vpop.xlane.xlu0 %1242
        %1244 = vadd.xlane.f32.xlu0 %v1181
        %v1245 = vpop.xlane.xlu0 %1244
        %1246 = vadd.xlane.f32.xlu0 %v1183
        %v1247 = vpop.xlane.xlu0 %1246
        %1248 = vadd.xlane.f32.xlu0 %v1185
        %v1249 = vpop.xlane.xlu0 %1248
        %1250 = vadd.xlane.f32.xlu0 %v1187
        %v1251 = vpop.xlane.xlu0 %1250
        %1252 = vadd.xlane.f32.xlu0 %v1189
        %v1253 = vpop.xlane.xlu0 %1252
        %1254 = vadd.xlane.f32.xlu0 %v1191
        %v1255 = vpop.xlane.xlu0 %1254
        %1256 = vadd.xlane.f32.xlu0 %v1193
        %v1257 = vpop.xlane.xlu0 %1256
        %1258 = vadd.xlane.f32.xlu0 %v1195
        %v1259 = vpop.xlane.xlu0 %1258
        %1260 = vadd.xlane.f32.xlu0 %v1197
        %v1261 = vpop.xlane.xlu0 %1260
        %1262 = vadd.xlane.f32.xlu0 %v1199
        %v1263 = vpop.xlane.xlu0 %1262
        %v1264 = vadd.f32 %v1216, %v1233
        %v1265 = vadd.f32 %v1217, %v1235
        %v1266 = vadd.f32 %v1218, %v1237
        %v1267 = vadd.f32 %v1219, %v1239
        %v1268 = vadd.f32 %v1220, %v1241
        %v1269 = vadd.f32 %v1221, %v1243
        %v1270 = vadd.f32 %v1222, %v1245
        %v1271 = vadd.f32 %v1223, %v1247
        %v1272 = vadd.f32 %v1224, %v1249
        %v1273 = vadd.f32 %v1225, %v1251
        %v1274 = vadd.f32 %v1226, %v1253
        %v1275 = vadd.f32 %v1227, %v1255
        %v1276 = vadd.f32 %v1228, %v1257
        %v1277 = vadd.f32 %v1229, %v1259
        %v1278 = vadd.f32 %v1230, %v1261
        %v1279 = vadd.f32 %v1231, %v1263
        %vm1280 = vcmask 7168
        %1281 = vst.msk [vmem:[#allocation3] sm:$0xff] %vm1280, %v1264
        %1282 = vst.msk [vmem:[#allocation3 + $0x8] sm:$0xff] %vm1280, %v1265
        %1283 = vst.msk [vmem:[#allocation3 + $0x10] sm:$0xff] %vm1280, %v1266
        %1284 = vst.msk [vmem:[#allocation3 + $0x18] sm:$0xff] %vm1280, %v1267
        %1285 = vst.msk [vmem:[#allocation3 + $0x20] sm:$0xff] %vm1280, %v1268
        %1286 = vst.msk [vmem:[#allocation3 + $0x28] sm:$0xff] %vm1280, %v1269
        %1287 = vst.msk [vmem:[#allocation3 + $0x30] sm:$0xff] %vm1280, %v1270
        %1288 = vst.msk [vmem:[#allocation3 + $0x38] sm:$0xff] %vm1280, %v1271
        %1289 = vst.msk [vmem:[#allocation3 + $0x40] sm:$0xff] %vm1280, %v1272
        %1290 = vst.msk [vmem:[#allocation3 + $0x48] sm:$0xff] %vm1280, %v1273
        %1291 = vst.msk [vmem:[#allocation3 + $0x50] sm:$0xff] %vm1280, %v1274
        %1292 = vst.msk [vmem:[#allocation3 + $0x58] sm:$0xff] %vm1280, %v1275
        %1293 = vst.msk [vmem:[#allocation3 + $0x60] sm:$0xff] %vm1280, %v1276
        %1294 = vst.msk [vmem:[#allocation3 + $0x68] sm:$0xff] %vm1280, %v1277
        %1295 = vst.msk [vmem:[#allocation3 + $0x70] sm:$0xff] %vm1280, %v1278
        %1296 = vst.msk [vmem:[#allocation3 + $0x78] sm:$0xff] %vm1280, %v1279
        %v1297 = vld [vmem:[#allocation6] sm:$0xff]
        %v1298 = vld [vmem:[#allocation6 + $0x8] sm:$0xff]
        %v1299 = vld [vmem:[#allocation6 + $0x10] sm:$0xff]
        %v1300 = vld [vmem:[#allocation6 + $0x18] sm:$0xff]
        %v1301 = vld [vmem:[#allocation6 + $0x20] sm:$0xff]
        %v1302 = vld [vmem:[#allocation6 + $0x28] sm:$0xff]
        %v1303 = vld [vmem:[#allocation6 + $0x30] sm:$0xff]
        %v1304 = vld [vmem:[#allocation6 + $0x38] sm:$0xff]
        %v1305 = vld [vmem:[#allocation6 + $0x40] sm:$0xff]
        %v1306 = vld [vmem:[#allocation6 + $0x48] sm:$0xff]
        %v1307 = vld [vmem:[#allocation6 + $0x50] sm:$0xff]
        %v1308 = vld [vmem:[#allocation6 + $0x58] sm:$0xff]
        %v1309 = vld [vmem:[#allocation6 + $0x60] sm:$0xff]
        %v1310 = vld [vmem:[#allocation6 + $0x68] sm:$0xff]
        %v1311 = vld [vmem:[#allocation6 + $0x70] sm:$0xff]
        %v1312 = vld [vmem:[#allocation6 + $0x78] sm:$0xff]
        %1314 = vset.pattern.permute.xlu0 0
        %1315 = vperm.xlu0 %1314, %v1041
        %v1316 = vpop.permute.xlu0 %1315
        %1319 = vset.pattern.permute.xlu0 0
        %1320 = vperm.xlu0 %1319, %v1043
        %v1321 = vpop.permute.xlu0 %1320
        %1324 = vset.pattern.permute.xlu0 0
        %1325 = vperm.xlu0 %1324, %v1045
        %v1326 = vpop.permute.xlu0 %1325
        %1329 = vset.pattern.permute.xlu0 0
        %1330 = vperm.xlu0 %1329, %v1047
        %v1331 = vpop.permute.xlu0 %1330
        %1334 = vset.pattern.permute.xlu0 0
        %1335 = vperm.xlu0 %1334, %v1049
        %v1336 = vpop.permute.xlu0 %1335
        %1339 = vset.pattern.permute.xlu0 0
        %1340 = vperm.xlu0 %1339, %v1051
        %v1341 = vpop.permute.xlu0 %1340
        %1344 = vset.pattern.permute.xlu0 0
        %1345 = vperm.xlu0 %1344, %v1053
        %v1346 = vpop.permute.xlu0 %1345
        %1349 = vset.pattern.permute.xlu0 0
        %1350 = vperm.xlu0 %1349, %v1055
        %v1351 = vpop.permute.xlu0 %1350
        %1354 = vset.pattern.permute.xlu0 0
        %1355 = vperm.xlu0 %1354, %v1057
        %v1356 = vpop.permute.xlu0 %1355
        %1359 = vset.pattern.permute.xlu0 0
        %1360 = vperm.xlu0 %1359, %v1059
        %v1361 = vpop.permute.xlu0 %1360
        %1364 = vset.pattern.permute.xlu0 0
        %1365 = vperm.xlu0 %1364, %v1061
        %v1366 = vpop.permute.xlu0 %1365
        %1369 = vset.pattern.permute.xlu0 0
        %1370 = vperm.xlu0 %1369, %v1063
        %v1371 = vpop.permute.xlu0 %1370
        %1374 = vset.pattern.permute.xlu0 0
        %1375 = vperm.xlu0 %1374, %v1065
        %v1376 = vpop.permute.xlu0 %1375
        %1379 = vset.pattern.permute.xlu0 0
        %1380 = vperm.xlu0 %1379, %v1067
        %v1381 = vpop.permute.xlu0 %1380
        %1384 = vset.pattern.permute.xlu0 0
        %1385 = vperm.xlu0 %1384, %v1069
        %v1386 = vpop.permute.xlu0 %1385
        %1389 = vset.pattern.permute.xlu0 0
        %1390 = vperm.xlu0 %1389, %v1071
        %v1391 = vpop.permute.xlu0 %1390
        %v1393 = vmul.f32 %v1316, %v1297
        %v1394 = vmul.f32 %v1321, %v1298
        %v1395 = vmul.f32 %v1326, %v1299
        %v1396 = vmul.f32 %v1331, %v1300
        %v1397 = vmul.f32 %v1336, %v1301
        %v1398 = vmul.f32 %v1341, %v1302
        %v1399 = vmul.f32 %v1346, %v1303
        %v1400 = vmul.f32 %v1351, %v1304
        %v1401 = vmul.f32 %v1356, %v1305
        %v1402 = vmul.f32 %v1361, %v1306
        %v1403 = vmul.f32 %v1366, %v1307
        %v1404 = vmul.f32 %v1371, %v1308
        %v1405 = vmul.f32 %v1376, %v1309
        %v1406 = vmul.f32 %v1381, %v1310
        %v1407 = vmul.f32 %v1386, %v1311
        %v1408 = vmul.f32 %v1391, %v1312
        %v1409 = vpack.c.bf16 %v1171, %v1169
        %v1410 = vpack.c.bf16 %v1175, %v1173
        %v1411 = vpack.c.bf16 %v1179, %v1177
        %v1412 = vpack.c.bf16 %v1183, %v1181
        %v1413 = vpack.c.bf16 %v1187, %v1185
        %v1414 = vpack.c.bf16 %v1191, %v1189
        %v1415 = vpack.c.bf16 %v1195, %v1193
        %v1416 = vpack.c.bf16 %v1199, %v1197
        %1417 = vmatprep.subr.bf16.mxu0 0
        %1418 = vmatpush1.bf16.xpose.msra.mxu0 %v793
        %1419 = vmatprep.subr.bf16.mxu0 0
        %1420 = vmatpush1.bf16.xpose.msra.mxu0 0
        %1421 = vmatprep.subr.bf16.mxu0 0
        %1422 = vmatpush1.bf16.xpose.msra.mxu0 0
        %1423 = vmatprep.subr.bf16.mxu0 0
        %1424 = vmatpush1.bf16.xpose.msra.mxu0 0
        %1425 = vmatprep.subr.bf16.mxu0 0
        %1426 = vmatpush1.bf16.xpose.msra.mxu0 0
        %1427 = vmatprep.subr.bf16.mxu0 0
        %1428 = vmatpush1.bf16.xpose.msra.mxu0 0
        %1429 = vmatprep.subr.bf16.mxu0 0
        %1430 = vmatpush1.bf16.xpose.msra.mxu0 0
        %1431 = vmatprep.subr.bf16.mxu0 0
        %1432 = vmatpush1.bf16.xpose.msra.mxu0 0
        %1433 = vmatprep.subr.bf16.mxu0 0
        %1434 = vmatpush1.bf16.xpose.msra.mxu0 0
        %1435 = vmatprep.subr.bf16.mxu0 0
        %1436 = vmatpush1.bf16.xpose.msra.mxu0 0
        %1437 = vmatprep.subr.bf16.mxu0 0
        %1438 = vmatpush1.bf16.xpose.msra.mxu0 0
        %1439 = vmatprep.subr.bf16.mxu0 0
        %1440 = vmatpush1.bf16.xpose.msra.mxu0 0
        %1441 = vmatprep.subr.bf16.mxu0 0
        %1442 = vmatpush1.bf16.xpose.msra.mxu0 0
        %1443 = vmatprep.subr.bf16.mxu0 0
        %1444 = vmatpush1.bf16.xpose.msra.mxu0 0
        %1445 = vmatprep.subr.bf16.mxu0 0
        %1446 = vmatpush1.bf16.xpose.msra.mxu0 0
        %1447 = vmatprep.subr.bf16.mxu0 0
        %1448 = vmatpush1.bf16.xpose.msra.mxu0 0
        %1449 = vmatprep.mubr.bf16.mxu0 0
        %1450 = vmatmul.mubr.bf16.gmra.mrb[0].mxu0 %v1409
        %v1451 = vpop.f32.mrb[0].mxu0
        %v1452 = vadd.f32 0.0, %v1451
        %v1453 = vpop.f32.mrb[0].mxu0
        %v1454 = vpop.f32.mrb[0].mxu0
        %v1455 = vadd.f32 0.0, %v1454
        %v1456 = vpop.f32.mrb[0].mxu0
        %1457 = vmatprep.mubr.bf16.mxu0 0
        %1458 = vmatmul.mubr.bf16.gmra.mrb[0].mxu0 %v1410
        %v1459 = vpop.f32.mrb[0].mxu0
        %v1460 = vadd.f32 0.0, %v1459
        %v1461 = vpop.f32.mrb[0].mxu0
        %v1462 = vpop.f32.mrb[0].mxu0
        %v1463 = vadd.f32 0.0, %v1462
        %v1464 = vpop.f32.mrb[0].mxu0
        %1465 = vmatprep.mubr.bf16.mxu0 0
        %1466 = vmatmul.mubr.bf16.gmra.mrb[0].mxu0 %v1411
        %v1467 = vpop.f32.mrb[0].mxu0
        %v1468 = vadd.f32 0.0, %v1467
        %v1469 = vpop.f32.mrb[0].mxu0
        %v1470 = vpop.f32.mrb[0].mxu0
        %v1471 = vadd.f32 0.0, %v1470
        %v1472 = vpop.f32.mrb[0].mxu0
        %1473 = vmatprep.mubr.bf16.mxu0 0
        %1474 = vmatmul.mubr.bf16.gmra.mrb[0].mxu0 %v1412
        %v1475 = vpop.f32.mrb[0].mxu0
        %v1476 = vadd.f32 0.0, %v1475
        %v1477 = vpop.f32.mrb[0].mxu0
        %v1478 = vpop.f32.mrb[0].mxu0
        %v1479 = vadd.f32 0.0, %v1478
        %v1480 = vpop.f32.mrb[0].mxu0
        %1481 = vmatprep.mubr.bf16.mxu0 0
        %1482 = vmatmul.mubr.bf16.gmra.mrb[0].mxu0 %v1413
        %v1483 = vpop.f32.mrb[0].mxu0
        %v1484 = vadd.f32 0.0, %v1483
        %v1485 = vpop.f32.mrb[0].mxu0
        %v1486 = vpop.f32.mrb[0].mxu0
        %v1487 = vadd.f32 0.0, %v1486
        %v1488 = vpop.f32.mrb[0].mxu0
        %1489 = vmatprep.mubr.bf16.mxu0 0
        %1490 = vmatmul.mubr.bf16.gmra.mrb[0].mxu0 %v1414
        %v1491 = vpop.f32.mrb[0].mxu0
        %v1492 = vadd.f32 0.0, %v1491
        %v1493 = vpop.f32.mrb[0].mxu0
        %v1494 = vpop.f32.mrb[0].mxu0
        %v1495 = vadd.f32 0.0, %v1494
        %v1496 = vpop.f32.mrb[0].mxu0
        %1497 = vmatprep.mubr.bf16.mxu0 0
        %1498 = vmatmul.mubr.bf16.gmra.mrb[0].mxu0 %v1415
        %v1499 = vpop.f32.mrb[0].mxu0
        %v1500 = vadd.f32 0.0, %v1499
        %v1501 = vpop.f32.mrb[0].mxu0
        %v1502 = vpop.f32.mrb[0].mxu0
        %v1503 = vadd.f32 0.0, %v1502
        %v1504 = vpop.f32.mrb[0].mxu0
        %1505 = vmatprep.mubr.bf16.mxu0 0
        %1506 = vmatmul.mubr.bf16.gmra.mrb[0].mxu0 %v1416
        %v1507 = vpop.f32.mrb[0].mxu0
        %v1508 = vadd.f32 0.0, %v1507
        %v1509 = vpop.f32.mrb[0].mxu0
        %v1510 = vpop.f32.mrb[0].mxu0
        %v1511 = vadd.f32 0.0, %v1510
        %v1512 = vpop.f32.mrb[0].mxu0
        %1513 = vdwg.mxu0
        %v1514 = vadd.f32 %v1393, %v1452
        %v1515 = vadd.f32 %v1394, %v1455
        %v1516 = vadd.f32 %v1395, %v1460
        %v1517 = vadd.f32 %v1396, %v1463
        %v1518 = vadd.f32 %v1397, %v1468
        %v1519 = vadd.f32 %v1398, %v1471
        %v1520 = vadd.f32 %v1399, %v1476
        %v1521 = vadd.f32 %v1400, %v1479
        %v1522 = vadd.f32 %v1401, %v1484
        %v1523 = vadd.f32 %v1402, %v1487
        %v1524 = vadd.f32 %v1403, %v1492
        %v1525 = vadd.f32 %v1404, %v1495
        %v1526 = vadd.f32 %v1405, %v1500
        %v1527 = vadd.f32 %v1406, %v1503
        %v1528 = vadd.f32 %v1407, %v1508
        %v1529 = vadd.f32 %v1408, %v1511
        %1530 = vst.msk [vmem:[#allocation6] sm:$0xff] %vm834, %v1514
        %1531 = vst.msk [vmem:[#allocation6 + $0x8] sm:$0xff] %vm834, %v1515
        %1532 = vst.msk [vmem:[#allocation6 + $0x10] sm:$0xff] %vm834, %v1516
        %1533 = vst.msk [vmem:[#allocation6 + $0x18] sm:$0xff] %vm834, %v1517
        %1534 = vst.msk [vmem:[#allocation6 + $0x20] sm:$0xff] %vm834, %v1518
        %1535 = vst.msk [vmem:[#allocation6 + $0x28] sm:$0xff] %vm834, %v1519
        %1536 = vst.msk [vmem:[#allocation6 + $0x30] sm:$0xff] %vm834, %v1520
        %1537 = vst.msk [vmem:[#allocation6 + $0x38] sm:$0xff] %vm834, %v1521
        %1538 = vst.msk [vmem:[#allocation6 + $0x40] sm:$0xff] %vm834, %v1522
        %1539 = vst.msk [vmem:[#allocation6 + $0x48] sm:$0xff] %vm834, %v1523
        %1540 = vst.msk [vmem:[#allocation6 + $0x50] sm:$0xff] %vm834, %v1524
        %1541 = vst.msk [vmem:[#allocation6 + $0x58] sm:$0xff] %vm834, %v1525
        %1542 = vst.msk [vmem:[#allocation6 + $0x60] sm:$0xff] %vm834, %v1526
        %1543 = vst.msk [vmem:[#allocation6 + $0x68] sm:$0xff] %vm834, %v1527
        %1544 = vst.msk [vmem:[#allocation6 + $0x70] sm:$0xff] %vm834, %v1528
        %1545 = vst.msk [vmem:[#allocation6 + $0x78] sm:$0xff] %vm834, %v1529
        %1546 = vst.msk [vmem:[#allocation2] sm:$0xff] %vm1280, %v1008
        %1547 = vst.msk [vmem:[#allocation2 + $0x8] sm:$0xff] %vm1280, %v1009
        %1548 = vst.msk [vmem:[#allocation2 + $0x10] sm:$0xff] %vm1280, %v1010
        %1549 = vst.msk [vmem:[#allocation2 + $0x18] sm:$0xff] %vm1280, %v1011
        %1550 = vst.msk [vmem:[#allocation2 + $0x20] sm:$0xff] %vm1280, %v1012
        %1551 = vst.msk [vmem:[#allocation2 + $0x28] sm:$0xff] %vm1280, %v1013
        %1552 = vst.msk [vmem:[#allocation2 + $0x30] sm:$0xff] %vm1280, %v1014
        %1553 = vst.msk [vmem:[#allocation2 + $0x38] sm:$0xff] %vm1280, %v1015
        %1554 = vst.msk [vmem:[#allocation2 + $0x40] sm:$0xff] %vm1280, %v1016
        %1555 = vst.msk [vmem:[#allocation2 + $0x48] sm:$0xff] %vm1280, %v1017
        %1556 = vst.msk [vmem:[#allocation2 + $0x50] sm:$0xff] %vm1280, %v1018
        %1557 = vst.msk [vmem:[#allocation2 + $0x58] sm:$0xff] %vm1280, %v1019
        %1558 = vst.msk [vmem:[#allocation2 + $0x60] sm:$0xff] %vm1280, %v1020
        %1559 = vst.msk [vmem:[#allocation2 + $0x68] sm:$0xff] %vm1280, %v1021
        %1560 = vst.msk [vmem:[#allocation2 + $0x70] sm:$0xff] %vm1280, %v1022
        %1561 = vst.msk [vmem:[#allocation2 + $0x78] sm:$0xff] %vm1280, %v1023
        %s1562 = scalar_lea.vmem %s611, 64 [#allocation8]
        %v1563 = vld [vmem:[%s1562] sm:$0xf]
        %v1564 = vld [vmem:[%s1562 + $0x4] sm:$0xf]
        %v1565 = vld [vmem:[%s1562 + $0x8] sm:$0xf]
        %v1566 = vld [vmem:[%s1562 + $0xc] sm:$0xf]
        %v1567 = vld [vmem:[%s1562 + $0x10] sm:$0xf]
        %v1568 = vld [vmem:[%s1562 + $0x14] sm:$0xf]
        %v1569 = vld [vmem:[%s1562 + $0x18] sm:$0xf]
        %v1570 = vld [vmem:[%s1562 + $0x1c] sm:$0xf]
        %v1571 = vld [vmem:[%s1562 + $0x20] sm:$0xf]
        %v1572 = vld [vmem:[%s1562 + $0x24] sm:$0xf]
        %v1573 = vld [vmem:[%s1562 + $0x28] sm:$0xf]
        %v1574 = vld [vmem:[%s1562 + $0x2c] sm:$0xf]
        %v1575 = vld [vmem:[%s1562 + $0x30] sm:$0xf]
        %v1576 = vld [vmem:[%s1562 + $0x34] sm:$0xf]
        %v1577 = vld [vmem:[%s1562 + $0x38] sm:$0xf]
        %v1578 = vld [vmem:[%s1562 + $0x3c] sm:$0xf]
        %s1579 = scalar_lea.vmem %s618, 4 [#allocation9]
        %v1580 = vld [vmem:[%s1579] sm:$0xf]
        %s1581 = scalar_lea.vmem %s625, 4 [#allocation10]
        %v1582 = vld [vmem:[%s1581] sm:$0xf]
        %v1599 = vunpack.c.l.b16 %v1563
        %v1600 = vunpack.c.l.b16 %v1564
        %v1601 = vunpack.c.l.b16 %v1565
        %v1602 = vunpack.c.l.b16 %v1566
        %v1603 = vunpack.c.l.b16 %v1567
        %v1604 = vunpack.c.l.b16 %v1568
        %v1605 = vunpack.c.l.b16 %v1569
        %v1606 = vunpack.c.l.b16 %v1570
        %v1607 = vunpack.c.l.b16 %v1571
        %v1608 = vunpack.c.l.b16 %v1572
        %v1609 = vunpack.c.l.b16 %v1573
        %v1610 = vunpack.c.l.b16 %v1574
        %v1611 = vunpack.c.l.b16 %v1575
        %v1612 = vunpack.c.l.b16 %v1576
        %v1613 = vunpack.c.l.b16 %v1577
        %v1614 = vunpack.c.l.b16 %v1578
        %v1615 = vpack.c.b16 %v1600, %v1599
        %v1616 = vpack.c.b16 %v1602, %v1601
        %v1617 = vpack.c.b16 %v1604, %v1603
        %v1618 = vpack.c.b16 %v1606, %v1605
        %v1619 = vpack.c.b16 %v1608, %v1607
        %v1620 = vpack.c.b16 %v1610, %v1609
        %v1621 = vpack.c.b16 %v1612, %v1611
        %v1622 = vpack.c.b16 %v1614, %v1613
        %v1624 = vsel %vm834, %v1615, 0
        %v1627 = vsel %vm834, %v1616, 0
        %v1630 = vsel %vm834, %v1617, 0
        %v1633 = vsel %vm834, %v1618, 0
        %v1636 = vsel %vm834, %v1619, 0
        %v1639 = vsel %vm834, %v1620, 0
        %v1642 = vsel %vm834, %v1621, 0
        %v1645 = vsel %vm834, %v1622, 0
        %v1648 = vsel %vm859, %v1580, 0
        %1650 = vmatprep.subr.bf16.mxu0 0
        %1651 = vmatpush1.bf16.msra.mxu0 %v1648
        %1652 = vmatprep.subr.bf16.mxu0 0
        %1653 = vmatpush1.bf16.msra.mxu0 0
        %1654 = vmatprep.subr.bf16.mxu0 0
        %1655 = vmatpush1.bf16.msra.mxu0 0
        %1656 = vmatprep.subr.bf16.mxu0 0
        %1657 = vmatpush1.bf16.msra.mxu0 0
        %1658 = vmatprep.subr.bf16.mxu0 0
        %1659 = vmatpush1.bf16.msra.mxu0 0
        %1660 = vmatprep.subr.bf16.mxu0 0
        %1661 = vmatpush1.bf16.msra.mxu0 0
        %1662 = vmatprep.subr.bf16.mxu0 0
        %1663 = vmatpush1.bf16.msra.mxu0 0
        %1664 = vmatprep.subr.bf16.mxu0 0
        %1665 = vmatpush1.bf16.msra.mxu0 0
        %1666 = vmatprep.subr.bf16.mxu0 0
        %1667 = vmatpush1.bf16.msra.mxu0 0
        %1668 = vmatprep.subr.bf16.mxu0 0
        %1669 = vmatpush1.bf16.msra.mxu0 0
        %1670 = vmatprep.subr.bf16.mxu0 0
        %1671 = vmatpush1.bf16.msra.mxu0 0
        %1672 = vmatprep.subr.bf16.mxu0 0
        %1673 = vmatpush1.bf16.msra.mxu0 0
        %1674 = vmatprep.subr.bf16.mxu0 0
        %1675 = vmatpush1.bf16.msra.mxu0 0
        %1676 = vmatprep.subr.bf16.mxu0 0
        %1677 = vmatpush1.bf16.msra.mxu0 0
        %1678 = vmatprep.subr.bf16.mxu0 0
        %1679 = vmatpush1.bf16.msra.mxu0 0
        %1680 = vmatprep.subr.bf16.mxu0 0
        %1681 = vmatpush1.bf16.msra.mxu0 0
        %1682 = vmatprep.mubr.bf16.mxu0 0
        %1683 = vmatmul.mubr.bf16.gmra.mrb[0].mxu0 %v1624
        %v1684 = vpop.f32.mrb[0].mxu0
        %v1685 = vadd.f32 0.0, %v1684
        %v1686 = vpop.f32.mrb[0].mxu0
        %v1687 = vpop.f32.mrb[0].mxu0
        %v1688 = vadd.f32 0.0, %v1687
        %v1689 = vpop.f32.mrb[0].mxu0
        %1690 = vmatprep.mubr.bf16.mxu0 0
        %1691 = vmatmul.mubr.bf16.gmra.mrb[0].mxu0 %v1627
        %v1692 = vpop.f32.mrb[0].mxu0
        %v1693 = vadd.f32 0.0, %v1692
        %v1694 = vpop.f32.mrb[0].mxu0
        %v1695 = vpop.f32.mrb[0].mxu0
        %v1696 = vadd.f32 0.0, %v1695
        %v1697 = vpop.f32.mrb[0].mxu0
        %1698 = vmatprep.mubr.bf16.mxu0 0
        %1699 = vmatmul.mubr.bf16.gmra.mrb[0].mxu0 %v1630
        %v1700 = vpop.f32.mrb[0].mxu0
        %v1701 = vadd.f32 0.0, %v1700
        %v1702 = vpop.f32.mrb[0].mxu0
        %v1703 = vpop.f32.mrb[0].mxu0
        %v1704 = vadd.f32 0.0, %v1703
        %v1705 = vpop.f32.mrb[0].mxu0
        %1706 = vmatprep.mubr.bf16.mxu0 0
        %1707 = vmatmul.mubr.bf16.gmra.mrb[0].mxu0 %v1633
        %v1708 = vpop.f32.mrb[0].mxu0
        %v1709 = vadd.f32 0.0, %v1708
        %v1710 = vpop.f32.mrb[0].mxu0
        %v1711 = vpop.f32.mrb[0].mxu0
        %v1712 = vadd.f32 0.0, %v1711
        %v1713 = vpop.f32.mrb[0].mxu0
        %1714 = vmatprep.mubr.bf16.mxu0 0
        %1715 = vmatmul.mubr.bf16.gmra.mrb[0].mxu0 %v1636
        %v1716 = vpop.f32.mrb[0].mxu0
        %v1717 = vadd.f32 0.0, %v1716
        %v1718 = vpop.f32.mrb[0].mxu0
        %v1719 = vpop.f32.mrb[0].mxu0
        %v1720 = vadd.f32 0.0, %v1719
        %v1721 = vpop.f32.mrb[0].mxu0
        %1722 = vmatprep.mubr.bf16.mxu0 0
        %1723 = vmatmul.mubr.bf16.gmra.mrb[0].mxu0 %v1639
        %v1724 = vpop.f32.mrb[0].mxu0
        %v1725 = vadd.f32 0.0, %v1724
        %v1726 = vpop.f32.mrb[0].mxu0
        %v1727 = vpop.f32.mrb[0].mxu0
        %v1728 = vadd.f32 0.0, %v1727
        %v1729 = vpop.f32.mrb[0].mxu0
        %1730 = vmatprep.mubr.bf16.mxu0 0
        %1731 = vmatmul.mubr.bf16.gmra.mrb[0].mxu0 %v1642
        %v1732 = vpop.f32.mrb[0].mxu0
        %v1733 = vadd.f32 0.0, %v1732
        %v1734 = vpop.f32.mrb[0].mxu0
        %v1735 = vpop.f32.mrb[0].mxu0
        %v1736 = vadd.f32 0.0, %v1735
        %v1737 = vpop.f32.mrb[0].mxu0
        %1738 = vmatprep.mubr.bf16.mxu0 0
        %1739 = vmatmul.mubr.bf16.gmra.mrb[0].mxu0 %v1645
        %v1740 = vpop.f32.mrb[0].mxu0
        %v1741 = vadd.f32 0.0, %v1740
        %v1742 = vpop.f32.mrb[0].mxu0
        %v1743 = vpop.f32.mrb[0].mxu0
        %v1744 = vadd.f32 0.0, %v1743
        %v1745 = vpop.f32.mrb[0].mxu0
        %1746 = vdwg.mxu0
        %v1747 = vld [vmem:[#allocation4] sm:$0xff]
        %v1748 = vld [vmem:[#allocation4 + $0x8] sm:$0xff]
        %v1749 = vld [vmem:[#allocation4 + $0x10] sm:$0xff]
        %v1750 = vld [vmem:[#allocation4 + $0x18] sm:$0xff]
        %v1751 = vld [vmem:[#allocation4 + $0x20] sm:$0xff]
        %v1752 = vld [vmem:[#allocation4 + $0x28] sm:$0xff]
        %v1753 = vld [vmem:[#allocation4 + $0x30] sm:$0xff]
        %v1754 = vld [vmem:[#allocation4 + $0x38] sm:$0xff]
        %v1755 = vld [vmem:[#allocation4 + $0x40] sm:$0xff]
        %v1756 = vld [vmem:[#allocation4 + $0x48] sm:$0xff]
        %v1757 = vld [vmem:[#allocation4 + $0x50] sm:$0xff]
        %v1758 = vld [vmem:[#allocation4 + $0x58] sm:$0xff]
        %v1759 = vld [vmem:[#allocation4 + $0x60] sm:$0xff]
        %v1760 = vld [vmem:[#allocation4 + $0x68] sm:$0xff]
        %v1761 = vld [vmem:[#allocation4 + $0x70] sm:$0xff]
        %v1762 = vld [vmem:[#allocation4 + $0x78] sm:$0xff]
        %1763 = vmax.xlane.f32.xlu0 %v1685
        %v1764 = vpop.xlane.xlu0 %1763
        %1765 = vmax.xlane.f32.xlu0 %v1688
        %v1766 = vpop.xlane.xlu0 %1765
        %1767 = vmax.xlane.f32.xlu0 %v1693
        %v1768 = vpop.xlane.xlu0 %1767
        %1769 = vmax.xlane.f32.xlu0 %v1696
        %v1770 = vpop.xlane.xlu0 %1769
        %1771 = vmax.xlane.f32.xlu0 %v1701
        %v1772 = vpop.xlane.xlu0 %1771
        %1773 = vmax.xlane.f32.xlu0 %v1704
        %v1774 = vpop.xlane.xlu0 %1773
        %1775 = vmax.xlane.f32.xlu0 %v1709
        %v1776 = vpop.xlane.xlu0 %1775
        %1777 = vmax.xlane.f32.xlu0 %v1712
        %v1778 = vpop.xlane.xlu0 %1777
        %1779 = vmax.xlane.f32.xlu0 %v1717
        %v1780 = vpop.xlane.xlu0 %1779
        %1781 = vmax.xlane.f32.xlu0 %v1720
        %v1782 = vpop.xlane.xlu0 %1781
        %1783 = vmax.xlane.f32.xlu0 %v1725
        %v1784 = vpop.xlane.xlu0 %1783
        %1785 = vmax.xlane.f32.xlu0 %v1728
        %v1786 = vpop.xlane.xlu0 %1785
        %1787 = vmax.xlane.f32.xlu0 %v1733
        %v1788 = vpop.xlane.xlu0 %1787
        %1789 = vmax.xlane.f32.xlu0 %v1736
        %v1790 = vpop.xlane.xlu0 %1789
        %1791 = vmax.xlane.f32.xlu0 %v1741
        %v1792 = vpop.xlane.xlu0 %1791
        %1793 = vmax.xlane.f32.xlu0 %v1744
        %v1794 = vpop.xlane.xlu0 %1793
        %v1795 = vmax.f32 %v1747, %v1764
        %v1796 = vmax.f32 %v1748, %v1766
        %v1797 = vmax.f32 %v1749, %v1768
        %v1798 = vmax.f32 %v1750, %v1770
        %v1799 = vmax.f32 %v1751, %v1772
        %v1800 = vmax.f32 %v1752, %v1774
        %v1801 = vmax.f32 %v1753, %v1776
        %v1802 = vmax.f32 %v1754, %v1778
        %v1803 = vmax.f32 %v1755, %v1780
        %v1804 = vmax.f32 %v1756, %v1782
        %v1805 = vmax.f32 %v1757, %v1784
        %v1806 = vmax.f32 %v1758, %v1786
        %v1807 = vmax.f32 %v1759, %v1788
        %v1808 = vmax.f32 %v1760, %v1790
        %v1809 = vmax.f32 %v1761, %v1792
        %v1810 = vmax.f32 %v1762, %v1794
        %v1811 = vsub.f32 %v1747, %v1795
        %v1812 = vsub.f32 %v1748, %v1796
        %v1813 = vsub.f32 %v1749, %v1797
        %v1814 = vsub.f32 %v1750, %v1798
        %v1815 = vsub.f32 %v1751, %v1799
        %v1816 = vsub.f32 %v1752, %v1800
        %v1817 = vsub.f32 %v1753, %v1801
        %v1818 = vsub.f32 %v1754, %v1802
        %v1819 = vsub.f32 %v1755, %v1803
        %v1820 = vsub.f32 %v1756, %v1804
        %v1821 = vsub.f32 %v1757, %v1805
        %v1822 = vsub.f32 %v1758, %v1806
        %v1823 = vsub.f32 %v1759, %v1807
        %v1824 = vsub.f32 %v1760, %v1808
        %v1825 = vsub.f32 %v1761, %v1809
        %v1826 = vsub.f32 %v1762, %v1810
        %v1827 = vmul.f32 %v1811, 1.442695
        %v1828 = vpow.pop %v1827
        %v1829 = vmul.f32 %v1812, 1.442695
        %v1830 = vpow.pop %v1829
        %v1831 = vmul.f32 %v1813, 1.442695
        %v1832 = vpow.pop %v1831
        %v1833 = vmul.f32 %v1814, 1.442695
        %v1834 = vpow.pop %v1833
        %v1835 = vmul.f32 %v1815, 1.442695
        %v1836 = vpow.pop %v1835
        %v1837 = vmul.f32 %v1816, 1.442695
        %v1838 = vpow.pop %v1837
        %v1839 = vmul.f32 %v1817, 1.442695
        %v1840 = vpow.pop %v1839
        %v1841 = vmul.f32 %v1818, 1.442695
        %v1842 = vpow.pop %v1841
        %v1843 = vmul.f32 %v1819, 1.442695
        %v1844 = vpow.pop %v1843
        %v1845 = vmul.f32 %v1820, 1.442695
        %v1846 = vpow.pop %v1845
        %v1847 = vmul.f32 %v1821, 1.442695
        %v1848 = vpow.pop %v1847
        %v1849 = vmul.f32 %v1822, 1.442695
        %v1850 = vpow.pop %v1849
        %v1851 = vmul.f32 %v1823, 1.442695
        %v1852 = vpow.pop %v1851
        %v1853 = vmul.f32 %v1824, 1.442695
        %v1854 = vpow.pop %v1853
        %v1855 = vmul.f32 %v1825, 1.442695
        %v1856 = vpow.pop %v1855
        %v1857 = vmul.f32 %v1826, 1.442695
        %v1858 = vpow.pop %v1857
        %1860 = vset.pattern.permute.xlu0 0
        %1861 = vperm.xlu0 %1860, %v1795
        %v1862 = vpop.permute.xlu0 %1861
        %1865 = vset.pattern.permute.xlu0 0
        %1866 = vperm.xlu0 %1865, %v1796
        %v1867 = vpop.permute.xlu0 %1866
        %1870 = vset.pattern.permute.xlu0 0
        %1871 = vperm.xlu0 %1870, %v1797
        %v1872 = vpop.permute.xlu0 %1871
        %1875 = vset.pattern.permute.xlu0 0
        %1876 = vperm.xlu0 %1875, %v1798
        %v1877 = vpop.permute.xlu0 %1876
        %1880 = vset.pattern.permute.xlu0 0
        %1881 = vperm.xlu0 %1880, %v1799
        %v1882 = vpop.permute.xlu0 %1881
        %1885 = vset.pattern.permute.xlu0 0
        %1886 = vperm.xlu0 %1885, %v1800
        %v1887 = vpop.permute.xlu0 %1886
        %1890 = vset.pattern.permute.xlu0 0
        %1891 = vperm.xlu0 %1890, %v1801
        %v1892 = vpop.permute.xlu0 %1891
        %1895 = vset.pattern.permute.xlu0 0
        %1896 = vperm.xlu0 %1895, %v1802
        %v1897 = vpop.permute.xlu0 %1896
        %1900 = vset.pattern.permute.xlu0 0
        %1901 = vperm.xlu0 %1900, %v1803
        %v1902 = vpop.permute.xlu0 %1901
        %1905 = vset.pattern.permute.xlu0 0
        %1906 = vperm.xlu0 %1905, %v1804
        %v1907 = vpop.permute.xlu0 %1906
        %1910 = vset.pattern.permute.xlu0 0
        %1911 = vperm.xlu0 %1910, %v1805
        %v1912 = vpop.permute.xlu0 %1911
        %1915 = vset.pattern.permute.xlu0 0
        %1916 = vperm.xlu0 %1915, %v1806
        %v1917 = vpop.permute.xlu0 %1916
        %1920 = vset.pattern.permute.xlu0 0
        %1921 = vperm.xlu0 %1920, %v1807
        %v1922 = vpop.permute.xlu0 %1921
        %1925 = vset.pattern.permute.xlu0 0
        %1926 = vperm.xlu0 %1925, %v1808
        %v1927 = vpop.permute.xlu0 %1926
        %1930 = vset.pattern.permute.xlu0 0
        %1931 = vperm.xlu0 %1930, %v1809
        %v1932 = vpop.permute.xlu0 %1931
        %1935 = vset.pattern.permute.xlu0 0
        %1936 = vperm.xlu0 %1935, %v1810
        %v1937 = vpop.permute.xlu0 %1936
        %v1939 = vsub.f32 %v1685, %v1862
        %v1940 = vsub.f32 %v1688, %v1867
        %v1941 = vsub.f32 %v1693, %v1872
        %v1942 = vsub.f32 %v1696, %v1877
        %v1943 = vsub.f32 %v1701, %v1882
        %v1944 = vsub.f32 %v1704, %v1887
        %v1945 = vsub.f32 %v1709, %v1892
        %v1946 = vsub.f32 %v1712, %v1897
        %v1947 = vsub.f32 %v1717, %v1902
        %v1948 = vsub.f32 %v1720, %v1907
        %v1949 = vsub.f32 %v1725, %v1912
        %v1950 = vsub.f32 %v1728, %v1917
        %v1951 = vsub.f32 %v1733, %v1922
        %v1952 = vsub.f32 %v1736, %v1927
        %v1953 = vsub.f32 %v1741, %v1932
        %v1954 = vsub.f32 %v1744, %v1937
        %v1955 = vmul.f32 %v1939, 1.442695
        %v1956 = vpow.pop %v1955
        %v1957 = vmul.f32 %v1940, 1.442695
        %v1958 = vpow.pop %v1957
        %v1959 = vmul.f32 %v1941, 1.442695
        %v1960 = vpow.pop %v1959
        %v1961 = vmul.f32 %v1942, 1.442695
        %v1962 = vpow.pop %v1961
        %v1963 = vmul.f32 %v1943, 1.442695
        %v1964 = vpow.pop %v1963
        %v1965 = vmul.f32 %v1944, 1.442695
        %v1966 = vpow.pop %v1965
        %v1967 = vmul.f32 %v1945, 1.442695
        %v1968 = vpow.pop %v1967
        %v1969 = vmul.f32 %v1946, 1.442695
        %v1970 = vpow.pop %v1969
        %v1971 = vmul.f32 %v1947, 1.442695
        %v1972 = vpow.pop %v1971
        %v1973 = vmul.f32 %v1948, 1.442695
        %v1974 = vpow.pop %v1973
        %v1975 = vmul.f32 %v1949, 1.442695
        %v1976 = vpow.pop %v1975
        %v1977 = vmul.f32 %v1950, 1.442695
        %v1978 = vpow.pop %v1977
        %v1979 = vmul.f32 %v1951, 1.442695
        %v1980 = vpow.pop %v1979
        %v1981 = vmul.f32 %v1952, 1.442695
        %v1982 = vpow.pop %v1981
        %v1983 = vmul.f32 %v1953, 1.442695
        %v1984 = vpow.pop %v1983
        %v1985 = vmul.f32 %v1954, 1.442695
        %v1986 = vpow.pop %v1985
        %v1987 = vld [vmem:[#allocation5] sm:$0xff]
        %v1988 = vld [vmem:[#allocation5 + $0x8] sm:$0xff]
        %v1989 = vld [vmem:[#allocation5 + $0x10] sm:$0xff]
        %v1990 = vld [vmem:[#allocation5 + $0x18] sm:$0xff]
        %v1991 = vld [vmem:[#allocation5 + $0x20] sm:$0xff]
        %v1992 = vld [vmem:[#allocation5 + $0x28] sm:$0xff]
        %v1993 = vld [vmem:[#allocation5 + $0x30] sm:$0xff]
        %v1994 = vld [vmem:[#allocation5 + $0x38] sm:$0xff]
        %v1995 = vld [vmem:[#allocation5 + $0x40] sm:$0xff]
        %v1996 = vld [vmem:[#allocation5 + $0x48] sm:$0xff]
        %v1997 = vld [vmem:[#allocation5 + $0x50] sm:$0xff]
        %v1998 = vld [vmem:[#allocation5 + $0x58] sm:$0xff]
        %v1999 = vld [vmem:[#allocation5 + $0x60] sm:$0xff]
        %v2000 = vld [vmem:[#allocation5 + $0x68] sm:$0xff]
        %v2001 = vld [vmem:[#allocation5 + $0x70] sm:$0xff]
        %v2002 = vld [vmem:[#allocation5 + $0x78] sm:$0xff]
        %v2003 = vmul.f32 %v1828, %v1987
        %v2004 = vmul.f32 %v1830, %v1988
        %v2005 = vmul.f32 %v1832, %v1989
        %v2006 = vmul.f32 %v1834, %v1990
        %v2007 = vmul.f32 %v1836, %v1991
        %v2008 = vmul.f32 %v1838, %v1992
        %v2009 = vmul.f32 %v1840, %v1993
        %v2010 = vmul.f32 %v1842, %v1994
        %v2011 = vmul.f32 %v1844, %v1995
        %v2012 = vmul.f32 %v1846, %v1996
        %v2013 = vmul.f32 %v1848, %v1997
        %v2014 = vmul.f32 %v1850, %v1998
        %v2015 = vmul.f32 %v1852, %v1999
        %v2016 = vmul.f32 %v1854, %v2000
        %v2017 = vmul.f32 %v1856, %v2001
        %v2018 = vmul.f32 %v1858, %v2002
        %2019 = vadd.xlane.f32.xlu0 %v1956
        %v2020 = vpop.xlane.xlu0 %2019
        %2021 = vadd.xlane.f32.xlu0 %v1958
        %v2022 = vpop.xlane.xlu0 %2021
        %2023 = vadd.xlane.f32.xlu0 %v1960
        %v2024 = vpop.xlane.xlu0 %2023
        %2025 = vadd.xlane.f32.xlu0 %v1962
        %v2026 = vpop.xlane.xlu0 %2025
        %2027 = vadd.xlane.f32.xlu0 %v1964
        %v2028 = vpop.xlane.xlu0 %2027
        %2029 = vadd.xlane.f32.xlu0 %v1966
        %v2030 = vpop.xlane.xlu0 %2029
        %2031 = vadd.xlane.f32.xlu0 %v1968
        %v2032 = vpop.xlane.xlu0 %2031
        %2033 = vadd.xlane.f32.xlu0 %v1970
        %v2034 = vpop.xlane.xlu0 %2033
        %2035 = vadd.xlane.f32.xlu0 %v1972
        %v2036 = vpop.xlane.xlu0 %2035
        %2037 = vadd.xlane.f32.xlu0 %v1974
        %v2038 = vpop.xlane.xlu0 %2037
        %2039 = vadd.xlane.f32.xlu0 %v1976
        %v2040 = vpop.xlane.xlu0 %2039
        %2041 = vadd.xlane.f32.xlu0 %v1978
        %v2042 = vpop.xlane.xlu0 %2041
        %2043 = vadd.xlane.f32.xlu0 %v1980
        %v2044 = vpop.xlane.xlu0 %2043
        %2045 = vadd.xlane.f32.xlu0 %v1982
        %v2046 = vpop.xlane.xlu0 %2045
        %2047 = vadd.xlane.f32.xlu0 %v1984
        %v2048 = vpop.xlane.xlu0 %2047
        %2049 = vadd.xlane.f32.xlu0 %v1986
        %v2050 = vpop.xlane.xlu0 %2049
        %v2051 = vadd.f32 %v2003, %v2020
        %v2052 = vadd.f32 %v2004, %v2022
        %v2053 = vadd.f32 %v2005, %v2024
        %v2054 = vadd.f32 %v2006, %v2026
        %v2055 = vadd.f32 %v2007, %v2028
        %v2056 = vadd.f32 %v2008, %v2030
        %v2057 = vadd.f32 %v2009, %v2032
        %v2058 = vadd.f32 %v2010, %v2034
        %v2059 = vadd.f32 %v2011, %v2036
        %v2060 = vadd.f32 %v2012, %v2038
        %v2061 = vadd.f32 %v2013, %v2040
        %v2062 = vadd.f32 %v2014, %v2042
        %v2063 = vadd.f32 %v2015, %v2044
        %v2064 = vadd.f32 %v2016, %v2046
        %v2065 = vadd.f32 %v2017, %v2048
        %v2066 = vadd.f32 %v2018, %v2050
        %2067 = vst.msk [vmem:[#allocation5] sm:$0xff] %vm1280, %v2051
        %2068 = vst.msk [vmem:[#allocation5 + $0x8] sm:$0xff] %vm1280, %v2052
        %2069 = vst.msk [vmem:[#allocation5 + $0x10] sm:$0xff] %vm1280, %v2053
        %2070 = vst.msk [vmem:[#allocation5 + $0x18] sm:$0xff] %vm1280, %v2054
        %2071 = vst.msk [vmem:[#allocation5 + $0x20] sm:$0xff] %vm1280, %v2055
        %2072 = vst.msk [vmem:[#allocation5 + $0x28] sm:$0xff] %vm1280, %v2056
        %2073 = vst.msk [vmem:[#allocation5 + $0x30] sm:$0xff] %vm1280, %v2057
        %2074 = vst.msk [vmem:[#allocation5 + $0x38] sm:$0xff] %vm1280, %v2058
        %2075 = vst.msk [vmem:[#allocation5 + $0x40] sm:$0xff] %vm1280, %v2059
        %2076 = vst.msk [vmem:[#allocation5 + $0x48] sm:$0xff] %vm1280, %v2060
        %2077 = vst.msk [vmem:[#allocation5 + $0x50] sm:$0xff] %vm1280, %v2061
        %2078 = vst.msk [vmem:[#allocation5 + $0x58] sm:$0xff] %vm1280, %v2062
        %2079 = vst.msk [vmem:[#allocation5 + $0x60] sm:$0xff] %vm1280, %v2063
        %2080 = vst.msk [vmem:[#allocation5 + $0x68] sm:$0xff] %vm1280, %v2064
        %2081 = vst.msk [vmem:[#allocation5 + $0x70] sm:$0xff] %vm1280, %v2065
        %2082 = vst.msk [vmem:[#allocation5 + $0x78] sm:$0xff] %vm1280, %v2066
        %v2083 = vld [vmem:[#allocation7] sm:$0xff]
        %v2084 = vld [vmem:[#allocation7 + $0x8] sm:$0xff]
        %v2085 = vld [vmem:[#allocation7 + $0x10] sm:$0xff]
        %v2086 = vld [vmem:[#allocation7 + $0x18] sm:$0xff]
        %v2087 = vld [vmem:[#allocation7 + $0x20] sm:$0xff]
        %v2088 = vld [vmem:[#allocation7 + $0x28] sm:$0xff]
        %v2089 = vld [vmem:[#allocation7 + $0x30] sm:$0xff]
        %v2090 = vld [vmem:[#allocation7 + $0x38] sm:$0xff]
        %v2091 = vld [vmem:[#allocation7 + $0x40] sm:$0xff]
        %v2092 = vld [vmem:[#allocation7 + $0x48] sm:$0xff]
        %v2093 = vld [vmem:[#allocation7 + $0x50] sm:$0xff]
        %v2094 = vld [vmem:[#allocation7 + $0x58] sm:$0xff]
        %v2095 = vld [vmem:[#allocation7 + $0x60] sm:$0xff]
        %v2096 = vld [vmem:[#allocation7 + $0x68] sm:$0xff]
        %v2097 = vld [vmem:[#allocation7 + $0x70] sm:$0xff]
        %v2098 = vld [vmem:[#allocation7 + $0x78] sm:$0xff]
        %2100 = vset.pattern.permute.xlu0 0
        %2101 = vperm.xlu0 %2100, %v1828
        %v2102 = vpop.permute.xlu0 %2101
        %2105 = vset.pattern.permute.xlu0 0
        %2106 = vperm.xlu0 %2105, %v1830
        %v2107 = vpop.permute.xlu0 %2106
        %2110 = vset.pattern.permute.xlu0 0
        %2111 = vperm.xlu0 %2110, %v1832
        %v2112 = vpop.permute.xlu0 %2111
        %2115 = vset.pattern.permute.xlu0 0
        %2116 = vperm.xlu0 %2115, %v1834
        %v2117 = vpop.permute.xlu0 %2116
        %2120 = vset.pattern.permute.xlu0 0
        %2121 = vperm.xlu0 %2120, %v1836
        %v2122 = vpop.permute.xlu0 %2121
        %2125 = vset.pattern.permute.xlu0 0
        %2126 = vperm.xlu0 %2125, %v1838
        %v2127 = vpop.permute.xlu0 %2126
        %2130 = vset.pattern.permute.xlu0 0
        %2131 = vperm.xlu0 %2130, %v1840
        %v2132 = vpop.permute.xlu0 %2131
        %2135 = vset.pattern.permute.xlu0 0
        %2136 = vperm.xlu0 %2135, %v1842
        %v2137 = vpop.permute.xlu0 %2136
        %2140 = vset.pattern.permute.xlu0 0
        %2141 = vperm.xlu0 %2140, %v1844
        %v2142 = vpop.permute.xlu0 %2141
        %2145 = vset.pattern.permute.xlu0 0
        %2146 = vperm.xlu0 %2145, %v1846
        %v2147 = vpop.permute.xlu0 %2146
        %2150 = vset.pattern.permute.xlu0 0
        %2151 = vperm.xlu0 %2150, %v1848
        %v2152 = vpop.permute.xlu0 %2151
        %2155 = vset.pattern.permute.xlu0 0
        %2156 = vperm.xlu0 %2155, %v1850
        %v2157 = vpop.permute.xlu0 %2156
        %2160 = vset.pattern.permute.xlu0 0
        %2161 = vperm.xlu0 %2160, %v1852
        %v2162 = vpop.permute.xlu0 %2161
        %2165 = vset.pattern.permute.xlu0 0
        %2166 = vperm.xlu0 %2165, %v1854
        %v2167 = vpop.permute.xlu0 %2166
        %2170 = vset.pattern.permute.xlu0 0
        %2171 = vperm.xlu0 %2170, %v1856
        %v2172 = vpop.permute.xlu0 %2171
        %2175 = vset.pattern.permute.xlu0 0
        %2176 = vperm.xlu0 %2175, %v1858
        %v2177 = vpop.permute.xlu0 %2176
        %v2179 = vmul.f32 %v2102, %v2083
        %v2180 = vmul.f32 %v2107, %v2084
        %v2181 = vmul.f32 %v2112, %v2085
        %v2182 = vmul.f32 %v2117, %v2086
        %v2183 = vmul.f32 %v2122, %v2087
        %v2184 = vmul.f32 %v2127, %v2088
        %v2185 = vmul.f32 %v2132, %v2089
        %v2186 = vmul.f32 %v2137, %v2090
        %v2187 = vmul.f32 %v2142, %v2091
        %v2188 = vmul.f32 %v2147, %v2092
        %v2189 = vmul.f32 %v2152, %v2093
        %v2190 = vmul.f32 %v2157, %v2094
        %v2191 = vmul.f32 %v2162, %v2095
        %v2192 = vmul.f32 %v2167, %v2096
        %v2193 = vmul.f32 %v2172, %v2097
        %v2194 = vmul.f32 %v2177, %v2098
        %v2195 = vpack.c.bf16 %v1958, %v1956
        %v2196 = vpack.c.bf16 %v1962, %v1960
        %v2197 = vpack.c.bf16 %v1966, %v1964
        %v2198 = vpack.c.bf16 %v1970, %v1968
        %v2199 = vpack.c.bf16 %v1974, %v1972
        %v2200 = vpack.c.bf16 %v1978, %v1976
        %v2201 = vpack.c.bf16 %v1982, %v1980
        %v2202 = vpack.c.bf16 %v1986, %v1984
        %2203 = vmatprep.subr.bf16.mxu0 0
        %2204 = vmatpush1.bf16.xpose.msra.mxu0 %v1582
        %2205 = vmatprep.subr.bf16.mxu0 0
        %2206 = vmatpush1.bf16.xpose.msra.mxu0 0
        %2207 = vmatprep.subr.bf16.mxu0 0
        %2208 = vmatpush1.bf16.xpose.msra.mxu0 0
        %2209 = vmatprep.subr.bf16.mxu0 0
        %2210 = vmatpush1.bf16.xpose.msra.mxu0 0
        %2211 = vmatprep.subr.bf16.mxu0 0
        %2212 = vmatpush1.bf16.xpose.msra.mxu0 0
        %2213 = vmatprep.subr.bf16.mxu0 0
        %2214 = vmatpush1.bf16.xpose.msra.mxu0 0
        %2215 = vmatprep.subr.bf16.mxu0 0
        %2216 = vmatpush1.bf16.xpose.msra.mxu0 0
        %2217 = vmatprep.subr.bf16.mxu0 0
        %2218 = vmatpush1.bf16.xpose.msra.mxu0 0
        %2219 = vmatprep.subr.bf16.mxu0 0
        %2220 = vmatpush1.bf16.xpose.msra.mxu0 0
        %2221 = vmatprep.subr.bf16.mxu0 0
        %2222 = vmatpush1.bf16.xpose.msra.mxu0 0
        %2223 = vmatprep.subr.bf16.mxu0 0
        %2224 = vmatpush1.bf16.xpose.msra.mxu0 0
        %2225 = vmatprep.subr.bf16.mxu0 0
        %2226 = vmatpush1.bf16.xpose.msra.mxu0 0
        %2227 = vmatprep.subr.bf16.mxu0 0
        %2228 = vmatpush1.bf16.xpose.msra.mxu0 0
        %2229 = vmatprep.subr.bf16.mxu0 0
        %2230 = vmatpush1.bf16.xpose.msra.mxu0 0
        %2231 = vmatprep.subr.bf16.mxu0 0
        %2232 = vmatpush1.bf16.xpose.msra.mxu0 0
        %2233 = vmatprep.subr.bf16.mxu0 0
        %2234 = vmatpush1.bf16.xpose.msra.mxu0 0
        %2235 = vmatprep.mubr.bf16.mxu0 0
        %2236 = vmatmul.mubr.bf16.gmra.mrb[0].mxu0 %v2195
        %v2237 = vpop.f32.mrb[0].mxu0
        %v2238 = vadd.f32 0.0, %v2237
        %v2239 = vpop.f32.mrb[0].mxu0
        %v2240 = vpop.f32.mrb[0].mxu0
        %v2241 = vadd.f32 0.0, %v2240
        %v2242 = vpop.f32.mrb[0].mxu0
        %2243 = vmatprep.mubr.bf16.mxu0 0
        %2244 = vmatmul.mubr.bf16.gmra.mrb[0].mxu0 %v2196
        %v2245 = vpop.f32.mrb[0].mxu0
        %v2246 = vadd.f32 0.0, %v2245
        %v2247 = vpop.f32.mrb[0].mxu0
        %v2248 = vpop.f32.mrb[0].mxu0
        %v2249 = vadd.f32 0.0, %v2248
        %v2250 = vpop.f32.mrb[0].mxu0
        %2251 = vmatprep.mubr.bf16.mxu0 0
        %2252 = vmatmul.mubr.bf16.gmra.mrb[0].mxu0 %v2197
        %v2253 = vpop.f32.mrb[0].mxu0
        %v2254 = vadd.f32 0.0, %v2253
        %v2255 = vpop.f32.mrb[0].mxu0
        %v2256 = vpop.f32.mrb[0].mxu0
        %v2257 = vadd.f32 0.0, %v2256
        %v2258 = vpop.f32.mrb[0].mxu0
        %2259 = vmatprep.mubr.bf16.mxu0 0
        %2260 = vmatmul.mubr.bf16.gmra.mrb[0].mxu0 %v2198
        %v2261 = vpop.f32.mrb[0].mxu0
        %v2262 = vadd.f32 0.0, %v2261
        %v2263 = vpop.f32.mrb[0].mxu0
        %v2264 = vpop.f32.mrb[0].mxu0
        %v2265 = vadd.f32 0.0, %v2264
        %v2266 = vpop.f32.mrb[0].mxu0
        %2267 = vmatprep.mubr.bf16.mxu0 0
        %2268 = vmatmul.mubr.bf16.gmra.mrb[0].mxu0 %v2199
        %v2269 = vpop.f32.mrb[0].mxu0
        %v2270 = vadd.f32 0.0, %v2269
        %v2271 = vpop.f32.mrb[0].mxu0
        %v2272 = vpop.f32.mrb[0].mxu0
        %v2273 = vadd.f32 0.0, %v2272
        %v2274 = vpop.f32.mrb[0].mxu0
        %2275 = vmatprep.mubr.bf16.mxu0 0
        %2276 = vmatmul.mubr.bf16.gmra.mrb[0].mxu0 %v2200
        %v2277 = vpop.f32.mrb[0].mxu0
        %v2278 = vadd.f32 0.0, %v2277
        %v2279 = vpop.f32.mrb[0].mxu0
        %v2280 = vpop.f32.mrb[0].mxu0
        %v2281 = vadd.f32 0.0, %v2280
        %v2282 = vpop.f32.mrb[0].mxu0
        %2283 = vmatprep.mubr.bf16.mxu0 0
        %2284 = vmatmul.mubr.bf16.gmra.mrb[0].mxu0 %v2201
        %v2285 = vpop.f32.mrb[0].mxu0
        %v2286 = vadd.f32 0.0, %v2285
        %v2287 = vpop.f32.mrb[0].mxu0
        %v2288 = vpop.f32.mrb[0].mxu0
        %v2289 = vadd.f32 0.0, %v2288
        %v2290 = vpop.f32.mrb[0].mxu0
        %2291 = vmatprep.mubr.bf16.mxu0 0
        %2292 = vmatmul.mubr.bf16.gmra.mrb[0].mxu0 %v2202
        %v2293 = vpop.f32.mrb[0].mxu0
        %v2294 = vadd.f32 0.0, %v2293
        %v2295 = vpop.f32.mrb[0].mxu0
        %v2296 = vpop.f32.mrb[0].mxu0
        %v2297 = vadd.f32 0.0, %v2296
        %v2298 = vpop.f32.mrb[0].mxu0
        %2299 = vdwg.mxu0
        %v2300 = vadd.f32 %v2179, %v2238
        %v2301 = vadd.f32 %v2180, %v2241
        %v2302 = vadd.f32 %v2181, %v2246
        %v2303 = vadd.f32 %v2182, %v2249
        %v2304 = vadd.f32 %v2183, %v2254
        %v2305 = vadd.f32 %v2184, %v2257
        %v2306 = vadd.f32 %v2185, %v2262
        %v2307 = vadd.f32 %v2186, %v2265
        %v2308 = vadd.f32 %v2187, %v2270
        %v2309 = vadd.f32 %v2188, %v2273
        %v2310 = vadd.f32 %v2189, %v2278
        %v2311 = vadd.f32 %v2190, %v2281
        %v2312 = vadd.f32 %v2191, %v2286
        %v2313 = vadd.f32 %v2192, %v2289
        %v2314 = vadd.f32 %v2193, %v2294
        %v2315 = vadd.f32 %v2194, %v2297
        %2316 = vst.msk [vmem:[#allocation7] sm:$0xff] %vm834, %v2300
        %2317 = vst.msk [vmem:[#allocation7 + $0x8] sm:$0xff] %vm834, %v2301
        %2318 = vst.msk [vmem:[#allocation7 + $0x10] sm:$0xff] %vm834, %v2302
        %2319 = vst.msk [vmem:[#allocation7 + $0x18] sm:$0xff] %vm834, %v2303
        %2320 = vst.msk [vmem:[#allocation7 + $0x20] sm:$0xff] %vm834, %v2304
        %2321 = vst.msk [vmem:[#allocation7 + $0x28] sm:$0xff] %vm834, %v2305
        %2322 = vst.msk [vmem:[#allocation7 + $0x30] sm:$0xff] %vm834, %v2306
        %2323 = vst.msk [vmem:[#allocation7 + $0x38] sm:$0xff] %vm834, %v2307
        %2324 = vst.msk [vmem:[#allocation7 + $0x40] sm:$0xff] %vm834, %v2308
        %2325 = vst.msk [vmem:[#allocation7 + $0x48] sm:$0xff] %vm834, %v2309
        %2326 = vst.msk [vmem:[#allocation7 + $0x50] sm:$0xff] %vm834, %v2310
        %2327 = vst.msk [vmem:[#allocation7 + $0x58] sm:$0xff] %vm834, %v2311
        %2328 = vst.msk [vmem:[#allocation7 + $0x60] sm:$0xff] %vm834, %v2312
        %2329 = vst.msk [vmem:[#allocation7 + $0x68] sm:$0xff] %vm834, %v2313
        %2330 = vst.msk [vmem:[#allocation7 + $0x70] sm:$0xff] %vm834, %v2314
        %2331 = vst.msk [vmem:[#allocation7 + $0x78] sm:$0xff] %vm834, %v2315
        %2332 = vst.msk [vmem:[#allocation4] sm:$0xff] %vm1280, %v1795
        %2333 = vst.msk [vmem:[#allocation4 + $0x8] sm:$0xff] %vm1280, %v1796
        %2334 = vst.msk [vmem:[#allocation4 + $0x10] sm:$0xff] %vm1280, %v1797
        %2335 = vst.msk [vmem:[#allocation4 + $0x18] sm:$0xff] %vm1280, %v1798
        %2336 = vst.msk [vmem:[#allocation4 + $0x20] sm:$0xff] %vm1280, %v1799
        %2337 = vst.msk [vmem:[#allocation4 + $0x28] sm:$0xff] %vm1280, %v1800
        %2338 = vst.msk [vmem:[#allocation4 + $0x30] sm:$0xff] %vm1280, %v1801
        %2339 = vst.msk [vmem:[#allocation4 + $0x38] sm:$0xff] %vm1280, %v1802
        %2340 = vst.msk [vmem:[#allocation4 + $0x40] sm:$0xff] %vm1280, %v1803
        %2341 = vst.msk [vmem:[#allocation4 + $0x48] sm:$0xff] %vm1280, %v1804
        %2342 = vst.msk [vmem:[#allocation4 + $0x50] sm:$0xff] %vm1280, %v1805
        %2343 = vst.msk [vmem:[#allocation4 + $0x58] sm:$0xff] %vm1280, %v1806
        %2344 = vst.msk [vmem:[#allocation4 + $0x60] sm:$0xff] %vm1280, %v1807
        %2345 = vst.msk [vmem:[#allocation4 + $0x68] sm:$0xff] %vm1280, %v1808
        %2346 = vst.msk [vmem:[#allocation4 + $0x70] sm:$0xff] %vm1280, %v1809
        %2347 = vst.msk [vmem:[#allocation4 + $0x78] sm:$0xff] %vm1280, %v1810
        %p2348 = scmp.eq.s32.totalorder %s25, 1
        // Predicated region
        $region214: #{scc_module_forward.3} parent=192 // pred_check
          %p2349 = pneg %p2348
        $region215: #{scc_module_forward.3} parent=192 // pred_check_branch
          %2351 = sbr.rel (%p2349) target = $region217
        $region216: #{scc_module_forward.3} parent=192 // pred_region
          %v2352 = vld [vmem:[#allocation6] sm:$0xff]
          %v2353 = vld [vmem:[#allocation6 + $0x8] sm:$0xff]
          %v2354 = vld [vmem:[#allocation6 + $0x10] sm:$0xff]
          %v2355 = vld [vmem:[#allocation6 + $0x18] sm:$0xff]
          %v2356 = vld [vmem:[#allocation6 + $0x20] sm:$0xff]
          %v2357 = vld [vmem:[#allocation6 + $0x28] sm:$0xff]
          %v2358 = vld [vmem:[#allocation6 + $0x30] sm:$0xff]
          %v2359 = vld [vmem:[#allocation6 + $0x38] sm:$0xff]
          %v2360 = vld [vmem:[#allocation6 + $0x40] sm:$0xff]
          %v2361 = vld [vmem:[#allocation6 + $0x48] sm:$0xff]
          %v2362 = vld [vmem:[#allocation6 + $0x50] sm:$0xff]
          %v2363 = vld [vmem:[#allocation6 + $0x58] sm:$0xff]
          %v2364 = vld [vmem:[#allocation6 + $0x60] sm:$0xff]
          %v2365 = vld [vmem:[#allocation6 + $0x68] sm:$0xff]
          %v2366 = vld [vmem:[#allocation6 + $0x70] sm:$0xff]
          %v2367 = vld [vmem:[#allocation6 + $0x78] sm:$0xff]
          %v2368 = vld [vmem:[#allocation3] sm:$0xff]
          %v2369 = vld [vmem:[#allocation3 + $0x8] sm:$0xff]
          %v2370 = vld [vmem:[#allocation3 + $0x10] sm:$0xff]
          %v2371 = vld [vmem:[#allocation3 + $0x18] sm:$0xff]
          %v2372 = vld [vmem:[#allocation3 + $0x20] sm:$0xff]
          %v2373 = vld [vmem:[#allocation3 + $0x28] sm:$0xff]
          %v2374 = vld [vmem:[#allocation3 + $0x30] sm:$0xff]
          %v2375 = vld [vmem:[#allocation3 + $0x38] sm:$0xff]
          %v2376 = vld [vmem:[#allocation3 + $0x40] sm:$0xff]
          %v2377 = vld [vmem:[#allocation3 + $0x48] sm:$0xff]
          %v2378 = vld [vmem:[#allocation3 + $0x50] sm:$0xff]
          %v2379 = vld [vmem:[#allocation3 + $0x58] sm:$0xff]
          %v2380 = vld [vmem:[#allocation3 + $0x60] sm:$0xff]
          %v2381 = vld [vmem:[#allocation3 + $0x68] sm:$0xff]
          %v2382 = vld [vmem:[#allocation3 + $0x70] sm:$0xff]
          %v2383 = vld [vmem:[#allocation3 + $0x78] sm:$0xff]
          %2385 = vset.pattern.permute.xlu0 0
          %2386 = vperm.xlu0 %2385, %v2368
          %v2387 = vpop.permute.xlu0 %2386
          %2390 = vset.pattern.permute.xlu0 0
          %2391 = vperm.xlu0 %2390, %v2369
          %v2392 = vpop.permute.xlu0 %2391
          %2395 = vset.pattern.permute.xlu0 0
          %2396 = vperm.xlu0 %2395, %v2370
          %v2397 = vpop.permute.xlu0 %2396
          %2400 = vset.pattern.permute.xlu0 0
          %2401 = vperm.xlu0 %2400, %v2371
          %v2402 = vpop.permute.xlu0 %2401
          %2405 = vset.pattern.permute.xlu0 0
          %2406 = vperm.xlu0 %2405, %v2372
          %v2407 = vpop.permute.xlu0 %2406
          %2410 = vset.pattern.permute.xlu0 0
          %2411 = vperm.xlu0 %2410, %v2373
          %v2412 = vpop.permute.xlu0 %2411
          %2415 = vset.pattern.permute.xlu0 0
          %2416 = vperm.xlu0 %2415, %v2374
          %v2417 = vpop.permute.xlu0 %2416
          %2420 = vset.pattern.permute.xlu0 0
          %2421 = vperm.xlu0 %2420, %v2375
          %v2422 = vpop.permute.xlu0 %2421
          %2425 = vset.pattern.permute.xlu0 0
          %2426 = vperm.xlu0 %2425, %v2376
          %v2427 = vpop.permute.xlu0 %2426
          %2430 = vset.pattern.permute.xlu0 0
          %2431 = vperm.xlu0 %2430, %v2377
          %v2432 = vpop.permute.xlu0 %2431
          %2435 = vset.pattern.permute.xlu0 0
          %2436 = vperm.xlu0 %2435, %v2378
          %v2437 = vpop.permute.xlu0 %2436
          %2440 = vset.pattern.permute.xlu0 0
          %2441 = vperm.xlu0 %2440, %v2379
          %v2442 = vpop.permute.xlu0 %2441
          %2445 = vset.pattern.permute.xlu0 0
          %2446 = vperm.xlu0 %2445, %v2380
          %v2447 = vpop.permute.xlu0 %2446
          %2450 = vset.pattern.permute.xlu0 0
          %2451 = vperm.xlu0 %2450, %v2381
          %v2452 = vpop.permute.xlu0 %2451
          %2455 = vset.pattern.permute.xlu0 0
          %2456 = vperm.xlu0 %2455, %v2382
          %v2457 = vpop.permute.xlu0 %2456
          %2460 = vset.pattern.permute.xlu0 0
          %2461 = vperm.xlu0 %2460, %v2383
          %v2462 = vpop.permute.xlu0 %2461
          %v2464 = vrcp.pop %v2387
          %v2465 = vmul.f32 %v2352, %v2464
          %v2466 = vrcp.pop %v2392
          %v2467 = vmul.f32 %v2353, %v2466
          %v2468 = vrcp.pop %v2397
          %v2469 = vmul.f32 %v2354, %v2468
          %v2470 = vrcp.pop %v2402
          %v2471 = vmul.f32 %v2355, %v2470
          %v2472 = vrcp.pop %v2407
          %v2473 = vmul.f32 %v2356, %v2472
          %v2474 = vrcp.pop %v2412
          %v2475 = vmul.f32 %v2357, %v2474
          %v2476 = vrcp.pop %v2417
          %v2477 = vmul.f32 %v2358, %v2476
          %v2478 = vrcp.pop %v2422
          %v2479 = vmul.f32 %v2359, %v2478
          %v2480 = vrcp.pop %v2427
          %v2481 = vmul.f32 %v2360, %v2480
          %v2482 = vrcp.pop %v2432
          %v2483 = vmul.f32 %v2361, %v2482
          %v2484 = vrcp.pop %v2437
          %v2485 = vmul.f32 %v2362, %v2484
          %v2486 = vrcp.pop %v2442
          %v2487 = vmul.f32 %v2363, %v2486
          %v2488 = vrcp.pop %v2447
          %v2489 = vmul.f32 %v2364, %v2488
          %v2490 = vrcp.pop %v2452
          %v2491 = vmul.f32 %v2365, %v2490
          %v2492 = vrcp.pop %v2457
          %v2493 = vmul.f32 %v2366, %v2492
          %v2494 = vrcp.pop %v2462
          %v2495 = vmul.f32 %v2367, %v2494
          %v2496 = vpack.c.bf16 %v2467, %v2465
          %v2497 = vpack.c.bf16 %v2471, %v2469
          %v2498 = vpack.c.bf16 %v2475, %v2473
          %v2499 = vpack.c.bf16 %v2479, %v2477
          %v2500 = vpack.c.bf16 %v2483, %v2481
          %v2501 = vpack.c.bf16 %v2487, %v2485
          %v2502 = vpack.c.bf16 %v2491, %v2489
          %v2503 = vpack.c.bf16 %v2495, %v2493
          %v2504 = vld [vmem:[#allocation7] sm:$0xff]
          %v2505 = vld [vmem:[#allocation7 + $0x8] sm:$0xff]
          %v2506 = vld [vmem:[#allocation7 + $0x10] sm:$0xff]
          %v2507 = vld [vmem:[#allocation7 + $0x18] sm:$0xff]
          %v2508 = vld [vmem:[#allocation7 + $0x20] sm:$0xff]
          %v2509 = vld [vmem:[#allocation7 + $0x28] sm:$0xff]
          %v2510 = vld [vmem:[#allocation7 + $0x30] sm:$0xff]
          %v2511 = vld [vmem:[#allocation7 + $0x38] sm:$0xff]
          %v2512 = vld [vmem:[#allocation7 + $0x40] sm:$0xff]
          %v2513 = vld [vmem:[#allocation7 + $0x48] sm:$0xff]
          %v2514 = vld [vmem:[#allocation7 + $0x50] sm:$0xff]
          %v2515 = vld [vmem:[#allocation7 + $0x58] sm:$0xff]
          %v2516 = vld [vmem:[#allocation7 + $0x60] sm:$0xff]
          %v2517 = vld [vmem:[#allocation7 + $0x68] sm:$0xff]
          %v2518 = vld [vmem:[#allocation7 + $0x70] sm:$0xff]
          %v2519 = vld [vmem:[#allocation7 + $0x78] sm:$0xff]
          %v2520 = vld [vmem:[#allocation5] sm:$0xff]
          %v2521 = vld [vmem:[#allocation5 + $0x8] sm:$0xff]
          %v2522 = vld [vmem:[#allocation5 + $0x10] sm:$0xff]
          %v2523 = vld [vmem:[#allocation5 + $0x18] sm:$0xff]
          %v2524 = vld [vmem:[#allocation5 + $0x20] sm:$0xff]
          %v2525 = vld [vmem:[#allocation5 + $0x28] sm:$0xff]
          %v2526 = vld [vmem:[#allocation5 + $0x30] sm:$0xff]
          %v2527 = vld [vmem:[#allocation5 + $0x38] sm:$0xff]
          %v2528 = vld [vmem:[#allocation5 + $0x40] sm:$0xff]
          %v2529 = vld [vmem:[#allocation5 + $0x48] sm:$0xff]
          %v2530 = vld [vmem:[#allocation5 + $0x50] sm:$0xff]
          %v2531 = vld [vmem:[#allocation5 + $0x58] sm:$0xff]
          %v2532 = vld [vmem:[#allocation5 + $0x60] sm:$0xff]
          %v2533 = vld [vmem:[#allocation5 + $0x68] sm:$0xff]
          %v2534 = vld [vmem:[#allocation5 + $0x70] sm:$0xff]
          %v2535 = vld [vmem:[#allocation5 + $0x78] sm:$0xff]
          %2537 = vset.pattern.permute.xlu0 0
          %2538 = vperm.xlu0 %2537, %v2520
          %v2539 = vpop.permute.xlu0 %2538
          %2542 = vset.pattern.permute.xlu0 0
          %2543 = vperm.xlu0 %2542, %v2521
          %v2544 = vpop.permute.xlu0 %2543
          %2547 = vset.pattern.permute.xlu0 0
          %2548 = vperm.xlu0 %2547, %v2522
          %v2549 = vpop.permute.xlu0 %2548
          %2552 = vset.pattern.permute.xlu0 0
          %2553 = vperm.xlu0 %2552, %v2523
          %v2554 = vpop.permute.xlu0 %2553
          %2557 = vset.pattern.permute.xlu0 0
          %2558 = vperm.xlu0 %2557, %v2524
          %v2559 = vpop.permute.xlu0 %2558
          %2562 = vset.pattern.permute.xlu0 0
          %2563 = vperm.xlu0 %2562, %v2525
          %v2564 = vpop.permute.xlu0 %2563
          %2567 = vset.pattern.permute.xlu0 0
          %2568 = vperm.xlu0 %2567, %v2526
          %v2569 = vpop.permute.xlu0 %2568
          %2572 = vset.pattern.permute.xlu0 0
          %2573 = vperm.xlu0 %2572, %v2527
          %v2574 = vpop.permute.xlu0 %2573
          %2577 = vset.pattern.permute.xlu0 0
          %2578 = vperm.xlu0 %2577, %v2528
          %v2579 = vpop.permute.xlu0 %2578
          %2582 = vset.pattern.permute.xlu0 0
          %2583 = vperm.xlu0 %2582, %v2529
          %v2584 = vpop.permute.xlu0 %2583
          %2587 = vset.pattern.permute.xlu0 0
          %2588 = vperm.xlu0 %2587, %v2530
          %v2589 = vpop.permute.xlu0 %2588
          %2592 = vset.pattern.permute.xlu0 0
          %2593 = vperm.xlu0 %2592, %v2531
          %v2594 = vpop.permute.xlu0 %2593
          %2597 = vset.pattern.permute.xlu0 0
          %2598 = vperm.xlu0 %2597, %v2532
          %v2599 = vpop.permute.xlu0 %2598
          %2602 = vset.pattern.permute.xlu0 0
          %2603 = vperm.xlu0 %2602, %v2533
          %v2604 = vpop.permute.xlu0 %2603
          %2607 = vset.pattern.permute.xlu0 0
          %2608 = vperm.xlu0 %2607, %v2534
          %v2609 = vpop.permute.xlu0 %2608
          %2612 = vset.pattern.permute.xlu0 0
          %2613 = vperm.xlu0 %2612, %v2535
          %v2614 = vpop.permute.xlu0 %2613
          %v2616 = vrcp.pop %v2539
          %v2617 = vmul.f32 %v2504, %v2616
          %v2618 = vrcp.pop %v2544
          %v2619 = vmul.f32 %v2505, %v2618
          %v2620 = vrcp.pop %v2549
          %v2621 = vmul.f32 %v2506, %v2620
          %v2622 = vrcp.pop %v2554
          %v2623 = vmul.f32 %v2507, %v2622
          %v2624 = vrcp.pop %v2559
          %v2625 = vmul.f32 %v2508, %v2624
          %v2626 = vrcp.pop %v2564
          %v2627 = vmul.f32 %v2509, %v2626
          %v2628 = vrcp.pop %v2569
          %v2629 = vmul.f32 %v2510, %v2628
          %v2630 = vrcp.pop %v2574
          %v2631 = vmul.f32 %v2511, %v2630
          %v2632 = vrcp.pop %v2579
          %v2633 = vmul.f32 %v2512, %v2632
          %v2634 = vrcp.pop %v2584
          %v2635 = vmul.f32 %v2513, %v2634
          %v2636 = vrcp.pop %v2589
          %v2637 = vmul.f32 %v2514, %v2636
          %v2638 = vrcp.pop %v2594
          %v2639 = vmul.f32 %v2515, %v2638
          %v2640 = vrcp.pop %v2599
          %v2641 = vmul.f32 %v2516, %v2640
          %v2642 = vrcp.pop %v2604
          %v2643 = vmul.f32 %v2517, %v2642
          %v2644 = vrcp.pop %v2609
          %v2645 = vmul.f32 %v2518, %v2644
          %v2646 = vrcp.pop %v2614
          %v2647 = vmul.f32 %v2519, %v2646
          %v2648 = vpack.c.bf16 %v2619, %v2617
          %v2649 = vpack.c.bf16 %v2623, %v2621
          %v2650 = vpack.c.bf16 %v2627, %v2625
          %v2651 = vpack.c.bf16 %v2631, %v2629
          %v2652 = vpack.c.bf16 %v2635, %v2633
          %v2653 = vpack.c.bf16 %v2639, %v2637
          %v2654 = vpack.c.bf16 %v2643, %v2641
          %v2655 = vpack.c.bf16 %v2647, %v2645
          %v2656 = vld [vmem:[%s4] sm:$0xf]
          %v2657 = vld [vmem:[%s5] sm:$0xf]
          %v2659 = vsel %vm834, %v2648, 0
          %v2662 = vsel %vm834, %v2649, 0
          %v2665 = vsel %vm834, %v2650, 0
          %v2668 = vsel %vm834, %v2651, 0
          %v2671 = vsel %vm834, %v2652, 0
          %v2674 = vsel %vm834, %v2653, 0
          %v2677 = vsel %vm834, %v2654, 0
          %v2680 = vsel %vm834, %v2655, 0
          %v2683 = vsel %vm859, %v2657, 0
          %2685 = vmatprep.subr.bf16.mxu0 0
          %2686 = vmatpush1.bf16.msra.mxu0 %v2683
          %2687 = vmatprep.subr.bf16.mxu0 0
          %2688 = vmatpush1.bf16.msra.mxu0 0
          %2689 = vmatprep.subr.bf16.mxu0 0
          %2690 = vmatpush1.bf16.msra.mxu0 0
          %2691 = vmatprep.subr.bf16.mxu0 0
          %2692 = vmatpush1.bf16.msra.mxu0 0
          %2693 = vmatprep.subr.bf16.mxu0 0
          %2694 = vmatpush1.bf16.msra.mxu0 0
          %2695 = vmatprep.subr.bf16.mxu0 0
          %2696 = vmatpush1.bf16.msra.mxu0 0
          %2697 = vmatprep.subr.bf16.mxu0 0
          %2698 = vmatpush1.bf16.msra.mxu0 0
          %2699 = vmatprep.subr.bf16.mxu0 0
          %2700 = vmatpush1.bf16.msra.mxu0 0
          %2701 = vmatprep.subr.bf16.mxu0 0
          %2702 = vmatpush1.bf16.msra.mxu0 0
          %2703 = vmatprep.subr.bf16.mxu0 0
          %2704 = vmatpush1.bf16.msra.mxu0 0
          %2705 = vmatprep.subr.bf16.mxu0 0
          %2706 = vmatpush1.bf16.msra.mxu0 0
          %2707 = vmatprep.subr.bf16.mxu0 0
          %2708 = vmatpush1.bf16.msra.mxu0 0
          %2709 = vmatprep.subr.bf16.mxu0 0
          %2710 = vmatpush1.bf16.msra.mxu0 0
          %2711 = vmatprep.subr.bf16.mxu0 0
          %2712 = vmatpush1.bf16.msra.mxu0 0
          %2713 = vmatprep.subr.bf16.mxu0 0
          %2714 = vmatpush1.bf16.msra.mxu0 0
          %2715 = vmatprep.subr.bf16.mxu0 0
          %2716 = vmatpush1.bf16.msra.mxu0 0
          %2717 = vmatprep.mubr.bf16.mxu0 0
          %2718 = vmatmul.mubr.bf16.gmra.mrb[0].mxu0 %v2659
          %v2719 = vpop.f32.mrb[0].mxu0
          %v2720 = vadd.f32 0.0, %v2719
          %v2721 = vpop.f32.mrb[0].mxu0
          %v2722 = vpop.f32.mrb[0].mxu0
          %v2723 = vadd.f32 0.0, %v2722
          %v2724 = vpop.f32.mrb[0].mxu0
          %2725 = vmatprep.mubr.bf16.mxu0 0
          %2726 = vmatmul.mubr.bf16.gmra.mrb[0].mxu0 %v2662
          %v2727 = vpop.f32.mrb[0].mxu0
          %v2728 = vadd.f32 0.0, %v2727
          %v2729 = vpop.f32.mrb[0].mxu0
          %v2730 = vpop.f32.mrb[0].mxu0
          %v2731 = vadd.f32 0.0, %v2730
          %v2732 = vpop.f32.mrb[0].mxu0
          %2733 = vmatprep.mubr.bf16.mxu0 0
          %2734 = vmatmul.mubr.bf16.gmra.mrb[0].mxu0 %v2665
          %v2735 = vpop.f32.mrb[0].mxu0
          %v2736 = vadd.f32 0.0, %v2735
          %v2737 = vpop.f32.mrb[0].mxu0
          %v2738 = vpop.f32.mrb[0].mxu0
          %v2739 = vadd.f32 0.0, %v2738
          %v2740 = vpop.f32.mrb[0].mxu0
          %2741 = vmatprep.mubr.bf16.mxu0 0
          %2742 = vmatmul.mubr.bf16.gmra.mrb[0].mxu0 %v2668
          %v2743 = vpop.f32.mrb[0].mxu0
          %v2744 = vadd.f32 0.0, %v2743
          %v2745 = vpop.f32.mrb[0].mxu0
          %v2746 = vpop.f32.mrb[0].mxu0
          %v2747 = vadd.f32 0.0, %v2746
          %v2748 = vpop.f32.mrb[0].mxu0
          %2749 = vmatprep.mubr.bf16.mxu0 0
          %2750 = vmatmul.mubr.bf16.gmra.mrb[0].mxu0 %v2671
          %v2751 = vpop.f32.mrb[0].mxu0
          %v2752 = vadd.f32 0.0, %v2751
          %v2753 = vpop.f32.mrb[0].mxu0
          %v2754 = vpop.f32.mrb[0].mxu0
          %v2755 = vadd.f32 0.0, %v2754
          %v2756 = vpop.f32.mrb[0].mxu0
          %2757 = vmatprep.mubr.bf16.mxu0 0
          %2758 = vmatmul.mubr.bf16.gmra.mrb[0].mxu0 %v2674
          %v2759 = vpop.f32.mrb[0].mxu0
          %v2760 = vadd.f32 0.0, %v2759
          %v2761 = vpop.f32.mrb[0].mxu0
          %v2762 = vpop.f32.mrb[0].mxu0
          %v2763 = vadd.f32 0.0, %v2762
          %v2764 = vpop.f32.mrb[0].mxu0
          %2765 = vmatprep.mubr.bf16.mxu0 0
          %2766 = vmatmul.mubr.bf16.gmra.mrb[0].mxu0 %v2677
          %v2767 = vpop.f32.mrb[0].mxu0
          %v2768 = vadd.f32 0.0, %v2767
          %v2769 = vpop.f32.mrb[0].mxu0
          %v2770 = vpop.f32.mrb[0].mxu0
          %v2771 = vadd.f32 0.0, %v2770
          %v2772 = vpop.f32.mrb[0].mxu0
          %2773 = vmatprep.mubr.bf16.mxu0 0
          %2774 = vmatmul.mubr.bf16.gmra.mrb[0].mxu0 %v2680
          %v2775 = vpop.f32.mrb[0].mxu0
          %v2776 = vadd.f32 0.0, %v2775
          %v2777 = vpop.f32.mrb[0].mxu0
          %v2778 = vpop.f32.mrb[0].mxu0
          %v2779 = vadd.f32 0.0, %v2778
          %v2780 = vpop.f32.mrb[0].mxu0
          %2781 = vdwg.mxu0
          %v2783 = vsel %vm834, %v2496, 0
          %v2786 = vsel %vm834, %v2497, 0
          %v2789 = vsel %vm834, %v2498, 0
          %v2792 = vsel %vm834, %v2499, 0
          %v2795 = vsel %vm834, %v2500, 0
          %v2798 = vsel %vm834, %v2501, 0
          %v2801 = vsel %vm834, %v2502, 0
          %v2804 = vsel %vm834, %v2503, 0
          %v2807 = vsel %vm859, %v2656, 0
          %2809 = vmatprep.subr.bf16.mxu0 0
          %2810 = vmatpush1.bf16.msra.mxu0 %v2807
          %2811 = vmatprep.subr.bf16.mxu0 0
          %2812 = vmatpush1.bf16.msra.mxu0 0
          %2813 = vmatprep.subr.bf16.mxu0 0
          %2814 = vmatpush1.bf16.msra.mxu0 0
          %2815 = vmatprep.subr.bf16.mxu0 0
          %2816 = vmatpush1.bf16.msra.mxu0 0
          %2817 = vmatprep.subr.bf16.mxu0 0
          %2818 = vmatpush1.bf16.msra.mxu0 0
          %2819 = vmatprep.subr.bf16.mxu0 0
          %2820 = vmatpush1.bf16.msra.mxu0 0
          %2821 = vmatprep.subr.bf16.mxu0 0
          %2822 = vmatpush1.bf16.msra.mxu0 0
          %2823 = vmatprep.subr.bf16.mxu0 0
          %2824 = vmatpush1.bf16.msra.mxu0 0
          %2825 = vmatprep.subr.bf16.mxu0 0
          %2826 = vmatpush1.bf16.msra.mxu0 0
          %2827 = vmatprep.subr.bf16.mxu0 0
          %2828 = vmatpush1.bf16.msra.mxu0 0
          %2829 = vmatprep.subr.bf16.mxu0 0
          %2830 = vmatpush1.bf16.msra.mxu0 0
          %2831 = vmatprep.subr.bf16.mxu0 0
          %2832 = vmatpush1.bf16.msra.mxu0 0
          %2833 = vmatprep.subr.bf16.mxu0 0
          %2834 = vmatpush1.bf16.msra.mxu0 0
          %2835 = vmatprep.subr.bf16.mxu0 0
          %2836 = vmatpush1.bf16.msra.mxu0 0
          %2837 = vmatprep.subr.bf16.mxu0 0
          %2838 = vmatpush1.bf16.msra.mxu0 0
          %2839 = vmatprep.subr.bf16.mxu0 0
          %2840 = vmatpush1.bf16.msra.mxu0 0
          %2841 = vmatprep.mubr.bf16.mxu0 0
          %2842 = vmatmul.mubr.bf16.gmra.mrb[0].mxu0 %v2783
          %v2843 = vpop.f32.mrb[0].mxu0
          %v2844 = vadd.f32 %v2720, %v2843
          %v2845 = vpop.f32.mrb[0].mxu0
          %v2846 = vpop.f32.mrb[0].mxu0
          %v2847 = vadd.f32 %v2723, %v2846
          %v2848 = vpop.f32.mrb[0].mxu0
          %2849 = vmatprep.mubr.bf16.mxu0 0
          %2850 = vmatmul.mubr.bf16.gmra.mrb[0].mxu0 %v2786
          %v2851 = vpop.f32.mrb[0].mxu0
          %v2852 = vadd.f32 %v2728, %v2851
          %v2853 = vpop.f32.mrb[0].mxu0
          %v2854 = vpop.f32.mrb[0].mxu0
          %v2855 = vadd.f32 %v2731, %v2854
          %v2856 = vpop.f32.mrb[0].mxu0
          %2857 = vmatprep.mubr.bf16.mxu0 0
          %2858 = vmatmul.mubr.bf16.gmra.mrb[0].mxu0 %v2789
          %v2859 = vpop.f32.mrb[0].mxu0
          %v2860 = vadd.f32 %v2736, %v2859
          %v2861 = vpop.f32.mrb[0].mxu0
          %v2862 = vpop.f32.mrb[0].mxu0
          %v2863 = vadd.f32 %v2739, %v2862
          %v2864 = vpop.f32.mrb[0].mxu0
          %2865 = vmatprep.mubr.bf16.mxu0 0
          %2866 = vmatmul.mubr.bf16.gmra.mrb[0].mxu0 %v2792
          %v2867 = vpop.f32.mrb[0].mxu0
          %v2868 = vadd.f32 %v2744, %v2867
          %v2869 = vpop.f32.mrb[0].mxu0
          %v2870 = vpop.f32.mrb[0].mxu0
          %v2871 = vadd.f32 %v2747, %v2870
          %v2872 = vpop.f32.mrb[0].mxu0
          %2873 = vmatprep.mubr.bf16.mxu0 0
          %2874 = vmatmul.mubr.bf16.gmra.mrb[0].mxu0 %v2795
          %v2875 = vpop.f32.mrb[0].mxu0
          %v2876 = vadd.f32 %v2752, %v2875
          %v2877 = vpop.f32.mrb[0].mxu0
          %v2878 = vpop.f32.mrb[0].mxu0
          %v2879 = vadd.f32 %v2755, %v2878
          %v2880 = vpop.f32.mrb[0].mxu0
          %2881 = vmatprep.mubr.bf16.mxu0 0
          %2882 = vmatmul.mubr.bf16.gmra.mrb[0].mxu0 %v2798
          %v2883 = vpop.f32.mrb[0].mxu0
          %v2884 = vadd.f32 %v2760, %v2883
          %v2885 = vpop.f32.mrb[0].mxu0
          %v2886 = vpop.f32.mrb[0].mxu0
          %v2887 = vadd.f32 %v2763, %v2886
          %v2888 = vpop.f32.mrb[0].mxu0
          %2889 = vmatprep.mubr.bf16.mxu0 0
          %2890 = vmatmul.mubr.bf16.gmra.mrb[0].mxu0 %v2801
          %v2891 = vpop.f32.mrb[0].mxu0
          %v2892 = vadd.f32 %v2768, %v2891
          %v2893 = vpop.f32.mrb[0].mxu0
          %v2894 = vpop.f32.mrb[0].mxu0
          %v2895 = vadd.f32 %v2771, %v2894
          %v2896 = vpop.f32.mrb[0].mxu0
          %2897 = vmatprep.mubr.bf16.mxu0 0
          %2898 = vmatmul.mubr.bf16.gmra.mrb[0].mxu0 %v2804
          %v2899 = vpop.f32.mrb[0].mxu0
          %v2900 = vadd.f32 %v2776, %v2899
          %v2901 = vpop.f32.mrb[0].mxu0
          %v2902 = vpop.f32.mrb[0].mxu0
          %v2903 = vadd.f32 %v2779, %v2902
          %v2904 = vpop.f32.mrb[0].mxu0
          %2905 = vdwg.mxu0
          %v2906 = vld [vmem:[%s6] sm:$0x1]
          %v2908 = vlaneseq
          %v2909 = vshrl.u32 %v2908, 7
          %v2910 = vsub.s32 0, %v2909
          %v2911 = vrot.slane %v2906, %v2910
          %v2913 = vadd.f32 %v2844, %v2911
          %v2914 = vadd.f32 %v2847, %v2911
          %v2915 = vadd.f32 %v2852, %v2911
          %v2916 = vadd.f32 %v2855, %v2911
          %v2917 = vadd.f32 %v2860, %v2911
          %v2918 = vadd.f32 %v2863, %v2911
          %v2919 = vadd.f32 %v2868, %v2911
          %v2920 = vadd.f32 %v2871, %v2911
          %v2921 = vadd.f32 %v2876, %v2911
          %v2922 = vadd.f32 %v2879, %v2911
          %v2923 = vadd.f32 %v2884, %v2911
          %v2924 = vadd.f32 %v2887, %v2911
          %v2925 = vadd.f32 %v2892, %v2911
          %v2926 = vadd.f32 %v2895, %v2911
          %v2927 = vadd.f32 %v2900, %v2911
          %v2928 = vadd.f32 %v2903, %v2911
          %2929 = vxpose.xlu0.b32.start [1/16] %v2913, 128
          %2930 = vxpose.xlu0.b32.cont [2/16] %v2914, 128
          %2931 = vxpose.xlu0.b32.cont [3/16] %v2915, 128
          %2932 = vxpose.xlu0.b32.cont [4/16] %v2916, 128
          %2933 = vxpose.xlu0.b32.cont [5/16] %v2917, 128
          %2934 = vxpose.xlu0.b32.cont [6/16] %v2918, 128
          %2935 = vxpose.xlu0.b32.cont [7/16] %v2919, 128
          %2936 = vxpose.xlu0.b32.cont [8/16] %v2920, 128
          %2937 = vxpose.xlu0.b32.cont [9/16] %v2921, 128
          %2938 = vxpose.xlu0.b32.cont [10/16] %v2922, 128
          %2939 = vxpose.xlu0.b32.cont [11/16] %v2923, 128
          %2940 = vxpose.xlu0.b32.cont [12/16] %v2924, 128
          %2941 = vxpose.xlu0.b32.cont [13/16] %v2925, 128
          %2942 = vxpose.xlu0.b32.cont [14/16] %v2926, 128
          %2943 = vxpose.xlu0.b32.cont [15/16] %v2927, 128
          %2944 = vxpose.xlu0.b32.end [16/16] %v2928, 128
          %v2945 = vpop.trf.xlu0
          %v2946 = vpop.trf.xlu0
          %v2947 = vpop.trf.xlu0
          %v2948 = vpop.trf.xlu0
          %v2949 = vpop.trf.xlu0
          %v2950 = vpop.trf.xlu0
          %v2951 = vpop.trf.xlu0
          %v2952 = vpop.trf.xlu0
          %v2953 = vpop.trf.xlu0
          %v2954 = vpop.trf.xlu0
          %v2955 = vpop.trf.xlu0
          %v2956 = vpop.trf.xlu0
          %v2957 = vpop.trf.xlu0
          %v2958 = vpop.trf.xlu0
          %v2959 = vpop.trf.xlu0
          %v2960 = vpop.trf.xlu0
          %v2961 = vld [vmem:[%s632] sm:$0xff]
          %v2962 = vld [vmem:[%s632 + $0x8] sm:$0xff]
          %v2963 = vld [vmem:[%s632 + $0x10] sm:$0xff]
          %v2964 = vld [vmem:[%s632 + $0x18] sm:$0xff]
          %v2965 = vadd.f32 %v2945, %v2961
          %v2966 = vadd.f32 %v2946, %v2962
          %v2967 = vadd.f32 %v2947, %v2963
          %v2968 = vadd.f32 %v2948, %v2964
          %2969 = vst [vmem:[%s671] sm:$0xff] %v2965
          %2970 = vst [vmem:[%s671 + $0x8] sm:$0xff] %v2966
          %2971 = vst [vmem:[%s671 + $0x10] sm:$0xff] %v2967
          %2972 = vst [vmem:[%s671 + $0x18] sm:$0xff] %v2968
        $region217: #{scc_module_forward.3} parent=192 // pred_fallthru
          _
        %s2973 = sand.u32 %s222, 1
        %s2974 = sand.u32 %s222, 1
        %s2975 = smul.addr %s2974, 32
        %s2976 = scalar_lea.vmem [#allocation12], %s2975
        // Predicated region
        $region218: #{scc_module_forward.3} parent=192 // pred_check
          %p2977 = pneg %p232
        $region219: #{scc_module_forward.3} parent=192 // pred_check_branch
          %2979 = sbr.rel (%p2977) target = $region221
        $region220: #{scc_module_forward.3} parent=192 // pred_region
          %s2980 = smul.addr %s23, 8
          %s2981 = sadd.s32 %s24, %s2980
          %s2982 = smul.addr %s2981, 8
          %s2983 = scalar_lea.vmem %s7, %s2982
          // Predicated region
          $region222: #{scc_module_forward.3} parent=220 // pred_check
            _
          $region223: #{scc_module_forward.3} parent=220 // pred_check_branch
            %2985 = sbr.rel (0) target = $region225
          $region224: #{scc_module_forward.3} parent=220 // pred_region
            // Predicated region
            $region226: #{scc_module_forward.3} parent=224 // pred_check
              _
            $region227: #{scc_module_forward.3} parent=224 // pred_check_branch
              %2987 = sbr.rel (0) target = $region229
            $region228: #{scc_module_forward.3} parent=224 // pred_region
              // Predicated region
              $region241: #{scc_module_forward.3} parent=228 // pred_check
                _
              $region242: #{scc_module_forward.3} parent=228 // pred_check_branch
                %3008 = sbr.rel (0) target = $region244
              $region243: #{scc_module_forward.3} parent=228 // pred_region
                loop: start=0, step=1, limit=1
                $region245: #{scc_module_forward.3} parent=243 // loop_pre_header
                  _
                $region246: #{scc_module_forward.3} parent=243 // loop_header
                  %s3010 = sphi 0, %s3014
                  %p3011 = scmp.ge.s32.totalorder %s3010, 1
                  %s3015 = sphi %s2976, %s2976
                  %s3016 = sphi %s2983, %s2983
                $region247: #{scc_module_forward.3} parent=243 // loop_header_branch
                  %3013 = sbr.rel (%p3011) target = $region251
                $region248: #{scc_module_forward.3} parent=243 // loop_body
                  %v3017 = vld [vmem:[%s3015] sm:$0xff]
                  %3018 = vst [vmem:[%s3016] sm:$0xff] %v3017
                  %v3019 = vld [vmem:[%s3015 + $0x8] sm:$0xff]
                  %3020 = vst [vmem:[%s3016 + $0x10] sm:$0xff] %v3019
                  %v3021 = vld [vmem:[%s3015 + $0x10] sm:$0xff]
                  %3022 = vst [vmem:[%s3016 + $0x20] sm:$0xff] %v3021
                  %v3023 = vld [vmem:[%s3015 + $0x18] sm:$0xff]
                  %3024 = vst [vmem:[%s3016 + $0x30] sm:$0xff] %v3023
                $region249: #{scc_module_forward.3} parent=243 // loop_footer
                  %s3014 = sadd.s32 1, %s3010
                $region250: #{scc_module_forward.3} parent=243 // loop_footer_branch
                  %3009 = sbr.rel target = $region246
                $region251: #{scc_module_forward.3} parent=243 // loop_exit
                  _
              $region244: #{scc_module_forward.3} parent=228 // pred_fallthru
                _
              // Predicated region
              $region252: #{scc_module_forward.3} parent=228 // pred_check
                _
              $region253: #{scc_module_forward.3} parent=228 // pred_check_branch
                %3026 = sbr.rel target = $region255
              $region254: #{scc_module_forward.3} parent=228 // pred_region
                _
              $region255: #{scc_module_forward.3} parent=228 // pred_fallthru
                _
            $region229: #{scc_module_forward.3} parent=224 // pred_fallthru
              _
            // Predicated region
            $region230: #{scc_module_forward.3} parent=224 // pred_check
              _
            $region231: #{scc_module_forward.3} parent=224 // pred_check_branch
              %2989 = sbr.rel target = $region233
            $region232: #{scc_module_forward.3} parent=224 // pred_region
              loop: start=0, step=1, limit=1
              $region234: #{scc_module_forward.3} parent=232 // loop_pre_header
                _
              $region235: #{scc_module_forward.3} parent=232 // loop_header
                %s2992 = sphi 0, %s2996
                %p2993 = scmp.ge.s32.totalorder %s2992, 1
                %s2997 = sphi %s2976, %s2976
                %s2998 = sphi %s2983, %s2983
              $region236: #{scc_module_forward.3} parent=232 // loop_header_branch
                %2995 = sbr.rel (%p2993) target = $region240
              $region237: #{scc_module_forward.3} parent=232 // loop_body
                %v2999 = vld [vmem:[%s2997] sm:$0xff]
                %3000 = vst [vmem:[%s2998] sm:$0xff] %v2999
                %v3001 = vld [vmem:[%s2997 + $0x8] sm:$0xff]
                %3002 = vst [vmem:[%s2998 + $0x10] sm:$0xff] %v3001
                %v3003 = vld [vmem:[%s2997 + $0x10] sm:$0xff]
                %3004 = vst [vmem:[%s2998 + $0x20] sm:$0xff] %v3003
                %v3005 = vld [vmem:[%s2997 + $0x18] sm:$0xff]
                %3006 = vst [vmem:[%s2998 + $0x30] sm:$0xff] %v3005
              $region238: #{scc_module_forward.3} parent=232 // loop_footer
                %s2996 = sadd.s32 1, %s2992
              $region239: #{scc_module_forward.3} parent=232 // loop_footer_branch
                %2991 = sbr.rel target = $region235
              $region240: #{scc_module_forward.3} parent=232 // loop_exit
                _
            $region233: #{scc_module_forward.3} parent=224 // pred_fallthru
              _
          $region225: #{scc_module_forward.3} parent=220 // pred_fallthru
            _
          %3027 = vnop
        $region221: #{scc_module_forward.3} parent=192 // pred_fallthru
          _
      $region193: #{scc_module_forward.3} parent=5 // pred_fallthru
        _
      %p3028 = scmp.le.s32.totalorder 2, %s13
      // Predicated region
      $region256: #{scc_module_forward.3} parent=5 // pred_check
        %p3029 = pneg %p3028
      $region257: #{scc_module_forward.3} parent=5 // pred_check_branch
        %3031 = sbr.rel (%p3029) target = $region259
      $region258: #{scc_module_forward.3} parent=5 // pred_region
        %s3032 = ssub.s32 %s13, 2
        // Predicated region
        $region260: #{scc_module_forward.3} parent=258 // pred_check
          %p3033 = pneg %p238
        $region261: #{scc_module_forward.3} parent=258 // pred_check_branch
          %3035 = sbr.rel (%p3033) target = $region263
        $region262: #{scc_module_forward.3} parent=258 // pred_region
          %s3036 = sand.u32 %s223, 1
          %s3037 = sand.u32 %s223, 1
          %s3038 = smul.addr %s3037, 32
          %s3039 = scalar_lea.vmem [#allocation12], %s3038
        $region263: #{scc_module_forward.3} parent=258 // pred_fallthru
          _
      $region259: #{scc_module_forward.3} parent=5 // pred_fallthru
        _
    $region6: #{scc_module_forward.3} parent=1 // loop_footer
      %s17 = sadd.s32 1, %s13
    $region7: #{scc_module_forward.3} parent=1 // loop_footer_branch
      %12 = sbr.rel target = $region3
    $region8: #{scc_module_forward.3} parent=1 // loop_exit
      _

</llo_original>
